<compile_context>
chip_gen: v5e
topology: v5e:2x2
jax: 0.10.0
libtpu: 0.0.40
codegen_flags: <defaults>
</compile_context>

<pallas_src>
import functools

import jax
import jax.numpy as jnp
from jax import lax
from jax.experimental import pallas as pl
from jax.experimental.pallas import tpu as pltpu


def _round_up(x, m):
    return (x + m - 1) // m * m


def _pick_vmem_limit(*, time_block, bb, hp, four_hp, compute_itemsize,
                     w_bytes, state_itemsize):
    """Per-generation VMEM limit: real footprint, clamped below physical capacity."""
    pre_bytes = 2 * time_block * bb * four_hp * compute_itemsize   # double-buffered in
    y_bytes = 2 * time_block * bb * hp * compute_itemsize          # double-buffered out
    state_bytes = 2 * 2 * bb * hp * state_itemsize                 # h0 + c0 blocks x2
    scratch_bytes = bb * hp * (compute_itemsize + 4)               # h (compute) + c (f32)
    needed = pre_bytes + y_bytes + w_bytes + state_bytes + scratch_bytes
    needed += 4 * 1024 * 1024                                      # Mosaic internal scratch margin
    try:
        cap = int(getattr(pltpu.get_tpu_info(), "vmem_capacity_bytes",
                          64 * 1024 * 1024))
    except Exception:
        cap = 64 * 1024 * 1024                                     # v7x per-TC worst case
    # Never below the scoped default, never above ~78% of physical VMEM (headroom).
    return max(32 * 1024 * 1024, min(needed, int(cap * 0.78)))


def _lstm_recurrent_kernel(pregates_ref, w_hh_ref, h0_ref, c0_ref, y_ref,
                           h_sc, c_sc):
    """Recurrent part of one LSTM layer for one (batch block, time block).

    Grid = (Bp // BB, T_pad // TB); batch axis "parallel", time axis "arbitrary".

    pregates_ref : (TB, BB, 4*Hp)  x_t @ W_ih^T + (b_ih + b_hh), gate-padded
    w_hh_ref     : (Hp, 4*Hp)      W_hh^T, whole-array VMEM resident (single copy)
    h0_ref/c0_ref: (BB, Hp)        initial states (read only at time step 0)
    y_ref        : (TB, BB, Hp)    hidden-state outputs for this block
    h_sc         : (BB, Hp)        compute-dtype h carry, live across time steps
    c_sc         : (BB, Hp) f32    cell carry, live across time steps
    """
    tb = y_ref.shape[0]
    hp = h_sc.shape[-1]

    @pl.when(pl.program_id(1) == 0)
    def _():
        h_sc[...] = h0_ref[...].astype(h_sc.dtype)
        c_sc[...] = c0_ref[...].astype(jnp.float32)

    # Per-gate weight slabs, lane-aligned (Hp multiple of 128), hoisted out of the
    # time loop.  W_hh is single-copy VMEM resident (no double buffering).
    w_i = w_hh_ref[:, 0 * hp:1 * hp]
    w_f = w_hh_ref[:, 1 * hp:2 * hp]
    w_g = w_hh_ref[:, 2 * hp:3 * hp]
    w_o = w_hh_ref[:, 3 * hp:4 * hp]

    def step(t, carry):
        h_prev = h_sc[...]                    # compute-dtype carry; no per-step cast
        pre_t = pregates_ref.at[t]            # (BB, 4Hp) view, no load

        # Per-gate dots keep peak f32 live state at BB*Hp (vs BB*4Hp) and let the
        # EUP/VPU nonlinearity of gate k overlap the MXU pops of gate k+1.
        def gate(k, w):
            return (pre_t[:, k * hp:(k + 1) * hp].astype(jnp.float32)
                    + jnp.dot(h_prev, w, preferred_element_type=jnp.float32))

        # TODO(synk): on v6e/v7x the sigmoid/tanh below could run in bf16 (EUP has a
        # bf16 path there); kept in f32 so the float32 path matches PyTorch exactly
        # and because v5e has no bf16 EUP/VPU.
        i_g = jax.nn.sigmoid(gate(0, w_i))
        f_g = jax.nn.sigmoid(gate(1, w_f))
        g_g = jnp.tanh(gate(2, w_g))
        o_g = jax.nn.sigmoid(gate(3, w_o))

        c_new = f_g * c_sc[...] + i_g * g_g               # f32 cell update
        h_new = (o_g * jnp.tanh(c_new)).astype(h_sc.dtype)  # single cast onto carry
        c_sc[...] = c_new
        h_sc[...] = h_new
        y_ref[t] = h_new.astype(y_ref.dtype)              # same dtype -> plain copy
        return carry

    # Fully unrolled so the LLO scheduler can overlap the MXU push of step t with
    # the EUP/VPU gate math of step t-1.
    lax.fori_loop(0, tb, step, 0, unroll=True)


def _lstm_layer(pregates, w_hh_t, h0, c0, *, time_block, batch_block, out_dtype):
    """Run the recurrence of one layer over the (padded) sequence."""
    t_pad, b_pad, four_hp = pregates.shape
    hp = four_hp // 4
    bb = batch_block
    grid = (b_pad // bb, t_pad // time_block)

    vmem_limit = _pick_vmem_limit(
        time_block=time_block, bb=bb, hp=hp, four_hp=four_hp,
        compute_itemsize=pregates.dtype.itemsize,
        w_bytes=w_hh_t.size * w_hh_t.dtype.itemsize,
        state_itemsize=h0.dtype.itemsize)

    grid_spec = pltpu.PrefetchScalarGridSpec(
        num_scalar_prefetch=0,
        grid=grid,
        in_specs=[
            # Time-blocked pregates: one large lane-dense DMA per grid step.
            pl.BlockSpec((time_block, bb, four_hp), lambda b, t: (t, b, 0)),
            # W_hh^T as a whole-array VMEM input: single copy, NOT double-buffered.
            # TODO(synk): for H >= ~1536 on v7x (bf16 W_hh >= 24 MiB), stream W_hh
            # gate chunks via memory_space=pl.ANY + manual DMA instead.
            pl.BlockSpec(memory_space=pltpu.MemorySpace.VMEM),
            # Initial states per batch block (tiny; double-buffering is negligible).
            pl.BlockSpec((bb, hp), lambda b, t: (b, 0)),     # h0
            pl.BlockSpec((bb, hp), lambda b, t: (b, 0)),     # c0
        ],
        out_specs=pl.BlockSpec((time_block, bb, hp), lambda b, t: (t, b, 0)),
        scratch_shapes=[
            pltpu.VMEM((bb, hp), pregates.dtype),   # h carry (compute dtype)
            pltpu.VMEM((bb, hp), jnp.float32),      # c carry (f32)
        ],
    )

    return pl.pallas_call(
        _lstm_recurrent_kernel,
        out_shape=jax.ShapeDtypeStruct((t_pad, b_pad, hp), out_dtype),
        grid_spec=grid_spec,
        compiler_params=pltpu.CompilerParams(
            # Batch blocks are independent (v7x dual-TC can split them); time is a
            # true recurrence.
            dimension_semantics=("parallel", "arbitrary"),
            vmem_limit_bytes=vmem_limit,
        ),
    )(pregates, w_hh_t, h0, c0)


@functools.partial(jax.jit,
                   static_argnames=("compute_dtype", "time_block", "batch_block"))
def class_lstm_forward(x, params, h0, c0, *, compute_dtype=jnp.bfloat16,
                       time_block=32, batch_block=None):
    """Equivalent of ClassLSTM.forward: returns `output` of the stacked LSTM.

    params: tuple of per-layer (w_ih_t (in, 4H), w_hh_t (H, 4H), bias (4H,))
            with bias = b_ih + b_hh and PyTorch (i, f, g, o) gate ordering.
    h0, c0: (num_layers, B, H).
    compute_dtype: dtype of matmul operands and the h carry (accumulation and the c
            carry stay f32).  float32 reproduces PyTorch math exactly; bfloat16 is
            the fast TPU configuration.
    time_block: timesteps per grid step (amortizes per-step overhead; default 32).
    batch_block: if set (and B is large), the batch is split into blocks of this
            size on a leading "parallel" grid axis -- on v7x this lets the second
            TensorCore take half the batch.  Default: single block.

    Throughput note: the serial recurrent matmul uses only ~Bp/256 of the MXU width
    at tiny batch; batching many independent sequences per call (B -> 128-256) is
    the dominant lever for the serial part.
    """
    T, B, _ = x.shape
    H = h0.shape[-1]

    # vreg-aligned padded sizes: sublanes (batch) and lanes (hidden).
    sub = 8 * (4 // jnp.dtype(compute_dtype).itemsize)   # 8 for f32, 16 for bf16
    b_pad = _round_up(B, sub)
    if batch_block is None:
        bb = b_pad
    else:
        bb = _round_up(min(int(batch_block), b_pad), sub)
        b_pad = _round_up(b_pad, bb)
    h_pad = _round_up(H, 128)
    tb = min(time_block, T)
    t_pad = _round_up(T, tb)

    # Zero padding keeps the padded hidden columns *exactly* zero through the
    # recurrence (their gates get zero pre-activations -> c stays 0, h stays 0), so
    # real columns are untouched; padded batch rows / trailing timesteps are sliced
    # off at the end.
    h0_p = jnp.pad(h0, ((0, 0), (0, b_pad - B), (0, h_pad - H)))
    c0_p = jnp.pad(c0, ((0, 0), (0, b_pad - B), (0, h_pad - H)))

    y = jnp.pad(x, ((0, t_pad - T), (0, b_pad - B), (0, 0)))   # (Tp, Bp, in)
    for layer, (w_ih_t, w_hh_t, bias) in enumerate(params):
        in_feat = y.shape[-1]
        in_sz = w_ih_t.shape[0]

        # Gate-wise padding: (*, 4H) -> (*, 4*Hp) so every gate slice is a
        # lane-aligned multiple of 128; padded rows (extra input features /
        # extra hidden units) are zero.
        w_ih_p = jnp.pad(
            w_ih_t.reshape(in_sz, 4, H),
            ((0, in_feat - in_sz), (0, 0), (0, h_pad - H)),
        ).reshape(in_feat, 4 * h_pad)
        w_hh_p = jnp.pad(
            w_hh_t.reshape(H, 4, H),
            ((0, h_pad - H), (0, 0), (0, h_pad - H)),
        ).reshape(h_pad, 4 * h_pad)
        bias_p = jnp.pad(
            bias.reshape(4, H), ((0, 0), (0, h_pad - H))).reshape(4 * h_pad)

        # Parallel part, hoisted out of the recurrence: one big matmul over all
        # timesteps (plain XLA), f32 accumulation, stored in compute_dtype.
        # TODO(synk): on 128-MiB-VMEM parts (v5e/v6e) with long sequences, fuse this
        # projection into the kernel (keep W_ih resident, compute the next time
        # block's pregates overlapped with the current block's recurrence) to avoid
        # the pregates HBM round trip.
        pregates = (
            jnp.dot(y.reshape(t_pad * b_pad, in_feat).astype(compute_dtype),
                    w_ih_p.astype(compute_dtype),
                    preferred_element_type=jnp.float32)
            + bias_p.astype(jnp.float32)
        ).astype(compute_dtype).reshape(t_pad, b_pad, 4 * h_pad)

        # Serial part: Pallas kernel, h/c carried in VMEM scratch.
        y = _lstm_layer(pregates, w_hh_p.astype(compute_dtype),
                        h0_p[layer], c0_p[layer],
                        time_block=tb, batch_block=bb, out_dtype=compute_dtype)
        # dropout=0 in the reference module, so no inter-layer dropout.

    return y[:T, :B, :H].astype(x.dtype)


def init_class_lstm_params(key, input_size, hidden_size, num_layers, batch,
                           dtype=jnp.float32):
    """Deterministic parameter init matching nn.LSTM's shapes.

    PyTorch initializes LSTM weights/biases uniform in [-1/sqrt(H), 1/sqrt(H)];
    h0/c0 in ClassLSTM come from torch.randn (standard normal).
    """
    k = 1.0 / jnp.sqrt(hidden_size)
    params = []
    for layer in range(num_layers):
        in_sz = input_size if layer == 0 else hidden_size
        key, k1, k2, k3, k4 = jax.random.split(key, 5)
        w_ih = jax.random.uniform(k1, (4 * hidden_size, in_sz), dtype, -k, k)
        w_hh = jax.random.uniform(k2, (4 * hidden_size, hidden_size), dtype, -k, k)
        b_ih = jax.random.uniform(k3, (4 * hidden_size,), dtype, -k, k)
        b_hh = jax.random.uniform(k4, (4 * hidden_size,), dtype, -k, k)
        params.append((
            w_ih.T,            # (in_sz, 4H)
            w_hh.T,            # (H, 4H)
            b_ih + b_hh,       # (4H,)
        ))
    key, kh, kc = jax.random.split(key, 3)
    num_directions = 1  # bidirectional=False in ClassLSTM
    h0 = jax.random.normal(kh, (num_layers * num_directions, batch, hidden_size), dtype)
    c0 = jax.random.normal(kc, (num_layers * num_directions, batch, hidden_size), dtype)
    return tuple(params), h0, c0


def _reference_lstm(x, params, h0, c0, compute_dtype=jnp.float32):
    """Pure-JAX reference with PyTorch LSTM semantics, mirroring the kernel's
    precision choices (compute_dtype matmul operands, f32 accumulation / c carry)."""
    T, B, _ = x.shape
    H = h0.shape[-1]
    y = x
    for layer, (w_ih_t, w_hh_t, bias) in enumerate(params):
        w_ih = w_ih_t.astype(compute_dtype)
        w_hh = w_hh_t.astype(compute_dtype)
        pregates = (
            jnp.dot(y.reshape(T * B, -1).astype(compute_dtype), w_ih,
                    preferred_element_type=jnp.float32)
            + bias.astype(jnp.float32)
        ).astype(compute_dtype).reshape(T, B, 4 * H)

        h = h0[layer].astype(jnp.float32)
        c = c0[layer].astype(jnp.float32)

        def step(carry, pre_t, w_hh=w_hh):
            h, c = carry
            gates = pre_t.astype(jnp.float32) + jnp.dot(
                h.astype(w_hh.dtype), w_hh, preferred_element_type=jnp.float32)
            i = jax.nn.sigmoid(gates[:, 0 * H:1 * H])
            f = jax.nn.sigmoid(gates[:, 1 * H:2 * H])
            g = jnp.tanh(gates[:, 2 * H:3 * H])
            o = jax.nn.sigmoid(gates[:, 3 * H:4 * H])
            c_new = f * c + i * g
            h_new = o * jnp.tanh(c_new)
            return (h_new, c_new), h_new

        (_, _), ys = lax.scan(step, (h, c), pregates)
        y = ys.astype(compute_dtype)
    return y.astype(x.dtype)


if __name__ == "__main__":
    # Small shapes consistent with ClassLSTM(input_size, hidden_size, num_layers, batch)
    SEQ, BATCH, INPUT, HIDDEN, NUM_LAYERS = 8, 4, 16, 32, 2

    key = jax.random.PRNGKey(0)
    key, k_x, k_p = jax.random.split(key, 3)

    x = jax.random.normal(k_x, (SEQ, BATCH, INPUT), jnp.float32)   # (T, B, I)
    params, h0, c0 = init_class_lstm_params(k_p, INPUT, HIDDEN, NUM_LAYERS, BATCH)

    # Fast TPU configuration: bf16 matmul operands + bf16 h carry, f32 cell/accum.
    out = jax.block_until_ready(
        class_lstm_forward(x, params, h0, c0, compute_dtype=jnp.bfloat16))
    assert out.shape == (SEQ, BATCH, HIDDEN), out.shape
    ref_bf16 = jax.block_until_ready(
        _reference_lstm(x, params, h0, c0, compute_dtype=jnp.bfloat16))
    assert jnp.allclose(out, ref_bf16, atol=2e-2, rtol=2e-2), \
        float(jnp.max(jnp.abs(out - ref_bf16)))

    # Exact float32 semantics check (matches PyTorch math).
    out_f32 = jax.block_until_ready(
        class_lstm_forward(x, params, h0, c0, compute_dtype=jnp.float32))
    ref_f32 = jax.block_until_ready(
        _reference_lstm(x, params, h0, c0, compute_dtype=jnp.float32))
    assert jnp.allclose(out_f32, ref_f32, atol=2e-5, rtol=2e-5), \
        float(jnp.max(jnp.abs(out_f32 - ref_f32)))

    # Exercise the batch-blocked ("parallel" leading grid axis) path with a larger
    # batch -- on v7x the two batch blocks can run on separate TensorCores.
    BATCH2 = 16
    key, k_x2, k_p2 = jax.random.split(key, 3)
    x2 = jax.random.normal(k_x2, (SEQ, BATCH2, INPUT), jnp.float32)
    params2, h02, c02 = init_class_lstm_params(k_p2, INPUT, HIDDEN, NUM_LAYERS, BATCH2)
    out_bb = jax.block_until_ready(
        class_lstm_forward(x2, params2, h02, c02,
                           compute_dtype=jnp.float32, batch_block=8))
    ref_bb = jax.block_until_ready(
        _reference_lstm(x2, params2, h02, c02, compute_dtype=jnp.float32))
    assert jnp.allclose(out_bb, ref_bb, atol=2e-5, rtol=2e-5), \
        float(jnp.max(jnp.abs(out_bb - ref_bb)))

    print("KERNEL_OK")
</pallas_src>

<mosaic_0001>
module attributes {stable_mosaic.version = 11 : i64} {
  func.func @_lstm_recurrent_kernel(%arg0: i32, %arg1: i32, %arg2: memref<8x16x512xbf16, #tpu.memory_space<vmem>>, %arg3: memref<128x512xbf16, #tpu.memory_space<vmem>>, %arg4: memref<16x128xf32, #tpu.memory_space<vmem>>, %arg5: memref<16x128xf32, #tpu.memory_space<vmem>>, %arg6: memref<8x16x128xbf16, #tpu.memory_space<vmem>>, %arg7: memref<16x128xbf16, #tpu.memory_space<vmem>>, %arg8: memref<16x128xf32, #tpu.memory_space<vmem>>) attributes {dimension_semantics = [#tpu.dimension_semantics<parallel>, #tpu.dimension_semantics<arbitrary>], iteration_bounds = array<i64: 1, 1>, scalar_prefetch = 0 : i64, scratch_operands = 2 : i64, tpu.core_type = #tpu.core_type<tc>, window_params = [{transform_indices = @transform_0, window_bounds = array<i64: 8, 16, 512>}, {pipeline_mode = #tpu.pipeline_mode<synchronous>, transform_indices = @transform_1, window_bounds = array<i64: 128, 512>}, {transform_indices = @transform_2, window_bounds = array<i64: 16, 128>}, {transform_indices = @transform_3, window_bounds = array<i64: 16, 128>}, {transform_indices = @transform_4, window_bounds = array<i64: 8, 16, 128>}]} {
    %c0_i32 = arith.constant 0 : i32
    %0 = arith.cmpi eq, %arg1, %c0_i32 : i32
    %1 = arith.extui %0 : i1 to i32
    %c0_i32_0 = arith.constant 0 : i32
    %2 = arith.cmpi ne, %1, %c0_i32_0 : i32
    scf.if %2 {
      %c0_269 = arith.constant 0 : index
      %c0_270 = arith.constant 0 : index
      %439 = vector.load %arg4[%c0_269, %c0_270] : memref<16x128xf32, #tpu.memory_space<vmem>>, vector<16x128xf32>
      %440 = arith.truncf %439 : vector<16x128xf32> to vector<16x128xbf16>
      %c0_271 = arith.constant 0 : index
      %c0_272 = arith.constant 0 : index
      %441 = vector.load %arg7[%c0_271, %c0_272] : memref<16x128xbf16, #tpu.memory_space<vmem>>, vector<16x128xbf16>
      tpu.vector_store %arg7[%c0_271, %c0_272], %440 {strides = array<i32>} : memref<16x128xbf16, #tpu.memory_space<vmem>>, vector<16x128xbf16>,
      %c0_273 = arith.constant 0 : index
      %c0_274 = arith.constant 0 : index
      %442 = vector.load %arg5[%c0_273, %c0_274] : memref<16x128xf32, #tpu.memory_space<vmem>>, vector<16x128xf32>
      %c0_275 = arith.constant 0 : index
      %c0_276 = arith.constant 0 : index
      %443 = vector.load %arg8[%c0_275, %c0_276] : memref<16x128xf32, #tpu.memory_space<vmem>>, vector<16x128xf32>
      tpu.vector_store %arg8[%c0_275, %c0_276], %442 {strides = array<i32>} : memref<16x128xf32, #tpu.memory_space<vmem>>, vector<16x128xf32>,
    } else {
    }
    %c0 = arith.constant 0 : index
    %c0_1 = arith.constant 0 : index
    %3 = vector.load %arg3[%c0, %c0_1] : memref<128x512xbf16, #tpu.memory_space<vmem>>, vector<128x128xbf16>
    %c0_2 = arith.constant 0 : index
    %c128 = arith.constant 128 : index
    %4 = vector.load %arg3[%c0_2, %c128] : memref<128x512xbf16, #tpu.memory_space<vmem>>, vector<128x128xbf16>
    %c0_3 = arith.constant 0 : index
    %c256 = arith.constant 256 : index
    %5 = vector.load %arg3[%c0_3, %c256] : memref<128x512xbf16, #tpu.memory_space<vmem>>, vector<128x128xbf16>
    %c0_4 = arith.constant 0 : index
    %c384 = arith.constant 384 : index
    %6 = vector.load %arg3[%c0_4, %c384] : memref<128x512xbf16, #tpu.memory_space<vmem>>, vector<128x128xbf16>
    %c0_i32_5 = arith.constant 0 : i32
    %c0_6 = arith.constant 0 : index
    %c0_7 = arith.constant 0 : index
    %7 = vector.load %arg7[%c0_6, %c0_7] : memref<16x128xbf16, #tpu.memory_space<vmem>>, vector<16x128xbf16>
    %c0_i32_8 = arith.constant 0 : i32
    %c0_i32_9 = arith.constant 0 : i32
    %8 = tpu.memref_slice %arg2[%c0_i32_5, %c0_i32_8, %c0_i32_9] : memref<8x16x512xbf16, #tpu.memory_space<vmem>> -> memref<1x16x512xbf16, #tpu.memory_space<vmem>>
    %9 = tpu.memref_squeeze %8 : memref<1x16x512xbf16, #tpu.memory_space<vmem>> -> memref<16x512xbf16, #tpu.memory_space<vmem>>
    %c0_10 = arith.constant 0 : index
    %c0_11 = arith.constant 0 : index
    %10 = vector.load %9[%c0_10, %c0_11] : memref<16x512xbf16, #tpu.memory_space<vmem>>, vector<16x128xbf16>
    %11 = arith.extf %10 : vector<16x128xbf16> to vector<16x128xf32>
    %cst = arith.constant dense<0.000000e+00> : vector<16x128xf32>
    %12 = tpu.matmul %7, %3, %cst {dimension_numbers = #tpu.dot_dimension_numbers<[1], [0], [0], [1], [0, 0, 1, 1], [], []>} : vector<16x128xbf16>, vector<128x128xbf16>, vector<16x128xf32> -> vector<16x128xf32>
    %13 = arith.addf %11, %12 : vector<16x128xf32>
    %14 = arith.negf %13 : vector<16x128xf32>
    %15 = math.exp %14 : vector<16x128xf32>
    %cst_12 = arith.constant 1.000000e+00 : f32
    %16 = vector.broadcast %cst_12 : f32 to vector<16x128xf32>
    %17 = arith.addf %16, %15 : vector<16x128xf32>
    %18 = arith.divf %16, %17 : vector<16x128xf32>
    %c0_i32_13 = arith.constant 0 : i32
    %c0_i32_14 = arith.constant 0 : i32
    %19 = tpu.memref_slice %arg2[%c0_i32_5, %c0_i32_13, %c0_i32_14] : memref<8x16x512xbf16, #tpu.memory_space<vmem>> -> memref<1x16x512xbf16, #tpu.memory_space<vmem>>
    %20 = tpu.memref_squeeze %19 : memref<1x16x512xbf16, #tpu.memory_space<vmem>> -> memref<16x512xbf16, #tpu.memory_space<vmem>>
    %c0_15 = arith.constant 0 : index
    %c128_16 = arith.constant 128 : index
    %21 = vector.load %20[%c0_15, %c128_16] : memref<16x512xbf16, #tpu.memory_space<vmem>>, vector<16x128xbf16>
    %22 = arith.extf %21 : vector<16x128xbf16> to vector<16x128xf32>
    %cst_17 = arith.constant dense<0.000000e+00> : vector<16x128xf32>
    %23 = tpu.matmul %7, %4, %cst_17 {dimension_numbers = #tpu.dot_dimension_numbers<[1], [0], [0], [1], [0, 0, 1, 1], [], []>} : vector<16x128xbf16>, vector<128x128xbf16>, vector<16x128xf32> -> vector<16x128xf32>
    %24 = arith.addf %22, %23 : vector<16x128xf32>
    %25 = arith.negf %24 : vector<16x128xf32>
    %26 = math.exp %25 : vector<16x128xf32>
    %cst_18 = arith.constant 1.000000e+00 : f32
    %27 = vector.broadcast %cst_18 : f32 to vector<16x128xf32>
    %28 = arith.addf %27, %26 : vector<16x128xf32>
    %29 = arith.divf %27, %28 : vector<16x128xf32>
    %c0_i32_19 = arith.constant 0 : i32
    %c0_i32_20 = arith.constant 0 : i32
    %30 = tpu.memref_slice %arg2[%c0_i32_5, %c0_i32_19, %c0_i32_20] : memref<8x16x512xbf16, #tpu.memory_space<vmem>> -> memref<1x16x512xbf16, #tpu.memory_space<vmem>>
    %31 = tpu.memref_squeeze %30 : memref<1x16x512xbf16, #tpu.memory_space<vmem>> -> memref<16x512xbf16, #tpu.memory_space<vmem>>
    %c0_21 = arith.constant 0 : index
    %c256_22 = arith.constant 256 : index
    %32 = vector.load %31[%c0_21, %c256_22] : memref<16x512xbf16, #tpu.memory_space<vmem>>, vector<16x128xbf16>
    %33 = arith.extf %32 : vector<16x128xbf16> to vector<16x128xf32>
    %cst_23 = arith.constant dense<0.000000e+00> : vector<16x128xf32>
    %34 = tpu.matmul %7, %5, %cst_23 {dimension_numbers = #tpu.dot_dimension_numbers<[1], [0], [0], [1], [0, 0, 1, 1], [], []>} : vector<16x128xbf16>, vector<128x128xbf16>, vector<16x128xf32> -> vector<16x128xf32>
    %35 = arith.addf %33, %34 : vector<16x128xf32>
    %36 = math.tanh %35 : vector<16x128xf32>
    %c0_i32_24 = arith.constant 0 : i32
    %c0_i32_25 = arith.constant 0 : i32
    %37 = tpu.memref_slice %arg2[%c0_i32_5, %c0_i32_24, %c0_i32_25] : memref<8x16x512xbf16, #tpu.memory_space<vmem>> -> memref<1x16x512xbf16, #tpu.memory_space<vmem>>
    %38 = tpu.memref_squeeze %37 : memref<1x16x512xbf16, #tpu.memory_space<vmem>> -> memref<16x512xbf16, #tpu.memory_space<vmem>>
    %c0_26 = arith.constant 0 : index
    %c384_27 = arith.constant 384 : index
    %39 = vector.load %38[%c0_26, %c384_27] : memref<16x512xbf16, #tpu.memory_space<vmem>>, vector<16x128xbf16>
    %40 = arith.extf %39 : vector<16x128xbf16> to vector<16x128xf32>
    %cst_28 = arith.constant dense<0.000000e+00> : vector<16x128xf32>
    %41 = tpu.matmul %7, %6, %cst_28 {dimension_numbers = #tpu.dot_dimension_numbers<[1], [0], [0], [1], [0, 0, 1, 1], [], []>} : vector<16x128xbf16>, vector<128x128xbf16>, vector<16x128xf32> -> vector<16x128xf32>
    %42 = arith.addf %40, %41 : vector<16x128xf32>
    %43 = arith.negf %42 : vector<16x128xf32>
    %44 = math.exp %43 : vector<16x128xf32>
    %cst_29 = arith.constant 1.000000e+00 : f32
    %45 = vector.broadcast %cst_29 : f32 to vector<16x128xf32>
    %46 = arith.addf %45, %44 : vector<16x128xf32>
    %47 = arith.divf %45, %46 : vector<16x128xf32>
    %c0_30 = arith.constant 0 : index
    %c0_31 = arith.constant 0 : index
    %48 = vector.load %arg8[%c0_30, %c0_31] : memref<16x128xf32, #tpu.memory_space<vmem>>, vector<16x128xf32>
    %49 = arith.mulf %29, %48 : vector<16x128xf32>
    %50 = arith.mulf %18, %36 : vector<16x128xf32>
    %51 = arith.addf %49, %50 : vector<16x128xf32>
    %52 = math.tanh %51 : vector<16x128xf32>
    %53 = arith.mulf %47, %52 : vector<16x128xf32>
    %54 = arith.truncf %53 : vector<16x128xf32> to vector<16x128xbf16>
    %c0_32 = arith.constant 0 : index
    %c0_33 = arith.constant 0 : index
    %55 = vector.load %arg8[%c0_32, %c0_33] : memref<16x128xf32, #tpu.memory_space<vmem>>, vector<16x128xf32>
    tpu.vector_store %arg8[%c0_32, %c0_33], %51 {strides = array<i32>} : memref<16x128xf32, #tpu.memory_space<vmem>>, vector<16x128xf32>,
    %c0_34 = arith.constant 0 : index
    %c0_35 = arith.constant 0 : index
    %56 = vector.load %arg7[%c0_34, %c0_35] : memref<16x128xbf16, #tpu.memory_space<vmem>>, vector<16x128xbf16>
    tpu.vector_store %arg7[%c0_34, %c0_35], %54 {strides = array<i32>} : memref<16x128xbf16, #tpu.memory_space<vmem>>, vector<16x128xbf16>,
    %57 = arith.index_cast %c0_i32_5 : i32 to index
    %c0_36 = arith.constant 0 : index
    %c0_37 = arith.constant 0 : index
    %58 = vector.load %arg6[%57, %c0_36, %c0_37] : memref<8x16x128xbf16, #tpu.memory_space<vmem>>, vector<1x16x128xbf16>
    %59 = vector.shape_cast %58 : vector<1x16x128xbf16> to vector<16x128xbf16>
    %60 = vector.shape_cast %54 : vector<16x128xbf16> to vector<1x16x128xbf16>
    tpu.vector_store %arg6[%57, %c0_36, %c0_37], %60 {strides = array<i32>} : memref<8x16x128xbf16, #tpu.memory_space<vmem>>, vector<1x16x128xbf16>,
    %c1_i32 = arith.constant 1 : i32
    %c0_38 = arith.constant 0 : index
    %c0_39 = arith.constant 0 : index
    %61 = vector.load %arg7[%c0_38, %c0_39] : memref<16x128xbf16, #tpu.memory_space<vmem>>, vector<16x128xbf16>
    %c0_i32_40 = arith.constant 0 : i32
    %c0_i32_41 = arith.constant 0 : i32
    %62 = tpu.memref_slice %arg2[%c1_i32, %c0_i32_40, %c0_i32_41] : memref<8x16x512xbf16, #tpu.memory_space<vmem>> -> memref<1x16x512xbf16, #tpu.memory_space<vmem>>
    %63 = tpu.memref_squeeze %62 : memref<1x16x512xbf16, #tpu.memory_space<vmem>> -> memref<16x512xbf16, #tpu.memory_space<vmem>>
    %c0_42 = arith.constant 0 : index
    %c0_43 = arith.constant 0 : index
    %64 = vector.load %63[%c0_42, %c0_43] : memref<16x512xbf16, #tpu.memory_space<vmem>>, vector<16x128xbf16>
    %65 = arith.extf %64 : vector<16x128xbf16> to vector<16x128xf32>
    %cst_44 = arith.constant dense<0.000000e+00> : vector<16x128xf32>
    %66 = tpu.matmul %61, %3, %cst_44 {dimension_numbers = #tpu.dot_dimension_numbers<[1], [0], [0], [1], [0, 0, 1, 1], [], []>} : vector<16x128xbf16>, vector<128x128xbf16>, vector<16x128xf32> -> vector<16x128xf32>
    %67 = arith.addf %65, %66 : vector<16x128xf32>
    %68 = arith.negf %67 : vector<16x128xf32>
    %69 = math.exp %68 : vector<16x128xf32>
    %cst_45 = arith.constant 1.000000e+00 : f32
    %70 = vector.broadcast %cst_45 : f32 to vector<16x128xf32>
    %71 = arith.addf %70, %69 : vector<16x128xf32>
    %72 = arith.divf %70, %71 : vector<16x128xf32>
    %c0_i32_46 = arith.constant 0 : i32
    %c0_i32_47 = arith.constant 0 : i32
    %73 = tpu.memref_slice %arg2[%c1_i32, %c0_i32_46, %c0_i32_47] : memref<8x16x512xbf16, #tpu.memory_space<vmem>> -> memref<1x16x512xbf16, #tpu.memory_space<vmem>>
    %74 = tpu.memref_squeeze %73 : memref<1x16x512xbf16, #tpu.memory_space<vmem>> -> memref<16x512xbf16, #tpu.memory_space<vmem>>
    %c0_48 = arith.constant 0 : index
    %c128_49 = arith.constant 128 : index
    %75 = vector.load %74[%c0_48, %c128_49] : memref<16x512xbf16, #tpu.memory_space<vmem>>, vector<16x128xbf16>
    %76 = arith.extf %75 : vector<16x128xbf16> to vector<16x128xf32>
    %cst_50 = arith.constant dense<0.000000e+00> : vector<16x128xf32>
    %77 = tpu.matmul %61, %4, %cst_50 {dimension_numbers = #tpu.dot_dimension_numbers<[1], [0], [0], [1], [0, 0, 1, 1], [], []>} : vector<16x128xbf16>, vector<128x128xbf16>, vector<16x128xf32> -> vector<16x128xf32>
    %78 = arith.addf %76, %77 : vector<16x128xf32>
    %79 = arith.negf %78 : vector<16x128xf32>
    %80 = math.exp %79 : vector<16x128xf32>
    %cst_51 = arith.constant 1.000000e+00 : f32
    %81 = vector.broadcast %cst_51 : f32 to vector<16x128xf32>
    %82 = arith.addf %81, %80 : vector<16x128xf32>
    %83 = arith.divf %81, %82 : vector<16x128xf32>
    %c0_i32_52 = arith.constant 0 : i32
    %c0_i32_53 = arith.constant 0 : i32
    %84 = tpu.memref_slice %arg2[%c1_i32, %c0_i32_52, %c0_i32_53] : memref<8x16x512xbf16, #tpu.memory_space<vmem>> -> memref<1x16x512xbf16, #tpu.memory_space<vmem>>
    %85 = tpu.memref_squeeze %84 : memref<1x16x512xbf16, #tpu.memory_space<vmem>> -> memref<16x512xbf16, #tpu.memory_space<vmem>>
    %c0_54 = arith.constant 0 : index
    %c256_55 = arith.constant 256 : index
    %86 = vector.load %85[%c0_54, %c256_55] : memref<16x512xbf16, #tpu.memory_space<vmem>>, vector<16x128xbf16>
    %87 = arith.extf %86 : vector<16x128xbf16> to vector<16x128xf32>
    %cst_56 = arith.constant dense<0.000000e+00> : vector<16x128xf32>
    %88 = tpu.matmul %61, %5, %cst_56 {dimension_numbers = #tpu.dot_dimension_numbers<[1], [0], [0], [1], [0, 0, 1, 1], [], []>} : vector<16x128xbf16>, vector<128x128xbf16>, vector<16x128xf32> -> vector<16x128xf32>
    %89 = arith.addf %87, %88 : vector<16x128xf32>
    %90 = math.tanh %89 : vector<16x128xf32>
    %c0_i32_57 = arith.constant 0 : i32
    %c0_i32_58 = arith.constant 0 : i32
    %91 = tpu.memref_slice %arg2[%c1_i32, %c0_i32_57, %c0_i32_58] : memref<8x16x512xbf16, #tpu.memory_space<vmem>> -> memref<1x16x512xbf16, #tpu.memory_space<vmem>>
    %92 = tpu.memref_squeeze %91 : memref<1x16x512xbf16, #tpu.memory_space<vmem>> -> memref<16x512xbf16, #tpu.memory_space<vmem>>
    %c0_59 = arith.constant 0 : index
    %c384_60 = arith.constant 384 : index
    %93 = vector.load %92[%c0_59, %c384_60] : memref<16x512xbf16, #tpu.memory_space<vmem>>, vector<16x128xbf16>
    %94 = arith.extf %93 : vector<16x128xbf16> to vector<16x128xf32>
    %cst_61 = arith.constant dense<0.000000e+00> : vector<16x128xf32>
    %95 = tpu.matmul %61, %6, %cst_61 {dimension_numbers = #tpu.dot_dimension_numbers<[1], [0], [0], [1], [0, 0, 1, 1], [], []>} : vector<16x128xbf16>, vector<128x128xbf16>, vector<16x128xf32> -> vector<16x128xf32>
    %96 = arith.addf %94, %95 : vector<16x128xf32>
    %97 = arith.negf %96 : vector<16x128xf32>
    %98 = math.exp %97 : vector<16x128xf32>
    %cst_62 = arith.constant 1.000000e+00 : f32
    %99 = vector.broadcast %cst_62 : f32 to vector<16x128xf32>
    %100 = arith.addf %99, %98 : vector<16x128xf32>
    %101 = arith.divf %99, %100 : vector<16x128xf32>
    %c0_63 = arith.constant 0 : index
    %c0_64 = arith.constant 0 : index
    %102 = vector.load %arg8[%c0_63, %c0_64] : memref<16x128xf32, #tpu.memory_space<vmem>>, vector<16x128xf32>
    %103 = arith.mulf %83, %102 : vector<16x128xf32>
    %104 = arith.mulf %72, %90 : vector<16x128xf32>
    %105 = arith.addf %103, %104 : vector<16x128xf32>
    %106 = math.tanh %105 : vector<16x128xf32>
    %107 = arith.mulf %101, %106 : vector<16x128xf32>
    %108 = arith.truncf %107 : vector<16x128xf32> to vector<16x128xbf16>
    %c0_65 = arith.constant 0 : index
    %c0_66 = arith.constant 0 : index
    %109 = vector.load %arg8[%c0_65, %c0_66] : memref<16x128xf32, #tpu.memory_space<vmem>>, vector<16x128xf32>
    tpu.vector_store %arg8[%c0_65, %c0_66], %105 {strides = array<i32>} : memref<16x128xf32, #tpu.memory_space<vmem>>, vector<16x128xf32>,
    %c0_67 = arith.constant 0 : index
    %c0_68 = arith.constant 0 : index
    %110 = vector.load %arg7[%c0_67, %c0_68] : memref<16x128xbf16, #tpu.memory_space<vmem>>, vector<16x128xbf16>
    tpu.vector_store %arg7[%c0_67, %c0_68], %108 {strides = array<i32>} : memref<16x128xbf16, #tpu.memory_space<vmem>>, vector<16x128xbf16>,
    %111 = arith.index_cast %c1_i32 : i32 to index
    %c0_69 = arith.constant 0 : index
    %c0_70 = arith.constant 0 : index
    %112 = vector.load %arg6[%111, %c0_69, %c0_70] : memref<8x16x128xbf16, #tpu.memory_space<vmem>>, vector<1x16x128xbf16>
    %113 = vector.shape_cast %112 : vector<1x16x128xbf16> to vector<16x128xbf16>
    %114 = vector.shape_cast %108 : vector<16x128xbf16> to vector<1x16x128xbf16>
    tpu.vector_store %arg6[%111, %c0_69, %c0_70], %114 {strides = array<i32>} : memref<8x16x128xbf16, #tpu.memory_space<vmem>>, vector<1x16x128xbf16>,
    %c2_i32 = arith.constant 2 : i32
    %c0_71 = arith.constant 0 : index
    %c0_72 = arith.constant 0 : index
    %115 = vector.load %arg7[%c0_71, %c0_72] : memref<16x128xbf16, #tpu.memory_space<vmem>>, vector<16x128xbf16>
    %c0_i32_73 = arith.constant 0 : i32
    %c0_i32_74 = arith.constant 0 : i32
    %116 = tpu.memref_slice %arg2[%c2_i32, %c0_i32_73, %c0_i32_74] : memref<8x16x512xbf16, #tpu.memory_space<vmem>> -> memref<1x16x512xbf16, #tpu.memory_space<vmem>>
    %117 = tpu.memref_squeeze %116 : memref<1x16x512xbf16, #tpu.memory_space<vmem>> -> memref<16x512xbf16, #tpu.memory_space<vmem>>
    %c0_75 = arith.constant 0 : index
    %c0_76 = arith.constant 0 : index
    %118 = vector.load %117[%c0_75, %c0_76] : memref<16x512xbf16, #tpu.memory_space<vmem>>, vector<16x128xbf16>
    %119 = arith.extf %118 : vector<16x128xbf16> to vector<16x128xf32>
    %cst_77 = arith.constant dense<0.000000e+00> : vector<16x128xf32>
    %120 = tpu.matmul %115, %3, %cst_77 {dimension_numbers = #tpu.dot_dimension_numbers<[1], [0], [0], [1], [0, 0, 1, 1], [], []>} : vector<16x128xbf16>, vector<128x128xbf16>, vector<16x128xf32> -> vector<16x128xf32>
    %121 = arith.addf %119, %120 : vector<16x128xf32>
    %122 = arith.negf %121 : vector<16x128xf32>
    %123 = math.exp %122 : vector<16x128xf32>
    %cst_78 = arith.constant 1.000000e+00 : f32
    %124 = vector.broadcast %cst_78 : f32 to vector<16x128xf32>
    %125 = arith.addf %124, %123 : vector<16x128xf32>
    %126 = arith.divf %124, %125 : vector<16x128xf32>
    %c0_i32_79 = arith.constant 0 : i32
    %c0_i32_80 = arith.constant 0 : i32
    %127 = tpu.memref_slice %arg2[%c2_i32, %c0_i32_79, %c0_i32_80] : memref<8x16x512xbf16, #tpu.memory_space<vmem>> -> memref<1x16x512xbf16, #tpu.memory_space<vmem>>
    %128 = tpu.memref_squeeze %127 : memref<1x16x512xbf16, #tpu.memory_space<vmem>> -> memref<16x512xbf16, #tpu.memory_space<vmem>>
    %c0_81 = arith.constant 0 : index
    %c128_82 = arith.constant 128 : index
    %129 = vector.load %128[%c0_81, %c128_82] : memref<16x512xbf16, #tpu.memory_space<vmem>>, vector<16x128xbf16>
    %130 = arith.extf %129 : vector<16x128xbf16> to vector<16x128xf32>
    %cst_83 = arith.constant dense<0.000000e+00> : vector<16x128xf32>
    %131 = tpu.matmul %115, %4, %cst_83 {dimension_numbers = #tpu.dot_dimension_numbers<[1], [0], [0], [1], [0, 0, 1, 1], [], []>} : vector<16x128xbf16>, vector<128x128xbf16>, vector<16x128xf32> -> vector<16x128xf32>
    %132 = arith.addf %130, %131 : vector<16x128xf32>
    %133 = arith.negf %132 : vector<16x128xf32>
    %134 = math.exp %133 : vector<16x128xf32>
    %cst_84 = arith.constant 1.000000e+00 : f32
    %135 = vector.broadcast %cst_84 : f32 to vector<16x128xf32>
    %136 = arith.addf %135, %134 : vector<16x128xf32>
    %137 = arith.divf %135, %136 : vector<16x128xf32>
    %c0_i32_85 = arith.constant 0 : i32
    %c0_i32_86 = arith.constant 0 : i32
    %138 = tpu.memref_slice %arg2[%c2_i32, %c0_i32_85, %c0_i32_86] : memref<8x16x512xbf16, #tpu.memory_space<vmem>> -> memref<1x16x512xbf16, #tpu.memory_space<vmem>>
    %139 = tpu.memref_squeeze %138 : memref<1x16x512xbf16, #tpu.memory_space<vmem>> -> memref<16x512xbf16, #tpu.memory_space<vmem>>
    %c0_87 = arith.constant 0 : index
    %c256_88 = arith.constant 256 : index
    %140 = vector.load %139[%c0_87, %c256_88] : memref<16x512xbf16, #tpu.memory_space<vmem>>, vector<16x128xbf16>
    %141 = arith.extf %140 : vector<16x128xbf16> to vector<16x128xf32>
    %cst_89 = arith.constant dense<0.000000e+00> : vector<16x128xf32>
    %142 = tpu.matmul %115, %5, %cst_89 {dimension_numbers = #tpu.dot_dimension_numbers<[1], [0], [0], [1], [0, 0, 1, 1], [], []>} : vector<16x128xbf16>, vector<128x128xbf16>, vector<16x128xf32> -> vector<16x128xf32>
    %143 = arith.addf %141, %142 : vector<16x128xf32>
    %144 = math.tanh %143 : vector<16x128xf32>
    %c0_i32_90 = arith.constant 0 : i32
    %c0_i32_91 = arith.constant 0 : i32
    %145 = tpu.memref_slice %arg2[%c2_i32, %c0_i32_90, %c0_i32_91] : memref<8x16x512xbf16, #tpu.memory_space<vmem>> -> memref<1x16x512xbf16, #tpu.memory_space<vmem>>
    %146 = tpu.memref_squeeze %145 : memref<1x16x512xbf16, #tpu.memory_space<vmem>> -> memref<16x512xbf16, #tpu.memory_space<vmem>>
    %c0_92 = arith.constant 0 : index
    %c384_93 = arith.constant 384 : index
    %147 = vector.load %146[%c0_92, %c384_93] : memref<16x512xbf16, #tpu.memory_space<vmem>>, vector<16x128xbf16>
    %148 = arith.extf %147 : vector<16x128xbf16> to vector<16x128xf32>
    %cst_94 = arith.constant dense<0.000000e+00> : vector<16x128xf32>
    %149 = tpu.matmul %115, %6, %cst_94 {dimension_numbers = #tpu.dot_dimension_numbers<[1], [0], [0], [1], [0, 0, 1, 1], [], []>} : vector<16x128xbf16>, vector<128x128xbf16>, vector<16x128xf32> -> vector<16x128xf32>
    %150 = arith.addf %148, %149 : vector<16x128xf32>
    %151 = arith.negf %150 : vector<16x128xf32>
    %152 = math.exp %151 : vector<16x128xf32>
    %cst_95 = arith.constant 1.000000e+00 : f32
    %153 = vector.broadcast %cst_95 : f32 to vector<16x128xf32>
    %154 = arith.addf %153, %152 : vector<16x128xf32>
    %155 = arith.divf %153, %154 : vector<16x128xf32>
    %c0_96 = arith.constant 0 : index
    %c0_97 = arith.constant 0 : index
    %156 = vector.load %arg8[%c0_96, %c0_97] : memref<16x128xf32, #tpu.memory_space<vmem>>, vector<16x128xf32>
    %157 = arith.mulf %137, %156 : vector<16x128xf32>
    %158 = arith.mulf %126, %144 : vector<16x128xf32>
    %159 = arith.addf %157, %158 : vector<16x128xf32>
    %160 = math.tanh %159 : vector<16x128xf32>
    %161 = arith.mulf %155, %160 : vector<16x128xf32>
    %162 = arith.truncf %161 : vector<16x128xf32> to vector<16x128xbf16>
    %c0_98 = arith.constant 0 : index
    %c0_99 = arith.constant 0 : index
    %163 = vector.load %arg8[%c0_98, %c0_99] : memref<16x128xf32, #tpu.memory_space<vmem>>, vector<16x128xf32>
    tpu.vector_store %arg8[%c0_98, %c0_99], %159 {strides = array<i32>} : memref<16x128xf32, #tpu.memory_space<vmem>>, vector<16x128xf32>,
    %c0_100 = arith.constant 0 : index
    %c0_101 = arith.constant 0 : index
    %164 = vector.load %arg7[%c0_100, %c0_101] : memref<16x128xbf16, #tpu.memory_space<vmem>>, vector<16x128xbf16>
    tpu.vector_store %arg7[%c0_100, %c0_101], %162 {strides = array<i32>} : memref<16x128xbf16, #tpu.memory_space<vmem>>, vector<16x128xbf16>,
    %165 = arith.index_cast %c2_i32 : i32 to index
    %c0_102 = arith.constant 0 : index
    %c0_103 = arith.constant 0 : index
    %166 = vector.load %arg6[%165, %c0_102, %c0_103] : memref<8x16x128xbf16, #tpu.memory_space<vmem>>, vector<1x16x128xbf16>
    %167 = vector.shape_cast %166 : vector<1x16x128xbf16> to vector<16x128xbf16>
    %168 = vector.shape_cast %162 : vector<16x128xbf16> to vector<1x16x128xbf16>
    tpu.vector_store %arg6[%165, %c0_102, %c0_103], %168 {strides = array<i32>} : memref<8x16x128xbf16, #tpu.memory_space<vmem>>, vector<1x16x128xbf16>,
    %c3_i32 = arith.constant 3 : i32
    %c0_104 = arith.constant 0 : index
    %c0_105 = arith.constant 0 : index
    %169 = vector.load %arg7[%c0_104, %c0_105] : memref<16x128xbf16, #tpu.memory_space<vmem>>, vector<16x128xbf16>
    %c0_i32_106 = arith.constant 0 : i32
    %c0_i32_107 = arith.constant 0 : i32
    %170 = tpu.memref_slice %arg2[%c3_i32, %c0_i32_106, %c0_i32_107] : memref<8x16x512xbf16, #tpu.memory_space<vmem>> -> memref<1x16x512xbf16, #tpu.memory_space<vmem>>
    %171 = tpu.memref_squeeze %170 : memref<1x16x512xbf16, #tpu.memory_space<vmem>> -> memref<16x512xbf16, #tpu.memory_space<vmem>>
    %c0_108 = arith.constant 0 : index
    %c0_109 = arith.constant 0 : index
    %172 = vector.load %171[%c0_108, %c0_109] : memref<16x512xbf16, #tpu.memory_space<vmem>>, vector<16x128xbf16>
    %173 = arith.extf %172 : vector<16x128xbf16> to vector<16x128xf32>
    %cst_110 = arith.constant dense<0.000000e+00> : vector<16x128xf32>
    %174 = tpu.matmul %169, %3, %cst_110 {dimension_numbers = #tpu.dot_dimension_numbers<[1], [0], [0], [1], [0, 0, 1, 1], [], []>} : vector<16x128xbf16>, vector<128x128xbf16>, vector<16x128xf32> -> vector<16x128xf32>
    %175 = arith.addf %173, %174 : vector<16x128xf32>
    %176 = arith.negf %175 : vector<16x128xf32>
    %177 = math.exp %176 : vector<16x128xf32>
    %cst_111 = arith.constant 1.000000e+00 : f32
    %178 = vector.broadcast %cst_111 : f32 to vector<16x128xf32>
    %179 = arith.addf %178, %177 : vector<16x128xf32>
    %180 = arith.divf %178, %179 : vector<16x128xf32>
    %c0_i32_112 = arith.constant 0 : i32
    %c0_i32_113 = arith.constant 0 : i32
    %181 = tpu.memref_slice %arg2[%c3_i32, %c0_i32_112, %c0_i32_113] : memref<8x16x512xbf16, #tpu.memory_space<vmem>> -> memref<1x16x512xbf16, #tpu.memory_space<vmem>>
    %182 = tpu.memref_squeeze %181 : memref<1x16x512xbf16, #tpu.memory_space<vmem>> -> memref<16x512xbf16, #tpu.memory_space<vmem>>
    %c0_114 = arith.constant 0 : index
    %c128_115 = arith.constant 128 : index
    %183 = vector.load %182[%c0_114, %c128_115] : memref<16x512xbf16, #tpu.memory_space<vmem>>, vector<16x128xbf16>
    %184 = arith.extf %183 : vector<16x128xbf16> to vector<16x128xf32>
    %cst_116 = arith.constant dense<0.000000e+00> : vector<16x128xf32>
    %185 = tpu.matmul %169, %4, %cst_116 {dimension_numbers = #tpu.dot_dimension_numbers<[1], [0], [0], [1], [0, 0, 1, 1], [], []>} : vector<16x128xbf16>, vector<128x128xbf16>, vector<16x128xf32> -> vector<16x128xf32>
    %186 = arith.addf %184, %185 : vector<16x128xf32>
    %187 = arith.negf %186 : vector<16x128xf32>
    %188 = math.exp %187 : vector<16x128xf32>
    %cst_117 = arith.constant 1.000000e+00 : f32
    %189 = vector.broadcast %cst_117 : f32 to vector<16x128xf32>
    %190 = arith.addf %189, %188 : vector<16x128xf32>
    %191 = arith.divf %189, %190 : vector<16x128xf32>
    %c0_i32_118 = arith.constant 0 : i32
    %c0_i32_119 = arith.constant 0 : i32
    %192 = tpu.memref_slice %arg2[%c3_i32, %c0_i32_118, %c0_i32_119] : memref<8x16x512xbf16, #tpu.memory_space<vmem>> -> memref<1x16x512xbf16, #tpu.memory_space<vmem>>
    %193 = tpu.memref_squeeze %192 : memref<1x16x512xbf16, #tpu.memory_space<vmem>> -> memref<16x512xbf16, #tpu.memory_space<vmem>>
    %c0_120 = arith.constant 0 : index
    %c256_121 = arith.constant 256 : index
    %194 = vector.load %193[%c0_120, %c256_121] : memref<16x512xbf16, #tpu.memory_space<vmem>>, vector<16x128xbf16>
    %195 = arith.extf %194 : vector<16x128xbf16> to vector<16x128xf32>
    %cst_122 = arith.constant dense<0.000000e+00> : vector<16x128xf32>
    %196 = tpu.matmul %169, %5, %cst_122 {dimension_numbers = #tpu.dot_dimension_numbers<[1], [0], [0], [1], [0, 0, 1, 1], [], []>} : vector<16x128xbf16>, vector<128x128xbf16>, vector<16x128xf32> -> vector<16x128xf32>
    %197 = arith.addf %195, %196 : vector<16x128xf32>
    %198 = math.tanh %197 : vector<16x128xf32>
    %c0_i32_123 = arith.constant 0 : i32
    %c0_i32_124 = arith.constant 0 : i32
    %199 = tpu.memref_slice %arg2[%c3_i32, %c0_i32_123, %c0_i32_124] : memref<8x16x512xbf16, #tpu.memory_space<vmem>> -> memref<1x16x512xbf16, #tpu.memory_space<vmem>>
    %200 = tpu.memref_squeeze %199 : memref<1x16x512xbf16, #tpu.memory_space<vmem>> -> memref<16x512xbf16, #tpu.memory_space<vmem>>
    %c0_125 = arith.constant 0 : index
    %c384_126 = arith.constant 384 : index
    %201 = vector.load %200[%c0_125, %c384_126] : memref<16x512xbf16, #tpu.memory_space<vmem>>, vector<16x128xbf16>
    %202 = arith.extf %201 : vector<16x128xbf16> to vector<16x128xf32>
    %cst_127 = arith.constant dense<0.000000e+00> : vector<16x128xf32>
    %203 = tpu.matmul %169, %6, %cst_127 {dimension_numbers = #tpu.dot_dimension_numbers<[1], [0], [0], [1], [0, 0, 1, 1], [], []>} : vector<16x128xbf16>, vector<128x128xbf16>, vector<16x128xf32> -> vector<16x128xf32>
    %204 = arith.addf %202, %203 : vector<16x128xf32>
    %205 = arith.negf %204 : vector<16x128xf32>
    %206 = math.exp %205 : vector<16x128xf32>
    %cst_128 = arith.constant 1.000000e+00 : f32
    %207 = vector.broadcast %cst_128 : f32 to vector<16x128xf32>
    %208 = arith.addf %207, %206 : vector<16x128xf32>
    %209 = arith.divf %207, %208 : vector<16x128xf32>
    %c0_129 = arith.constant 0 : index
    %c0_130 = arith.constant 0 : index
    %210 = vector.load %arg8[%c0_129, %c0_130] : memref<16x128xf32, #tpu.memory_space<vmem>>, vector<16x128xf32>
    %211 = arith.mulf %191, %210 : vector<16x128xf32>
    %212 = arith.mulf %180, %198 : vector<16x128xf32>
    %213 = arith.addf %211, %212 : vector<16x128xf32>
    %214 = math.tanh %213 : vector<16x128xf32>
    %215 = arith.mulf %209, %214 : vector<16x128xf32>
    %216 = arith.truncf %215 : vector<16x128xf32> to vector<16x128xbf16>
    %c0_131 = arith.constant 0 : index
    %c0_132 = arith.constant 0 : index
    %217 = vector.load %arg8[%c0_131, %c0_132] : memref<16x128xf32, #tpu.memory_space<vmem>>, vector<16x128xf32>
    tpu.vector_store %arg8[%c0_131, %c0_132], %213 {strides = array<i32>} : memref<16x128xf32, #tpu.memory_space<vmem>>, vector<16x128xf32>,
    %c0_133 = arith.constant 0 : index
    %c0_134 = arith.constant 0 : index
    %218 = vector.load %arg7[%c0_133, %c0_134] : memref<16x128xbf16, #tpu.memory_space<vmem>>, vector<16x128xbf16>
    tpu.vector_store %arg7[%c0_133, %c0_134], %216 {strides = array<i32>} : memref<16x128xbf16, #tpu.memory_space<vmem>>, vector<16x128xbf16>,
    %219 = arith.index_cast %c3_i32 : i32 to index
    %c0_135 = arith.constant 0 : index
    %c0_136 = arith.constant 0 : index
    %220 = vector.load %arg6[%219, %c0_135, %c0_136] : memref<8x16x128xbf16, #tpu.memory_space<vmem>>, vector<1x16x128xbf16>
    %221 = vector.shape_cast %220 : vector<1x16x128xbf16> to vector<16x128xbf16>
    %222 = vector.shape_cast %216 : vector<16x128xbf16> to vector<1x16x128xbf16>
    tpu.vector_store %arg6[%219, %c0_135, %c0_136], %222 {strides = array<i32>} : memref<8x16x128xbf16, #tpu.memory_space<vmem>>, vector<1x16x128xbf16>,
    %c4_i32 = arith.constant 4 : i32
    %c0_137 = arith.constant 0 : index
    %c0_138 = arith.constant 0 : index
    %223 = vector.load %arg7[%c0_137, %c0_138] : memref<16x128xbf16, #tpu.memory_space<vmem>>, vector<16x128xbf16>
    %c0_i32_139 = arith.constant 0 : i32
    %c0_i32_140 = arith.constant 0 : i32
    %224 = tpu.memref_slice %arg2[%c4_i32, %c0_i32_139, %c0_i32_140] : memref<8x16x512xbf16, #tpu.memory_space<vmem>> -> memref<1x16x512xbf16, #tpu.memory_space<vmem>>
    %225 = tpu.memref_squeeze %224 : memref<1x16x512xbf16, #tpu.memory_space<vmem>> -> memref<16x512xbf16, #tpu.memory_space<vmem>>
    %c0_141 = arith.constant 0 : index
    %c0_142 = arith.constant 0 : index
    %226 = vector.load %225[%c0_141, %c0_142] : memref<16x512xbf16, #tpu.memory_space<vmem>>, vector<16x128xbf16>
    %227 = arith.extf %226 : vector<16x128xbf16> to vector<16x128xf32>
    %cst_143 = arith.constant dense<0.000000e+00> : vector<16x128xf32>
    %228 = tpu.matmul %223, %3, %cst_143 {dimension_numbers = #tpu.dot_dimension_numbers<[1], [0], [0], [1], [0, 0, 1, 1], [], []>} : vector<16x128xbf16>, vector<128x128xbf16>, vector<16x128xf32> -> vector<16x128xf32>
    %229 = arith.addf %227, %228 : vector<16x128xf32>
    %230 = arith.negf %229 : vector<16x128xf32>
    %231 = math.exp %230 : vector<16x128xf32>
    %cst_144 = arith.constant 1.000000e+00 : f32
    %232 = vector.broadcast %cst_144 : f32 to vector<16x128xf32>
    %233 = arith.addf %232, %231 : vector<16x128xf32>
    %234 = arith.divf %232, %233 : vector<16x128xf32>
    %c0_i32_145 = arith.constant 0 : i32
    %c0_i32_146 = arith.constant 0 : i32
    %235 = tpu.memref_slice %arg2[%c4_i32, %c0_i32_145, %c0_i32_146] : memref<8x16x512xbf16, #tpu.memory_space<vmem>> -> memref<1x16x512xbf16, #tpu.memory_space<vmem>>
    %236 = tpu.memref_squeeze %235 : memref<1x16x512xbf16, #tpu.memory_space<vmem>> -> memref<16x512xbf16, #tpu.memory_space<vmem>>
    %c0_147 = arith.constant 0 : index
    %c128_148 = arith.constant 128 : index
    %237 = vector.load %236[%c0_147, %c128_148] : memref<16x512xbf16, #tpu.memory_space<vmem>>, vector<16x128xbf16>
    %238 = arith.extf %237 : vector<16x128xbf16> to vector<16x128xf32>
    %cst_149 = arith.constant dense<0.000000e+00> : vector<16x128xf32>
    %239 = tpu.matmul %223, %4, %cst_149 {dimension_numbers = #tpu.dot_dimension_numbers<[1], [0], [0], [1], [0, 0, 1, 1], [], []>} : vector<16x128xbf16>, vector<128x128xbf16>, vector<16x128xf32> -> vector<16x128xf32>
    %240 = arith.addf %238, %239 : vector<16x128xf32>
    %241 = arith.negf %240 : vector<16x128xf32>
    %242 = math.exp %241 : vector<16x128xf32>
    %cst_150 = arith.constant 1.000000e+00 : f32
    %243 = vector.broadcast %cst_150 : f32 to vector<16x128xf32>
    %244 = arith.addf %243, %242 : vector<16x128xf32>
    %245 = arith.divf %243, %244 : vector<16x128xf32>
    %c0_i32_151 = arith.constant 0 : i32
    %c0_i32_152 = arith.constant 0 : i32
    %246 = tpu.memref_slice %arg2[%c4_i32, %c0_i32_151, %c0_i32_152] : memref<8x16x512xbf16, #tpu.memory_space<vmem>> -> memref<1x16x512xbf16, #tpu.memory_space<vmem>>
    %247 = tpu.memref_squeeze %246 : memref<1x16x512xbf16, #tpu.memory_space<vmem>> -> memref<16x512xbf16, #tpu.memory_space<vmem>>
    %c0_153 = arith.constant 0 : index
    %c256_154 = arith.constant 256 : index
    %248 = vector.load %247[%c0_153, %c256_154] : memref<16x512xbf16, #tpu.memory_space<vmem>>, vector<16x128xbf16>
    %249 = arith.extf %248 : vector<16x128xbf16> to vector<16x128xf32>
    %cst_155 = arith.constant dense<0.000000e+00> : vector<16x128xf32>
    %250 = tpu.matmul %223, %5, %cst_155 {dimension_numbers = #tpu.dot_dimension_numbers<[1], [0], [0], [1], [0, 0, 1, 1], [], []>} : vector<16x128xbf16>, vector<128x128xbf16>, vector<16x128xf32> -> vector<16x128xf32>
    %251 = arith.addf %249, %250 : vector<16x128xf32>
    %252 = math.tanh %251 : vector<16x128xf32>
    %c0_i32_156 = arith.constant 0 : i32
    %c0_i32_157 = arith.constant 0 : i32
    %253 = tpu.memref_slice %arg2[%c4_i32, %c0_i32_156, %c0_i32_157] : memref<8x16x512xbf16, #tpu.memory_space<vmem>> -> memref<1x16x512xbf16, #tpu.memory_space<vmem>>
    %254 = tpu.memref_squeeze %253 : memref<1x16x512xbf16, #tpu.memory_space<vmem>> -> memref<16x512xbf16, #tpu.memory_space<vmem>>
    %c0_158 = arith.constant 0 : index
    %c384_159 = arith.constant 384 : index
    %255 = vector.load %254[%c0_158, %c384_159] : memref<16x512xbf16, #tpu.memory_space<vmem>>, vector<16x128xbf16>
    %256 = arith.extf %255 : vector<16x128xbf16> to vector<16x128xf32>
    %cst_160 = arith.constant dense<0.000000e+00> : vector<16x128xf32>
    %257 = tpu.matmul %223, %6, %cst_160 {dimension_numbers = #tpu.dot_dimension_numbers<[1], [0], [0], [1], [0, 0, 1, 1], [], []>} : vector<16x128xbf16>, vector<128x128xbf16>, vector<16x128xf32> -> vector<16x128xf32>
    %258 = arith.addf %256, %257 : vector<16x128xf32>
    %259 = arith.negf %258 : vector<16x128xf32>
    %260 = math.exp %259 : vector<16x128xf32>
    %cst_161 = arith.constant 1.000000e+00 : f32
    %261 = vector.broadcast %cst_161 : f32 to vector<16x128xf32>
    %262 = arith.addf %261, %260 : vector<16x128xf32>
    %263 = arith.divf %261, %262 : vector<16x128xf32>
    %c0_162 = arith.constant 0 : index
    %c0_163 = arith.constant 0 : index
    %264 = vector.load %arg8[%c0_162, %c0_163] : memref<16x128xf32, #tpu.memory_space<vmem>>, vector<16x128xf32>
    %265 = arith.mulf %245, %264 : vector<16x128xf32>
    %266 = arith.mulf %234, %252 : vector<16x128xf32>
    %267 = arith.addf %265, %266 : vector<16x128xf32>
    %268 = math.tanh %267 : vector<16x128xf32>
    %269 = arith.mulf %263, %268 : vector<16x128xf32>
    %270 = arith.truncf %269 : vector<16x128xf32> to vector<16x128xbf16>
    %c0_164 = arith.constant 0 : index
    %c0_165 = arith.constant 0 : index
    %271 = vector.load %arg8[%c0_164, %c0_165] : memref<16x128xf32, #tpu.memory_space<vmem>>, vector<16x128xf32>
    tpu.vector_store %arg8[%c0_164, %c0_165], %267 {strides = array<i32>} : memref<16x128xf32, #tpu.memory_space<vmem>>, vector<16x128xf32>,
    %c0_166 = arith.constant 0 : index
    %c0_167 = arith.constant 0 : index
    %272 = vector.load %arg7[%c0_166, %c0_167] : memref<16x128xbf16, #tpu.memory_space<vmem>>, vector<16x128xbf16>
    tpu.vector_store %arg7[%c0_166, %c0_167], %270 {strides = array<i32>} : memref<16x128xbf16, #tpu.memory_space<vmem>>, vector<16x128xbf16>,
    %273 = arith.index_cast %c4_i32 : i32 to index
    %c0_168 = arith.constant 0 : index
    %c0_169 = arith.constant 0 : index
    %274 = vector.load %arg6[%273, %c0_168, %c0_169] : memref<8x16x128xbf16, #tpu.memory_space<vmem>>, vector<1x16x128xbf16>
    %275 = vector.shape_cast %274 : vector<1x16x128xbf16> to vector<16x128xbf16>
    %276 = vector.shape_cast %270 : vector<16x128xbf16> to vector<1x16x128xbf16>
    tpu.vector_store %arg6[%273, %c0_168, %c0_169], %276 {strides = array<i32>} : memref<8x16x128xbf16, #tpu.memory_space<vmem>>, vector<1x16x128xbf16>,
    %c5_i32 = arith.constant 5 : i32
    %c0_170 = arith.constant 0 : index
    %c0_171 = arith.constant 0 : index
    %277 = vector.load %arg7[%c0_170, %c0_171] : memref<16x128xbf16, #tpu.memory_space<vmem>>, vector<16x128xbf16>
    %c0_i32_172 = arith.constant 0 : i32
    %c0_i32_173 = arith.constant 0 : i32
    %278 = tpu.memref_slice %arg2[%c5_i32, %c0_i32_172, %c0_i32_173] : memref<8x16x512xbf16, #tpu.memory_space<vmem>> -> memref<1x16x512xbf16, #tpu.memory_space<vmem>>
    %279 = tpu.memref_squeeze %278 : memref<1x16x512xbf16, #tpu.memory_space<vmem>> -> memref<16x512xbf16, #tpu.memory_space<vmem>>
    %c0_174 = arith.constant 0 : index
    %c0_175 = arith.constant 0 : index
    %280 = vector.load %279[%c0_174, %c0_175] : memref<16x512xbf16, #tpu.memory_space<vmem>>, vector<16x128xbf16>
    %281 = arith.extf %280 : vector<16x128xbf16> to vector<16x128xf32>
    %cst_176 = arith.constant dense<0.000000e+00> : vector<16x128xf32>
    %282 = tpu.matmul %277, %3, %cst_176 {dimension_numbers = #tpu.dot_dimension_numbers<[1], [0], [0], [1], [0, 0, 1, 1], [], []>} : vector<16x128xbf16>, vector<128x128xbf16>, vector<16x128xf32> -> vector<16x128xf32>
    %283 = arith.addf %281, %282 : vector<16x128xf32>
    %284 = arith.negf %283 : vector<16x128xf32>
    %285 = math.exp %284 : vector<16x128xf32>
    %cst_177 = arith.constant 1.000000e+00 : f32
    %286 = vector.broadcast %cst_177 : f32 to vector<16x128xf32>
    %287 = arith.addf %286, %285 : vector<16x128xf32>
    %288 = arith.divf %286, %287 : vector<16x128xf32>
    %c0_i32_178 = arith.constant 0 : i32
    %c0_i32_179 = arith.constant 0 : i32
    %289 = tpu.memref_slice %arg2[%c5_i32, %c0_i32_178, %c0_i32_179] : memref<8x16x512xbf16, #tpu.memory_space<vmem>> -> memref<1x16x512xbf16, #tpu.memory_space<vmem>>
    %290 = tpu.memref_squeeze %289 : memref<1x16x512xbf16, #tpu.memory_space<vmem>> -> memref<16x512xbf16, #tpu.memory_space<vmem>>
    %c0_180 = arith.constant 0 : index
    %c128_181 = arith.constant 128 : index
    %291 = vector.load %290[%c0_180, %c128_181] : memref<16x512xbf16, #tpu.memory_space<vmem>>, vector<16x128xbf16>
    %292 = arith.extf %291 : vector<16x128xbf16> to vector<16x128xf32>
    %cst_182 = arith.constant dense<0.000000e+00> : vector<16x128xf32>
    %293 = tpu.matmul %277, %4, %cst_182 {dimension_numbers = #tpu.dot_dimension_numbers<[1], [0], [0], [1], [0, 0, 1, 1], [], []>} : vector<16x128xbf16>, vector<128x128xbf16>, vector<16x128xf32> -> vector<16x128xf32>
    %294 = arith.addf %292, %293 : vector<16x128xf32>
    %295 = arith.negf %294 : vector<16x128xf32>
    %296 = math.exp %295 : vector<16x128xf32>
    %cst_183 = arith.constant 1.000000e+00 : f32
    %297 = vector.broadcast %cst_183 : f32 to vector<16x128xf32>
    %298 = arith.addf %297, %296 : vector<16x128xf32>
    %299 = arith.divf %297, %298 : vector<16x128xf32>
    %c0_i32_184 = arith.constant 0 : i32
    %c0_i32_185 = arith.constant 0 : i32
    %300 = tpu.memref_slice %arg2[%c5_i32, %c0_i32_184, %c0_i32_185] : memref<8x16x512xbf16, #tpu.memory_space<vmem>> -> memref<1x16x512xbf16, #tpu.memory_space<vmem>>
    %301 = tpu.memref_squeeze %300 : memref<1x16x512xbf16, #tpu.memory_space<vmem>> -> memref<16x512xbf16, #tpu.memory_space<vmem>>
    %c0_186 = arith.constant 0 : index
    %c256_187 = arith.constant 256 : index
    %302 = vector.load %301[%c0_186, %c256_187] : memref<16x512xbf16, #tpu.memory_space<vmem>>, vector<16x128xbf16>
    %303 = arith.extf %302 : vector<16x128xbf16> to vector<16x128xf32>
    %cst_188 = arith.constant dense<0.000000e+00> : vector<16x128xf32>
    %304 = tpu.matmul %277, %5, %cst_188 {dimension_numbers = #tpu.dot_dimension_numbers<[1], [0], [0], [1], [0, 0, 1, 1], [], []>} : vector<16x128xbf16>, vector<128x128xbf16>, vector<16x128xf32> -> vector<16x128xf32>
    %305 = arith.addf %303, %304 : vector<16x128xf32>
    %306 = math.tanh %305 : vector<16x128xf32>
    %c0_i32_189 = arith.constant 0 : i32
    %c0_i32_190 = arith.constant 0 : i32
    %307 = tpu.memref_slice %arg2[%c5_i32, %c0_i32_189, %c0_i32_190] : memref<8x16x512xbf16, #tpu.memory_space<vmem>> -> memref<1x16x512xbf16, #tpu.memory_space<vmem>>
    %308 = tpu.memref_squeeze %307 : memref<1x16x512xbf16, #tpu.memory_space<vmem>> -> memref<16x512xbf16, #tpu.memory_space<vmem>>
    %c0_191 = arith.constant 0 : index
    %c384_192 = arith.constant 384 : index
    %309 = vector.load %308[%c0_191, %c384_192] : memref<16x512xbf16, #tpu.memory_space<vmem>>, vector<16x128xbf16>
    %310 = arith.extf %309 : vector<16x128xbf16> to vector<16x128xf32>
    %cst_193 = arith.constant dense<0.000000e+00> : vector<16x128xf32>
    %311 = tpu.matmul %277, %6, %cst_193 {dimension_numbers = #tpu.dot_dimension_numbers<[1], [0], [0], [1], [0, 0, 1, 1], [], []>} : vector<16x128xbf16>, vector<128x128xbf16>, vector<16x128xf32> -> vector<16x128xf32>
    %312 = arith.addf %310, %311 : vector<16x128xf32>
    %313 = arith.negf %312 : vector<16x128xf32>
    %314 = math.exp %313 : vector<16x128xf32>
    %cst_194 = arith.constant 1.000000e+00 : f32
    %315 = vector.broadcast %cst_194 : f32 to vector<16x128xf32>
    %316 = arith.addf %315, %314 : vector<16x128xf32>
    %317 = arith.divf %315, %316 : vector<16x128xf32>
    %c0_195 = arith.constant 0 : index
    %c0_196 = arith.constant 0 : index
    %318 = vector.load %arg8[%c0_195, %c0_196] : memref<16x128xf32, #tpu.memory_space<vmem>>, vector<16x128xf32>
    %319 = arith.mulf %299, %318 : vector<16x128xf32>
    %320 = arith.mulf %288, %306 : vector<16x128xf32>
    %321 = arith.addf %319, %320 : vector<16x128xf32>
    %322 = math.tanh %321 : vector<16x128xf32>
    %323 = arith.mulf %317, %322 : vector<16x128xf32>
    %324 = arith.truncf %323 : vector<16x128xf32> to vector<16x128xbf16>
    %c0_197 = arith.constant 0 : index
    %c0_198 = arith.constant 0 : index
    %325 = vector.load %arg8[%c0_197, %c0_198] : memref<16x128xf32, #tpu.memory_space<vmem>>, vector<16x128xf32>
    tpu.vector_store %arg8[%c0_197, %c0_198], %321 {strides = array<i32>} : memref<16x128xf32, #tpu.memory_space<vmem>>, vector<16x128xf32>,
    %c0_199 = arith.constant 0 : index
    %c0_200 = arith.constant 0 : index
    %326 = vector.load %arg7[%c0_199, %c0_200] : memref<16x128xbf16, #tpu.memory_space<vmem>>, vector<16x128xbf16>
    tpu.vector_store %arg7[%c0_199, %c0_200], %324 {strides = array<i32>} : memref<16x128xbf16, #tpu.memory_space<vmem>>, vector<16x128xbf16>,
    %327 = arith.index_cast %c5_i32 : i32 to index
    %c0_201 = arith.constant 0 : index
    %c0_202 = arith.constant 0 : index
    %328 = vector.load %arg6[%327, %c0_201, %c0_202] : memref<8x16x128xbf16, #tpu.memory_space<vmem>>, vector<1x16x128xbf16>
    %329 = vector.shape_cast %328 : vector<1x16x128xbf16> to vector<16x128xbf16>
    %330 = vector.shape_cast %324 : vector<16x128xbf16> to vector<1x16x128xbf16>
    tpu.vector_store %arg6[%327, %c0_201, %c0_202], %330 {strides = array<i32>} : memref<8x16x128xbf16, #tpu.memory_space<vmem>>, vector<1x16x128xbf16>,
    %c6_i32 = arith.constant 6 : i32
    %c0_203 = arith.constant 0 : index
    %c0_204 = arith.constant 0 : index
    %331 = vector.load %arg7[%c0_203, %c0_204] : memref<16x128xbf16, #tpu.memory_space<vmem>>, vector<16x128xbf16>
    %c0_i32_205 = arith.constant 0 : i32
    %c0_i32_206 = arith.constant 0 : i32
    %332 = tpu.memref_slice %arg2[%c6_i32, %c0_i32_205, %c0_i32_206] : memref<8x16x512xbf16, #tpu.memory_space<vmem>> -> memref<1x16x512xbf16, #tpu.memory_space<vmem>>
    %333 = tpu.memref_squeeze %332 : memref<1x16x512xbf16, #tpu.memory_space<vmem>> -> memref<16x512xbf16, #tpu.memory_space<vmem>>
    %c0_207 = arith.constant 0 : index
    %c0_208 = arith.constant 0 : index
    %334 = vector.load %333[%c0_207, %c0_208] : memref<16x512xbf16, #tpu.memory_space<vmem>>, vector<16x128xbf16>
    %335 = arith.extf %334 : vector<16x128xbf16> to vector<16x128xf32>
    %cst_209 = arith.constant dense<0.000000e+00> : vector<16x128xf32>
    %336 = tpu.matmul %331, %3, %cst_209 {dimension_numbers = #tpu.dot_dimension_numbers<[1], [0], [0], [1], [0, 0, 1, 1], [], []>} : vector<16x128xbf16>, vector<128x128xbf16>, vector<16x128xf32> -> vector<16x128xf32>
    %337 = arith.addf %335, %336 : vector<16x128xf32>
    %338 = arith.negf %337 : vector<16x128xf32>
    %339 = math.exp %338 : vector<16x128xf32>
    %cst_210 = arith.constant 1.000000e+00 : f32
    %340 = vector.broadcast %cst_210 : f32 to vector<16x128xf32>
    %341 = arith.addf %340, %339 : vector<16x128xf32>
    %342 = arith.divf %340, %341 : vector<16x128xf32>
    %c0_i32_211 = arith.constant 0 : i32
    %c0_i32_212 = arith.constant 0 : i32
    %343 = tpu.memref_slice %arg2[%c6_i32, %c0_i32_211, %c0_i32_212] : memref<8x16x512xbf16, #tpu.memory_space<vmem>> -> memref<1x16x512xbf16, #tpu.memory_space<vmem>>
    %344 = tpu.memref_squeeze %343 : memref<1x16x512xbf16, #tpu.memory_space<vmem>> -> memref<16x512xbf16, #tpu.memory_space<vmem>>
    %c0_213 = arith.constant 0 : index
    %c128_214 = arith.constant 128 : index
    %345 = vector.load %344[%c0_213, %c128_214] : memref<16x512xbf16, #tpu.memory_space<vmem>>, vector<16x128xbf16>
    %346 = arith.extf %345 : vector<16x128xbf16> to vector<16x128xf32>
    %cst_215 = arith.constant dense<0.000000e+00> : vector<16x128xf32>
    %347 = tpu.matmul %331, %4, %cst_215 {dimension_numbers = #tpu.dot_dimension_numbers<[1], [0], [0], [1], [0, 0, 1, 1], [], []>} : vector<16x128xbf16>, vector<128x128xbf16>, vector<16x128xf32> -> vector<16x128xf32>
    %348 = arith.addf %346, %347 : vector<16x128xf32>
    %349 = arith.negf %348 : vector<16x128xf32>
    %350 = math.exp %349 : vector<16x128xf32>
    %cst_216 = arith.constant 1.000000e+00 : f32
    %351 = vector.broadcast %cst_216 : f32 to vector<16x128xf32>
    %352 = arith.addf %351, %350 : vector<16x128xf32>
    %353 = arith.divf %351, %352 : vector<16x128xf32>
    %c0_i32_217 = arith.constant 0 : i32
    %c0_i32_218 = arith.constant 0 : i32
    %354 = tpu.memref_slice %arg2[%c6_i32, %c0_i32_217, %c0_i32_218] : memref<8x16x512xbf16, #tpu.memory_space<vmem>> -> memref<1x16x512xbf16, #tpu.memory_space<vmem>>
    %355 = tpu.memref_squeeze %354 : memref<1x16x512xbf16, #tpu.memory_space<vmem>> -> memref<16x512xbf16, #tpu.memory_space<vmem>>
    %c0_219 = arith.constant 0 : index
    %c256_220 = arith.constant 256 : index
    %356 = vector.load %355[%c0_219, %c256_220] : memref<16x512xbf16, #tpu.memory_space<vmem>>, vector<16x128xbf16>
    %357 = arith.extf %356 : vector<16x128xbf16> to vector<16x128xf32>
    %cst_221 = arith.constant dense<0.000000e+00> : vector<16x128xf32>
    %358 = tpu.matmul %331, %5, %cst_221 {dimension_numbers = #tpu.dot_dimension_numbers<[1], [0], [0], [1], [0, 0, 1, 1], [], []>} : vector<16x128xbf16>, vector<128x128xbf16>, vector<16x128xf32> -> vector<16x128xf32>
    %359 = arith.addf %357, %358 : vector<16x128xf32>
    %360 = math.tanh %359 : vector<16x128xf32>
    %c0_i32_222 = arith.constant 0 : i32
    %c0_i32_223 = arith.constant 0 : i32
    %361 = tpu.memref_slice %arg2[%c6_i32, %c0_i32_222, %c0_i32_223] : memref<8x16x512xbf16, #tpu.memory_space<vmem>> -> memref<1x16x512xbf16, #tpu.memory_space<vmem>>
    %362 = tpu.memref_squeeze %361 : memref<1x16x512xbf16, #tpu.memory_space<vmem>> -> memref<16x512xbf16, #tpu.memory_space<vmem>>
    %c0_224 = arith.constant 0 : index
    %c384_225 = arith.constant 384 : index
    %363 = vector.load %362[%c0_224, %c384_225] : memref<16x512xbf16, #tpu.memory_space<vmem>>, vector<16x128xbf16>
    %364 = arith.extf %363 : vector<16x128xbf16> to vector<16x128xf32>
    %cst_226 = arith.constant dense<0.000000e+00> : vector<16x128xf32>
    %365 = tpu.matmul %331, %6, %cst_226 {dimension_numbers = #tpu.dot_dimension_numbers<[1], [0], [0], [1], [0, 0, 1, 1], [], []>} : vector<16x128xbf16>, vector<128x128xbf16>, vector<16x128xf32> -> vector<16x128xf32>
    %366 = arith.addf %364, %365 : vector<16x128xf32>
    %367 = arith.negf %366 : vector<16x128xf32>
    %368 = math.exp %367 : vector<16x128xf32>
    %cst_227 = arith.constant 1.000000e+00 : f32
    %369 = vector.broadcast %cst_227 : f32 to vector<16x128xf32>
    %370 = arith.addf %369, %368 : vector<16x128xf32>
    %371 = arith.divf %369, %370 : vector<16x128xf32>
    %c0_228 = arith.constant 0 : index
    %c0_229 = arith.constant 0 : index
    %372 = vector.load %arg8[%c0_228, %c0_229] : memref<16x128xf32, #tpu.memory_space<vmem>>, vector<16x128xf32>
    %373 = arith.mulf %353, %372 : vector<16x128xf32>
    %374 = arith.mulf %342, %360 : vector<16x128xf32>
    %375 = arith.addf %373, %374 : vector<16x128xf32>
    %376 = math.tanh %375 : vector<16x128xf32>
    %377 = arith.mulf %371, %376 : vector<16x128xf32>
    %378 = arith.truncf %377 : vector<16x128xf32> to vector<16x128xbf16>
    %c0_230 = arith.constant 0 : index
    %c0_231 = arith.constant 0 : index
    %379 = vector.load %arg8[%c0_230, %c0_231] : memref<16x128xf32, #tpu.memory_space<vmem>>, vector<16x128xf32>
    tpu.vector_store %arg8[%c0_230, %c0_231], %375 {strides = array<i32>} : memref<16x128xf32, #tpu.memory_space<vmem>>, vector<16x128xf32>,
    %c0_232 = arith.constant 0 : index
    %c0_233 = arith.constant 0 : index
    %380 = vector.load %arg7[%c0_232, %c0_233] : memref<16x128xbf16, #tpu.memory_space<vmem>>, vector<16x128xbf16>
    tpu.vector_store %arg7[%c0_232, %c0_233], %378 {strides = array<i32>} : memref<16x128xbf16, #tpu.memory_space<vmem>>, vector<16x128xbf16>,
    %381 = arith.index_cast %c6_i32 : i32 to index
    %c0_234 = arith.constant 0 : index
    %c0_235 = arith.constant 0 : index
    %382 = vector.load %arg6[%381, %c0_234, %c0_235] : memref<8x16x128xbf16, #tpu.memory_space<vmem>>, vector<1x16x128xbf16>
    %383 = vector.shape_cast %382 : vector<1x16x128xbf16> to vector<16x128xbf16>
    %384 = vector.shape_cast %378 : vector<16x128xbf16> to vector<1x16x128xbf16>
    tpu.vector_store %arg6[%381, %c0_234, %c0_235], %384 {strides = array<i32>} : memref<8x16x128xbf16, #tpu.memory_space<vmem>>, vector<1x16x128xbf16>,
    %c7_i32 = arith.constant 7 : i32
    %c0_236 = arith.constant 0 : index
    %c0_237 = arith.constant 0 : index
    %385 = vector.load %arg7[%c0_236, %c0_237] : memref<16x128xbf16, #tpu.memory_space<vmem>>, vector<16x128xbf16>
    %c0_i32_238 = arith.constant 0 : i32
    %c0_i32_239 = arith.constant 0 : i32
    %386 = tpu.memref_slice %arg2[%c7_i32, %c0_i32_238, %c0_i32_239] : memref<8x16x512xbf16, #tpu.memory_space<vmem>> -> memref<1x16x512xbf16, #tpu.memory_space<vmem>>
    %387 = tpu.memref_squeeze %386 : memref<1x16x512xbf16, #tpu.memory_space<vmem>> -> memref<16x512xbf16, #tpu.memory_space<vmem>>
    %c0_240 = arith.constant 0 : index
    %c0_241 = arith.constant 0 : index
    %388 = vector.load %387[%c0_240, %c0_241] : memref<16x512xbf16, #tpu.memory_space<vmem>>, vector<16x128xbf16>
    %389 = arith.extf %388 : vector<16x128xbf16> to vector<16x128xf32>
    %cst_242 = arith.constant dense<0.000000e+00> : vector<16x128xf32>
    %390 = tpu.matmul %385, %3, %cst_242 {dimension_numbers = #tpu.dot_dimension_numbers<[1], [0], [0], [1], [0, 0, 1, 1], [], []>} : vector<16x128xbf16>, vector<128x128xbf16>, vector<16x128xf32> -> vector<16x128xf32>
    %391 = arith.addf %389, %390 : vector<16x128xf32>
    %392 = arith.negf %391 : vector<16x128xf32>
    %393 = math.exp %392 : vector<16x128xf32>
    %cst_243 = arith.constant 1.000000e+00 : f32
    %394 = vector.broadcast %cst_243 : f32 to vector<16x128xf32>
    %395 = arith.addf %394, %393 : vector<16x128xf32>
    %396 = arith.divf %394, %395 : vector<16x128xf32>
    %c0_i32_244 = arith.constant 0 : i32
    %c0_i32_245 = arith.constant 0 : i32
    %397 = tpu.memref_slice %arg2[%c7_i32, %c0_i32_244, %c0_i32_245] : memref<8x16x512xbf16, #tpu.memory_space<vmem>> -> memref<1x16x512xbf16, #tpu.memory_space<vmem>>
    %398 = tpu.memref_squeeze %397 : memref<1x16x512xbf16, #tpu.memory_space<vmem>> -> memref<16x512xbf16, #tpu.memory_space<vmem>>
    %c0_246 = arith.constant 0 : index
    %c128_247 = arith.constant 128 : index
    %399 = vector.load %398[%c0_246, %c128_247] : memref<16x512xbf16, #tpu.memory_space<vmem>>, vector<16x128xbf16>
    %400 = arith.extf %399 : vector<16x128xbf16> to vector<16x128xf32>
    %cst_248 = arith.constant dense<0.000000e+00> : vector<16x128xf32>
    %401 = tpu.matmul %385, %4, %cst_248 {dimension_numbers = #tpu.dot_dimension_numbers<[1], [0], [0], [1], [0, 0, 1, 1], [], []>} : vector<16x128xbf16>, vector<128x128xbf16>, vector<16x128xf32> -> vector<16x128xf32>
    %402 = arith.addf %400, %401 : vector<16x128xf32>
    %403 = arith.negf %402 : vector<16x128xf32>
    %404 = math.exp %403 : vector<16x128xf32>
    %cst_249 = arith.constant 1.000000e+00 : f32
    %405 = vector.broadcast %cst_249 : f32 to vector<16x128xf32>
    %406 = arith.addf %405, %404 : vector<16x128xf32>
    %407 = arith.divf %405, %406 : vector<16x128xf32>
    %c0_i32_250 = arith.constant 0 : i32
    %c0_i32_251 = arith.constant 0 : i32
    %408 = tpu.memref_slice %arg2[%c7_i32, %c0_i32_250, %c0_i32_251] : memref<8x16x512xbf16, #tpu.memory_space<vmem>> -> memref<1x16x512xbf16, #tpu.memory_space<vmem>>
    %409 = tpu.memref_squeeze %408 : memref<1x16x512xbf16, #tpu.memory_space<vmem>> -> memref<16x512xbf16, #tpu.memory_space<vmem>>
    %c0_252 = arith.constant 0 : index
    %c256_253 = arith.constant 256 : index
    %410 = vector.load %409[%c0_252, %c256_253] : memref<16x512xbf16, #tpu.memory_space<vmem>>, vector<16x128xbf16>
    %411 = arith.extf %410 : vector<16x128xbf16> to vector<16x128xf32>
    %cst_254 = arith.constant dense<0.000000e+00> : vector<16x128xf32>
    %412 = tpu.matmul %385, %5, %cst_254 {dimension_numbers = #tpu.dot_dimension_numbers<[1], [0], [0], [1], [0, 0, 1, 1], [], []>} : vector<16x128xbf16>, vector<128x128xbf16>, vector<16x128xf32> -> vector<16x128xf32>
    %413 = arith.addf %411, %412 : vector<16x128xf32>
    %414 = math.tanh %413 : vector<16x128xf32>
    %c0_i32_255 = arith.constant 0 : i32
    %c0_i32_256 = arith.constant 0 : i32
    %415 = tpu.memref_slice %arg2[%c7_i32, %c0_i32_255, %c0_i32_256] : memref<8x16x512xbf16, #tpu.memory_space<vmem>> -> memref<1x16x512xbf16, #tpu.memory_space<vmem>>
    %416 = tpu.memref_squeeze %415 : memref<1x16x512xbf16, #tpu.memory_space<vmem>> -> memref<16x512xbf16, #tpu.memory_space<vmem>>
    %c0_257 = arith.constant 0 : index
    %c384_258 = arith.constant 384 : index
    %417 = vector.load %416[%c0_257, %c384_258] : memref<16x512xbf16, #tpu.memory_space<vmem>>, vector<16x128xbf16>
    %418 = arith.extf %417 : vector<16x128xbf16> to vector<16x128xf32>
    %cst_259 = arith.constant dense<0.000000e+00> : vector<16x128xf32>
    %419 = tpu.matmul %385, %6, %cst_259 {dimension_numbers = #tpu.dot_dimension_numbers<[1], [0], [0], [1], [0, 0, 1, 1], [], []>} : vector<16x128xbf16>, vector<128x128xbf16>, vector<16x128xf32> -> vector<16x128xf32>
    %420 = arith.addf %418, %419 : vector<16x128xf32>
    %421 = arith.negf %420 : vector<16x128xf32>
    %422 = math.exp %421 : vector<16x128xf32>
    %cst_260 = arith.constant 1.000000e+00 : f32
    %423 = vector.broadcast %cst_260 : f32 to vector<16x128xf32>
    %424 = arith.addf %423, %422 : vector<16x128xf32>
    %425 = arith.divf %423, %424 : vector<16x128xf32>
    %c0_261 = arith.constant 0 : index
    %c0_262 = arith.constant 0 : index
    %426 = vector.load %arg8[%c0_261, %c0_262] : memref<16x128xf32, #tpu.memory_space<vmem>>, vector<16x128xf32>
    %427 = arith.mulf %407, %426 : vector<16x128xf32>
    %428 = arith.mulf %396, %414 : vector<16x128xf32>
    %429 = arith.addf %427, %428 : vector<16x128xf32>
    %430 = math.tanh %429 : vector<16x128xf32>
    %431 = arith.mulf %425, %430 : vector<16x128xf32>
    %432 = arith.truncf %431 : vector<16x128xf32> to vector<16x128xbf16>
    %c0_263 = arith.constant 0 : index
    %c0_264 = arith.constant 0 : index
    %433 = vector.load %arg8[%c0_263, %c0_264] : memref<16x128xf32, #tpu.memory_space<vmem>>, vector<16x128xf32>
    tpu.vector_store %arg8[%c0_263, %c0_264], %429 {strides = array<i32>} : memref<16x128xf32, #tpu.memory_space<vmem>>, vector<16x128xf32>,
    %c0_265 = arith.constant 0 : index
    %c0_266 = arith.constant 0 : index
    %434 = vector.load %arg7[%c0_265, %c0_266] : memref<16x128xbf16, #tpu.memory_space<vmem>>, vector<16x128xbf16>
    tpu.vector_store %arg7[%c0_265, %c0_266], %432 {strides = array<i32>} : memref<16x128xbf16, #tpu.memory_space<vmem>>, vector<16x128xbf16>,
    %435 = arith.index_cast %c7_i32 : i32 to index
    %c0_267 = arith.constant 0 : index
    %c0_268 = arith.constant 0 : index
    %436 = vector.load %arg6[%435, %c0_267, %c0_268] : memref<8x16x128xbf16, #tpu.memory_space<vmem>>, vector<1x16x128xbf16>
    %437 = vector.shape_cast %436 : vector<1x16x128xbf16> to vector<16x128xbf16>
    %438 = vector.shape_cast %432 : vector<16x128xbf16> to vector<1x16x128xbf16>
    tpu.vector_store %arg6[%435, %c0_267, %c0_268], %438 {strides = array<i32>} : memref<8x16x128xbf16, #tpu.memory_space<vmem>>, vector<1x16x128xbf16>,
    %c8_i32 = arith.constant 8 : i32
    return
  }
  func.func @transform_0(%arg0: i32, %arg1: i32) -> (i32, i32, i32) {
    %c0_i32 = arith.constant 0 : i32
    %c0_i32_0 = arith.constant 0 : i32
    return %arg1, %arg0, %c0_i32 : i32, i32, i32
  }
  func.func @transform_1(%arg0: i32, %arg1: i32) -> (i32, i32) {
    %c0_i32 = arith.constant 0 : i32
    %c0_i32_0 = arith.constant 0 : i32
    %c0_i32_1 = arith.constant 0 : i32
    return %c0_i32, %c0_i32_0 : i32, i32
  }
  func.func @transform_2(%arg0: i32, %arg1: i32) -> (i32, i32) {
    %c0_i32 = arith.constant 0 : i32
    %c0_i32_0 = arith.constant 0 : i32
    return %arg0, %c0_i32 : i32, i32
  }
  func.func @transform_3(%arg0: i32, %arg1: i32) -> (i32, i32) {
    %c0_i32 = arith.constant 0 : i32
    %c0_i32_0 = arith.constant 0 : i32
    return %arg0, %c0_i32 : i32, i32
  }
  func.func @transform_4(%arg0: i32, %arg1: i32) -> (i32, i32, i32) {
    %c0_i32 = arith.constant 0 : i32
    %c0_i32_0 = arith.constant 0 : i32
    return %arg1, %arg0, %c0_i32 : i32, i32, i32
  }
}

</mosaic_0001>

<llo_original>
// kernel: class_lstm_forward.2
$region0: #{class_lstm_forward.2}
  #allocation0 [shape = 'u32[]', space=smem, size = 0x4, offset = 0x4, fixed_abs, tag = 'smem constant byte address 0x4 - core index']
  #allocation1 [shape = 'u32[72,128]{1,0:T(1,128)}', space=vmem, size = 0x9000, scoped, tag = 'internal scratch']
  #allocation2 [shape = 'bf16[16,128]{1,0:T(8,128)(2,1)}', space=vmem, size = 0x1000, scoped, tag = 'scratch operand']
  #allocation3 [shape = 'f32[16,128]{1,0:T(8,128)}', space=vmem, size = 0x2000, scoped, tag = 'scratch operand']
  %s0 = inlined_call_operand.vmem [shape: bf16[8,16,512], index: 0, kind: input, shape index: {}]
  %s1 = inlined_call_operand.vmem [shape: bf16[128,512], index: 1, kind: input, shape index: {}]
  %s2 = inlined_call_operand.vmem [shape: f32[16,128], index: 2, kind: input, shape index: {}]
  %s3 = inlined_call_operand.vmem [shape: f32[16,128], index: 3, kind: input, shape index: {}]
  %s4 = inlined_call_operand.vmem [shape: bf16[8,16,128], index: 4, kind: output, shape index: {}]
  %s5 = sld [smem:[#allocation0]]
  $region30: #{class_lstm_forward.2} parent=0
    _
  %s7 = ssub.s32 1, %s5
  %s8 = scalar_select 0, %s7, %s5
  // Predicated region
  $region2: #{class_lstm_forward.2} parent=0 // pred_check
    _
  $region3: #{class_lstm_forward.2} parent=0 // pred_check_branch
    %10 = sbr.rel (0) target = $region5
  $region4: #{class_lstm_forward.2} parent=0 // pred_region
    _
  $region5: #{class_lstm_forward.2} parent=0 // pred_fallthru
    _
  // Predicated region
  $region6: #{class_lstm_forward.2} parent=0 // pred_check
    _
  $region7: #{class_lstm_forward.2} parent=0 // pred_check_branch
    %12 = sbr.rel (0) target = $region9
  $region8: #{class_lstm_forward.2} parent=0 // pred_region
    _
  $region9: #{class_lstm_forward.2} parent=0 // pred_fallthru
    _
  // Predicated region
  $region10: #{class_lstm_forward.2} parent=0 // pred_check
    _
  $region11: #{class_lstm_forward.2} parent=0 // pred_check_branch
    %14 = sbr.rel (0) target = $region13
  $region12: #{class_lstm_forward.2} parent=0 // pred_region
    _
  $region13: #{class_lstm_forward.2} parent=0 // pred_fallthru
    _
  // Predicated region
  $region14: #{class_lstm_forward.2} parent=0 // pred_check
    _
  $region15: #{class_lstm_forward.2} parent=0 // pred_check_branch
    %16 = sbr.rel (0) target = $region17
  $region16: #{class_lstm_forward.2} parent=0 // pred_region
    _
  $region17: #{class_lstm_forward.2} parent=0 // pred_fallthru
    _
  %p17 = scmp.eq.s32.totalorder 0, 0
  // Predicated region
  $region18: #{class_lstm_forward.2} parent=0 // pred_check
    %p18 = pneg %p17
  $region19: #{class_lstm_forward.2} parent=0 // pred_check_branch
    %20 = sbr.rel (%p18) target = $region21
  $region20: #{class_lstm_forward.2} parent=0 // pred_region
    %v21 = vld [vmem:[%s2] sm:$0xff]
    %v22 = vld [vmem:[%s2 + $0x8] sm:$0xff]
    %v23 = vpack.c.bf16 %v21, %v21
    %v24 = vpack.c.bf16 %v22, %v22
    %25 = vst [vmem:[#allocation2] sm:$0xf] %v23
    %26 = vst [vmem:[#allocation2 + $0x4] sm:$0xf] %v24
    %v27 = vld [vmem:[%s3] sm:$0xff]
    %v28 = vld [vmem:[%s3 + $0x8] sm:$0xff]
    %29 = vst [vmem:[#allocation3] sm:$0xff] %v27
    %30 = vst [vmem:[#allocation3 + $0x8] sm:$0xff] %v28
  $region21: #{class_lstm_forward.2} parent=0 // pred_fallthru
    _
  %v31 = vld [vmem:[%s1] sm:$0xf]
  %v32 = vld [vmem:[%s1 + $0x10] sm:$0xf]
  %v33 = vld [vmem:[%s1 + $0x20] sm:$0xf]
  %v34 = vld [vmem:[%s1 + $0x30] sm:$0xf]
  %v35 = vld [vmem:[%s1 + $0x40] sm:$0xf]
  %v36 = vld [vmem:[%s1 + $0x50] sm:$0xf]
  %v37 = vld [vmem:[%s1 + $0x60] sm:$0xf]
  %v38 = vld [vmem:[%s1 + $0x70] sm:$0xf]
  %v39 = vld [vmem:[%s1 + $0x80] sm:$0xf]
  %v40 = vld [vmem:[%s1 + $0x90] sm:$0xf]
  %v41 = vld [vmem:[%s1 + $0xa0] sm:$0xf]
  %v42 = vld [vmem:[%s1 + $0xb0] sm:$0xf]
  %v43 = vld [vmem:[%s1 + $0xc0] sm:$0xf]
  %v44 = vld [vmem:[%s1 + $0xd0] sm:$0xf]
  %v45 = vld [vmem:[%s1 + $0xe0] sm:$0xf]
  %v46 = vld [vmem:[%s1 + $0xf0] sm:$0xf]
  %v47 = vld [vmem:[%s1 + $0x4] sm:$0xf]
  %v48 = vld [vmem:[%s1 + $0x14] sm:$0xf]
  %v49 = vld [vmem:[%s1 + $0x24] sm:$0xf]
  %v50 = vld [vmem:[%s1 + $0x34] sm:$0xf]
  %v51 = vld [vmem:[%s1 + $0x44] sm:$0xf]
  %v52 = vld [vmem:[%s1 + $0x54] sm:$0xf]
  %v53 = vld [vmem:[%s1 + $0x64] sm:$0xf]
  %v54 = vld [vmem:[%s1 + $0x74] sm:$0xf]
  %v55 = vld [vmem:[%s1 + $0x84] sm:$0xf]
  %v56 = vld [vmem:[%s1 + $0x94] sm:$0xf]
  %v57 = vld [vmem:[%s1 + $0xa4] sm:$0xf]
  %v58 = vld [vmem:[%s1 + $0xb4] sm:$0xf]
  %v59 = vld [vmem:[%s1 + $0xc4] sm:$0xf]
  %v60 = vld [vmem:[%s1 + $0xd4] sm:$0xf]
  %v61 = vld [vmem:[%s1 + $0xe4] sm:$0xf]
  %v62 = vld [vmem:[%s1 + $0xf4] sm:$0xf]
  %v63 = vld [vmem:[%s1 + $0x8] sm:$0xf]
  %v64 = vld [vmem:[%s1 + $0x18] sm:$0xf]
  %v65 = vld [vmem:[%s1 + $0x28] sm:$0xf]
  %v66 = vld [vmem:[%s1 + $0x38] sm:$0xf]
  %v67 = vld [vmem:[%s1 + $0x48] sm:$0xf]
  %v68 = vld [vmem:[%s1 + $0x58] sm:$0xf]
  %v69 = vld [vmem:[%s1 + $0x68] sm:$0xf]
  %v70 = vld [vmem:[%s1 + $0x78] sm:$0xf]
  %v71 = vld [vmem:[%s1 + $0x88] sm:$0xf]
  %v72 = vld [vmem:[%s1 + $0x98] sm:$0xf]
  %v73 = vld [vmem:[%s1 + $0xa8] sm:$0xf]
  %v74 = vld [vmem:[%s1 + $0xb8] sm:$0xf]
  %v75 = vld [vmem:[%s1 + $0xc8] sm:$0xf]
  %v76 = vld [vmem:[%s1 + $0xd8] sm:$0xf]
  %v77 = vld [vmem:[%s1 + $0xe8] sm:$0xf]
  %v78 = vld [vmem:[%s1 + $0xf8] sm:$0xf]
  %v79 = vld [vmem:[%s1 + $0xc] sm:$0xf]
  %v80 = vld [vmem:[%s1 + $0x1c] sm:$0xf]
  %v81 = vld [vmem:[%s1 + $0x2c] sm:$0xf]
  %v82 = vld [vmem:[%s1 + $0x3c] sm:$0xf]
  %v83 = vld [vmem:[%s1 + $0x4c] sm:$0xf]
  %v84 = vld [vmem:[%s1 + $0x5c] sm:$0xf]
  %v85 = vld [vmem:[%s1 + $0x6c] sm:$0xf]
  %v86 = vld [vmem:[%s1 + $0x7c] sm:$0xf]
  %v87 = vld [vmem:[%s1 + $0x8c] sm:$0xf]
  %v88 = vld [vmem:[%s1 + $0x9c] sm:$0xf]
  %v89 = vld [vmem:[%s1 + $0xac] sm:$0xf]
  %v90 = vld [vmem:[%s1 + $0xbc] sm:$0xf]
  %v91 = vld [vmem:[%s1 + $0xcc] sm:$0xf]
  %v92 = vld [vmem:[%s1 + $0xdc] sm:$0xf]
  %v93 = vld [vmem:[%s1 + $0xec] sm:$0xf]
  %v94 = vld [vmem:[%s1 + $0xfc] sm:$0xf]
  %v95 = vld [vmem:[#allocation2] sm:$0xf]
  %v96 = vld [vmem:[#allocation2 + $0x4] sm:$0xf]
  %v97 = vld [vmem:[%s0] sm:$0xf]
  %v98 = vld [vmem:[%s0 + $0x10] sm:$0xf]
  %v99 = vunpack.c.l.bf16 %v97
  %v100 = vunpack.c.l.bf16 %v98
  %v103 = vunpack.c.l.b16 %v95
  %v104 = vunpack.c.l.b16 %v96
  %v105 = vpack.c.b16 %v104, %v103
  %v123 = vunpack.c.l.b16 %v31
  %v124 = vunpack.c.l.b16 %v32
  %v125 = vunpack.c.l.b16 %v33
  %v126 = vunpack.c.l.b16 %v34
  %v127 = vunpack.c.l.b16 %v35
  %v128 = vunpack.c.l.b16 %v36
  %v129 = vunpack.c.l.b16 %v37
  %v130 = vunpack.c.l.b16 %v38
  %v131 = vunpack.c.l.b16 %v39
  %v132 = vunpack.c.l.b16 %v40
  %v133 = vunpack.c.l.b16 %v41
  %v134 = vunpack.c.l.b16 %v42
  %v135 = vunpack.c.l.b16 %v43
  %v136 = vunpack.c.l.b16 %v44
  %v137 = vunpack.c.l.b16 %v45
  %v138 = vunpack.c.l.b16 %v46
  %v139 = vpack.c.b16 %v124, %v123
  %v140 = vpack.c.b16 %v126, %v125
  %v141 = vpack.c.b16 %v128, %v127
  %v142 = vpack.c.b16 %v130, %v129
  %v143 = vpack.c.b16 %v132, %v131
  %v144 = vpack.c.b16 %v134, %v133
  %v145 = vpack.c.b16 %v136, %v135
  %v146 = vpack.c.b16 %v138, %v137
  %155 = vmatpush.bf16.msra.mxu0 %v146
  %156 = vmatpush.bf16.msra.mxu0 %v145
  %157 = vmatpush.bf16.msra.mxu0 %v144
  %158 = vmatpush.bf16.msra.mxu0 %v143
  %159 = vmatpush.bf16.msra.mxu0 %v142
  %160 = vmatpush.bf16.msra.mxu0 %v141
  %161 = vmatpush.bf16.msra.mxu0 %v140
  %162 = vmatpush.bf16.msra.mxu0 %v139
  %163 = vmatmul.bf16.gmra.mxu0 %v105
  %v164 = vpop.f32.mrf.mxu0
  %v165 = vadd.f32 0.0, %v164
  %v166 = vpop.f32.mrf.mxu0
  %v167 = vadd.f32 0.0, %v166
  %168 = vdwg.mxu0
  %v169 = vadd.f32 %v99, %v165
  %v170 = vadd.f32 %v100, %v167
  %v171 = vxor.u32 %v169, 2147483648
  %v172 = vxor.u32 %v170, 2147483648
  %v173 = vmul.f32 %v171, 1.442695
  %v174 = vpow.pop %v173
  %v175 = vmul.f32 %v172, 1.442695
  %v176 = vpow.pop %v175
  %v177 = vadd.f32 %v174, 1.0
  %v178 = vadd.f32 %v176, 1.0
  %v179 = vrcp.pop %v177
  %v180 = vmul.f32 %v177, %v179
  %v181 = vsub.f32 1.0, %v180
  %v182 = vmul.f32 %v179, %v181
  %v183 = vadd.f32 %v179, %v182
  %vm184 = vweird.f32 %v177
  %vm185 = vweird.f32 %v179
  %vm186 = vmor %vm184, %vm185
  %v187 = vsel %vm186, %v179, %v183
  %v188 = vand.u32 2147483647, %v177
  %vm189 = vcmp.eq.f32.partialorder %v188, 8.507059e+37
  %v190 = vand.u32 %v177, 2147483648
  %v191 = vor.u32 1.1754944e-38, %v190
  %v192 = vsel %vm189, %v191, %v187
  %v193 = vmul.f32 1.0, %v192
  %v194 = vrcp.pop %v178
  %v195 = vmul.f32 %v178, %v194
  %v196 = vsub.f32 1.0, %v195
  %v197 = vmul.f32 %v194, %v196
  %v198 = vadd.f32 %v194, %v197
  %vm199 = vweird.f32 %v178
  %vm200 = vweird.f32 %v194
  %vm201 = vmor %vm199, %vm200
  %v202 = vsel %vm201, %v194, %v198
  %v203 = vand.u32 2147483647, %v178
  %vm204 = vcmp.eq.f32.partialorder %v203, 8.507059e+37
  %v205 = vand.u32 %v178, 2147483648
  %v206 = vor.u32 1.1754944e-38, %v205
  %v207 = vsel %vm204, %v206, %v202
  %v208 = vmul.f32 1.0, %v207
  %v209 = vld [vmem:[%s0 + $0x4] sm:$0xf]
  %v210 = vld [vmem:[%s0 + $0x14] sm:$0xf]
  %v211 = vunpack.c.l.bf16 %v209
  %v212 = vunpack.c.l.bf16 %v210
  %v229 = vunpack.c.l.b16 %v47
  %v230 = vunpack.c.l.b16 %v48
  %v231 = vunpack.c.l.b16 %v49
  %v232 = vunpack.c.l.b16 %v50
  %v233 = vunpack.c.l.b16 %v51
  %v234 = vunpack.c.l.b16 %v52
  %v235 = vunpack.c.l.b16 %v53
  %v236 = vunpack.c.l.b16 %v54
  %v237 = vunpack.c.l.b16 %v55
  %v238 = vunpack.c.l.b16 %v56
  %v239 = vunpack.c.l.b16 %v57
  %v240 = vunpack.c.l.b16 %v58
  %v241 = vunpack.c.l.b16 %v59
  %v242 = vunpack.c.l.b16 %v60
  %v243 = vunpack.c.l.b16 %v61
  %v244 = vunpack.c.l.b16 %v62
  %v245 = vpack.c.b16 %v230, %v229
  %v246 = vpack.c.b16 %v232, %v231
  %v247 = vpack.c.b16 %v234, %v233
  %v248 = vpack.c.b16 %v236, %v235
  %v249 = vpack.c.b16 %v238, %v237
  %v250 = vpack.c.b16 %v240, %v239
  %v251 = vpack.c.b16 %v242, %v241
  %v252 = vpack.c.b16 %v244, %v243
  %261 = vmatpush.bf16.msra.mxu0 %v252
  %262 = vmatpush.bf16.msra.mxu0 %v251
  %263 = vmatpush.bf16.msra.mxu0 %v250
  %264 = vmatpush.bf16.msra.mxu0 %v249
  %265 = vmatpush.bf16.msra.mxu0 %v248
  %266 = vmatpush.bf16.msra.mxu0 %v247
  %267 = vmatpush.bf16.msra.mxu0 %v246
  %268 = vmatpush.bf16.msra.mxu0 %v245
  %269 = vmatmul.bf16.gmra.mxu0 %v105
  %v270 = vpop.f32.mrf.mxu0
  %v271 = vadd.f32 0.0, %v270
  %v272 = vpop.f32.mrf.mxu0
  %v273 = vadd.f32 0.0, %v272
  %274 = vdwg.mxu0
  %v275 = vadd.f32 %v211, %v271
  %v276 = vadd.f32 %v212, %v273
  %v277 = vxor.u32 %v275, 2147483648
  %v278 = vxor.u32 %v276, 2147483648
  %v279 = vmul.f32 %v277, 1.442695
  %v280 = vpow.pop %v279
  %v281 = vmul.f32 %v278, 1.442695
  %v282 = vpow.pop %v281
  %v283 = vadd.f32 %v280, 1.0
  %v284 = vadd.f32 %v282, 1.0
  %v285 = vrcp.pop %v283
  %v286 = vmul.f32 %v283, %v285
  %v287 = vsub.f32 1.0, %v286
  %v288 = vmul.f32 %v285, %v287
  %v289 = vadd.f32 %v285, %v288
  %vm290 = vweird.f32 %v283
  %vm291 = vweird.f32 %v285
  %vm292 = vmor %vm290, %vm291
  %v293 = vsel %vm292, %v285, %v289
  %v294 = vand.u32 2147483647, %v283
  %vm295 = vcmp.eq.f32.partialorder %v294, 8.507059e+37
  %v296 = vand.u32 %v283, 2147483648
  %v297 = vor.u32 1.1754944e-38, %v296
  %v298 = vsel %vm295, %v297, %v293
  %v299 = vmul.f32 1.0, %v298
  %v300 = vrcp.pop %v284
  %v301 = vmul.f32 %v284, %v300
  %v302 = vsub.f32 1.0, %v301
  %v303 = vmul.f32 %v300, %v302
  %v304 = vadd.f32 %v300, %v303
  %vm305 = vweird.f32 %v284
  %vm306 = vweird.f32 %v300
  %vm307 = vmor %vm305, %vm306
  %v308 = vsel %vm307, %v300, %v304
  %v309 = vand.u32 2147483647, %v284
  %vm310 = vcmp.eq.f32.partialorder %v309, 8.507059e+37
  %v311 = vand.u32 %v284, 2147483648
  %v312 = vor.u32 1.1754944e-38, %v311
  %v313 = vsel %vm310, %v312, %v308
  %v314 = vmul.f32 1.0, %v313
  %v315 = vld [vmem:[%s0 + $0x8] sm:$0xf]
  %v316 = vld [vmem:[%s0 + $0x18] sm:$0xf]
  %v317 = vunpack.c.l.bf16 %v315
  %v318 = vunpack.c.l.bf16 %v316
  %v335 = vunpack.c.l.b16 %v63
  %v336 = vunpack.c.l.b16 %v64
  %v337 = vunpack.c.l.b16 %v65
  %v338 = vunpack.c.l.b16 %v66
  %v339 = vunpack.c.l.b16 %v67
  %v340 = vunpack.c.l.b16 %v68
  %v341 = vunpack.c.l.b16 %v69
  %v342 = vunpack.c.l.b16 %v70
  %v343 = vunpack.c.l.b16 %v71
  %v344 = vunpack.c.l.b16 %v72
  %v345 = vunpack.c.l.b16 %v73
  %v346 = vunpack.c.l.b16 %v74
  %v347 = vunpack.c.l.b16 %v75
  %v348 = vunpack.c.l.b16 %v76
  %v349 = vunpack.c.l.b16 %v77
  %v350 = vunpack.c.l.b16 %v78
  %v351 = vpack.c.b16 %v336, %v335
  %v352 = vpack.c.b16 %v338, %v337
  %v353 = vpack.c.b16 %v340, %v339
  %v354 = vpack.c.b16 %v342, %v341
  %v355 = vpack.c.b16 %v344, %v343
  %v356 = vpack.c.b16 %v346, %v345
  %v357 = vpack.c.b16 %v348, %v347
  %v358 = vpack.c.b16 %v350, %v349
  %367 = vmatpush.bf16.msra.mxu0 %v358
  %368 = vmatpush.bf16.msra.mxu0 %v357
  %369 = vmatpush.bf16.msra.mxu0 %v356
  %370 = vmatpush.bf16.msra.mxu0 %v355
  %371 = vmatpush.bf16.msra.mxu0 %v354
  %372 = vmatpush.bf16.msra.mxu0 %v353
  %373 = vmatpush.bf16.msra.mxu0 %v352
  %374 = vmatpush.bf16.msra.mxu0 %v351
  %375 = vmatmul.bf16.gmra.mxu0 %v105
  %v376 = vpop.f32.mrf.mxu0
  %v377 = vadd.f32 0.0, %v376
  %v378 = vpop.f32.mrf.mxu0
  %v379 = vadd.f32 0.0, %v378
  %380 = vdwg.mxu0
  %v381 = vadd.f32 %v317, %v377
  %v382 = vadd.f32 %v318, %v379
  %v383 = vtanh.pop %v381
  %v384 = vtanh.pop %v382
  %v385 = vld [vmem:[%s0 + $0xc] sm:$0xf]
  %v386 = vld [vmem:[%s0 + $0x1c] sm:$0xf]
  %v387 = vunpack.c.l.bf16 %v385
  %v388 = vunpack.c.l.bf16 %v386
  %v405 = vunpack.c.l.b16 %v79
  %v406 = vunpack.c.l.b16 %v80
  %v407 = vunpack.c.l.b16 %v81
  %v408 = vunpack.c.l.b16 %v82
  %v409 = vunpack.c.l.b16 %v83
  %v410 = vunpack.c.l.b16 %v84
  %v411 = vunpack.c.l.b16 %v85
  %v412 = vunpack.c.l.b16 %v86
  %v413 = vunpack.c.l.b16 %v87
  %v414 = vunpack.c.l.b16 %v88
  %v415 = vunpack.c.l.b16 %v89
  %v416 = vunpack.c.l.b16 %v90
  %v417 = vunpack.c.l.b16 %v91
  %v418 = vunpack.c.l.b16 %v92
  %v419 = vunpack.c.l.b16 %v93
  %v420 = vunpack.c.l.b16 %v94
  %v421 = vpack.c.b16 %v406, %v405
  %v422 = vpack.c.b16 %v408, %v407
  %v423 = vpack.c.b16 %v410, %v409
  %v424 = vpack.c.b16 %v412, %v411
  %v425 = vpack.c.b16 %v414, %v413
  %v426 = vpack.c.b16 %v416, %v415
  %v427 = vpack.c.b16 %v418, %v417
  %v428 = vpack.c.b16 %v420, %v419
  %437 = vmatpush.bf16.msra.mxu0 %v428
  %438 = vmatpush.bf16.msra.mxu0 %v427
  %439 = vmatpush.bf16.msra.mxu0 %v426
  %440 = vmatpush.bf16.msra.mxu0 %v425
  %441 = vmatpush.bf16.msra.mxu0 %v424
  %442 = vmatpush.bf16.msra.mxu0 %v423
  %443 = vmatpush.bf16.msra.mxu0 %v422
  %444 = vmatpush.bf16.msra.mxu0 %v421
  %445 = vmatmul.bf16.gmra.mxu0 %v105
  %v446 = vpop.f32.mrf.mxu0
  %v447 = vadd.f32 0.0, %v446
  %v448 = vpop.f32.mrf.mxu0
  %v449 = vadd.f32 0.0, %v448
  %450 = vdwg.mxu0
  %v451 = vadd.f32 %v387, %v447
  %v452 = vadd.f32 %v388, %v449
  %v453 = vxor.u32 %v451, 2147483648
  %v454 = vxor.u32 %v452, 2147483648
  %v455 = vmul.f32 %v453, 1.442695
  %v456 = vpow.pop %v455
  %v457 = vmul.f32 %v454, 1.442695
  %v458 = vpow.pop %v457
  %v459 = vadd.f32 %v456, 1.0
  %v460 = vadd.f32 %v458, 1.0
  %v461 = vrcp.pop %v459
  %v462 = vmul.f32 %v459, %v461
  %v463 = vsub.f32 1.0, %v462
  %v464 = vmul.f32 %v461, %v463
  %v465 = vadd.f32 %v461, %v464
  %vm466 = vweird.f32 %v459
  %vm467 = vweird.f32 %v461
  %vm468 = vmor %vm466, %vm467
  %v469 = vsel %vm468, %v461, %v465
  %v470 = vand.u32 2147483647, %v459
  %vm471 = vcmp.eq.f32.partialorder %v470, 8.507059e+37
  %v472 = vand.u32 %v459, 2147483648
  %v473 = vor.u32 1.1754944e-38, %v472
  %v474 = vsel %vm471, %v473, %v469
  %v475 = vmul.f32 1.0, %v474
  %v476 = vrcp.pop %v460
  %v477 = vmul.f32 %v460, %v476
  %v478 = vsub.f32 1.0, %v477
  %v479 = vmul.f32 %v476, %v478
  %v480 = vadd.f32 %v476, %v479
  %vm481 = vweird.f32 %v460
  %vm482 = vweird.f32 %v476
  %vm483 = vmor %vm481, %vm482
  %v484 = vsel %vm483, %v476, %v480
  %v485 = vand.u32 2147483647, %v460
  %vm486 = vcmp.eq.f32.partialorder %v485, 8.507059e+37
  %v487 = vand.u32 %v460, 2147483648
  %v488 = vor.u32 1.1754944e-38, %v487
  %v489 = vsel %vm486, %v488, %v484
  %v490 = vmul.f32 1.0, %v489
  %v491 = vld [vmem:[#allocation3] sm:$0xff]
  %v492 = vld [vmem:[#allocation3 + $0x8] sm:$0xff]
  %v493 = vmul.f32 %v299, %v491
  %v494 = vmul.f32 %v314, %v492
  %v495 = vmul.f32 %v193, %v383
  %v496 = vmul.f32 %v208, %v384
  %v497 = vadd.f32 %v493, %v495
  %v498 = vadd.f32 %v494, %v496
  %v499 = vtanh.pop %v497
  %v500 = vtanh.pop %v498
  %v501 = vmul.f32 %v475, %v499
  %v502 = vmul.f32 %v490, %v500
  %v503 = vpack.c.bf16 %v501, %v501
  %v504 = vpack.c.bf16 %v502, %v502
  %505 = vst [vmem:[#allocation3] sm:$0xff] %v497
  %506 = vst [vmem:[#allocation3 + $0x8] sm:$0xff] %v498
  %507 = vst [vmem:[#allocation2] sm:$0xf] %v503
  %508 = vst [vmem:[#allocation2 + $0x4] sm:$0xf] %v504
  %509 = vst [vmem:[%s4] sm:$0xf] %v503
  %510 = vst [vmem:[%s4 + $0x4] sm:$0xf] %v504
  %v511 = vld [vmem:[#allocation2] sm:$0xf]
  %v512 = vld [vmem:[#allocation2 + $0x4] sm:$0xf]
  %s513 = scalar_lea.vmem %s0, 32
  %v514 = vld [vmem:[%s513] sm:$0xf]
  %v515 = vld [vmem:[%s513 + $0x10] sm:$0xf]
  %v516 = vunpack.c.l.bf16 %v514
  %v517 = vunpack.c.l.bf16 %v515
  %v520 = vunpack.c.l.b16 %v511
  %v521 = vunpack.c.l.b16 %v512
  %v522 = vpack.c.b16 %v521, %v520
  %524 = vmatpush.bf16.msra.mxu0 %v146
  %525 = vmatpush.bf16.msra.mxu0 %v145
  %526 = vmatpush.bf16.msra.mxu0 %v144
  %527 = vmatpush.bf16.msra.mxu0 %v143
  %528 = vmatpush.bf16.msra.mxu0 %v142
  %529 = vmatpush.bf16.msra.mxu0 %v141
  %530 = vmatpush.bf16.msra.mxu0 %v140
  %531 = vmatpush.bf16.msra.mxu0 %v139
  %532 = vmatmul.bf16.gmra.mxu0 %v522
  %v533 = vpop.f32.mrf.mxu0
  %v534 = vadd.f32 0.0, %v533
  %v535 = vpop.f32.mrf.mxu0
  %v536 = vadd.f32 0.0, %v535
  %537 = vdwg.mxu0
  %v538 = vadd.f32 %v516, %v534
  %v539 = vadd.f32 %v517, %v536
  %v540 = vxor.u32 %v538, 2147483648
  %v541 = vxor.u32 %v539, 2147483648
  %v542 = vmul.f32 %v540, 1.442695
  %v543 = vpow.pop %v542
  %v544 = vmul.f32 %v541, 1.442695
  %v545 = vpow.pop %v544
  %v546 = vadd.f32 %v543, 1.0
  %v547 = vadd.f32 %v545, 1.0
  %v548 = vrcp.pop %v546
  %v549 = vmul.f32 %v546, %v548
  %v550 = vsub.f32 1.0, %v549
  %v551 = vmul.f32 %v548, %v550
  %v552 = vadd.f32 %v548, %v551
  %vm553 = vweird.f32 %v546
  %vm554 = vweird.f32 %v548
  %vm555 = vmor %vm553, %vm554
  %v556 = vsel %vm555, %v548, %v552
  %v557 = vand.u32 2147483647, %v546
  %vm558 = vcmp.eq.f32.partialorder %v557, 8.507059e+37
  %v559 = vand.u32 %v546, 2147483648
  %v560 = vor.u32 1.1754944e-38, %v559
  %v561 = vsel %vm558, %v560, %v556
  %v562 = vmul.f32 1.0, %v561
  %v563 = vrcp.pop %v547
  %v564 = vmul.f32 %v547, %v563
  %v565 = vsub.f32 1.0, %v564
  %v566 = vmul.f32 %v563, %v565
  %v567 = vadd.f32 %v563, %v566
  %vm568 = vweird.f32 %v547
  %vm569 = vweird.f32 %v563
  %vm570 = vmor %vm568, %vm569
  %v571 = vsel %vm570, %v563, %v567
  %v572 = vand.u32 2147483647, %v547
  %vm573 = vcmp.eq.f32.partialorder %v572, 8.507059e+37
  %v574 = vand.u32 %v547, 2147483648
  %v575 = vor.u32 1.1754944e-38, %v574
  %v576 = vsel %vm573, %v575, %v571
  %v577 = vmul.f32 1.0, %v576
  %v578 = vld [vmem:[%s513 + $0x4] sm:$0xf]
  %v579 = vld [vmem:[%s513 + $0x14] sm:$0xf]
  %v580 = vunpack.c.l.bf16 %v578
  %v581 = vunpack.c.l.bf16 %v579
  %582 = vmatpush.bf16.msra.mxu0 %v252
  %583 = vmatpush.bf16.msra.mxu0 %v251
  %584 = vmatpush.bf16.msra.mxu0 %v250
  %585 = vmatpush.bf16.msra.mxu0 %v249
  %586 = vmatpush.bf16.msra.mxu0 %v248
  %587 = vmatpush.bf16.msra.mxu0 %v247
  %588 = vmatpush.bf16.msra.mxu0 %v246
  %589 = vmatpush.bf16.msra.mxu0 %v245
  %590 = vmatmul.bf16.gmra.mxu0 %v522
  %v591 = vpop.f32.mrf.mxu0
  %v592 = vadd.f32 0.0, %v591
  %v593 = vpop.f32.mrf.mxu0
  %v594 = vadd.f32 0.0, %v593
  %595 = vdwg.mxu0
  %v596 = vadd.f32 %v580, %v592
  %v597 = vadd.f32 %v581, %v594
  %v598 = vxor.u32 %v596, 2147483648
  %v599 = vxor.u32 %v597, 2147483648
  %v600 = vmul.f32 %v598, 1.442695
  %v601 = vpow.pop %v600
  %v602 = vmul.f32 %v599, 1.442695
  %v603 = vpow.pop %v602
  %v604 = vadd.f32 %v601, 1.0
  %v605 = vadd.f32 %v603, 1.0
  %v606 = vrcp.pop %v604
  %v607 = vmul.f32 %v604, %v606
  %v608 = vsub.f32 1.0, %v607
  %v609 = vmul.f32 %v606, %v608
  %v610 = vadd.f32 %v606, %v609
  %vm611 = vweird.f32 %v604
  %vm612 = vweird.f32 %v606
  %vm613 = vmor %vm611, %vm612
  %v614 = vsel %vm613, %v606, %v610
  %v615 = vand.u32 2147483647, %v604
  %vm616 = vcmp.eq.f32.partialorder %v615, 8.507059e+37
  %v617 = vand.u32 %v604, 2147483648
  %v618 = vor.u32 1.1754944e-38, %v617
  %v619 = vsel %vm616, %v618, %v614
  %v620 = vmul.f32 1.0, %v619
  %v621 = vrcp.pop %v605
  %v622 = vmul.f32 %v605, %v621
  %v623 = vsub.f32 1.0, %v622
  %v624 = vmul.f32 %v621, %v623
  %v625 = vadd.f32 %v621, %v624
  %vm626 = vweird.f32 %v605
  %vm627 = vweird.f32 %v621
  %vm628 = vmor %vm626, %vm627
  %v629 = vsel %vm628, %v621, %v625
  %v630 = vand.u32 2147483647, %v605
  %vm631 = vcmp.eq.f32.partialorder %v630, 8.507059e+37
  %v632 = vand.u32 %v605, 2147483648
  %v633 = vor.u32 1.1754944e-38, %v632
  %v634 = vsel %vm631, %v633, %v629
  %v635 = vmul.f32 1.0, %v634
  %v636 = vld [vmem:[%s513 + $0x8] sm:$0xf]
  %v637 = vld [vmem:[%s513 + $0x18] sm:$0xf]
  %v638 = vunpack.c.l.bf16 %v636
  %v639 = vunpack.c.l.bf16 %v637
  %640 = vmatpush.bf16.msra.mxu0 %v358
  %641 = vmatpush.bf16.msra.mxu0 %v357
  %642 = vmatpush.bf16.msra.mxu0 %v356
  %643 = vmatpush.bf16.msra.mxu0 %v355
  %644 = vmatpush.bf16.msra.mxu0 %v354
  %645 = vmatpush.bf16.msra.mxu0 %v353
  %646 = vmatpush.bf16.msra.mxu0 %v352
  %647 = vmatpush.bf16.msra.mxu0 %v351
  %648 = vmatmul.bf16.gmra.mxu0 %v522
  %v649 = vpop.f32.mrf.mxu0
  %v650 = vadd.f32 0.0, %v649
  %v651 = vpop.f32.mrf.mxu0
  %v652 = vadd.f32 0.0, %v651
  %653 = vdwg.mxu0
  %v654 = vadd.f32 %v638, %v650
  %v655 = vadd.f32 %v639, %v652
  %v656 = vtanh.pop %v654
  %v657 = vtanh.pop %v655
  %v658 = vld [vmem:[%s513 + $0xc] sm:$0xf]
  %v659 = vld [vmem:[%s513 + $0x1c] sm:$0xf]
  %v660 = vunpack.c.l.bf16 %v658
  %v661 = vunpack.c.l.bf16 %v659
  %662 = vmatpush.bf16.msra.mxu0 %v428
  %663 = vmatpush.bf16.msra.mxu0 %v427
  %664 = vmatpush.bf16.msra.mxu0 %v426
  %665 = vmatpush.bf16.msra.mxu0 %v425
  %666 = vmatpush.bf16.msra.mxu0 %v424
  %667 = vmatpush.bf16.msra.mxu0 %v423
  %668 = vmatpush.bf16.msra.mxu0 %v422
  %669 = vmatpush.bf16.msra.mxu0 %v421
  %670 = vmatmul.bf16.gmra.mxu0 %v522
  %v671 = vpop.f32.mrf.mxu0
  %v672 = vadd.f32 0.0, %v671
  %v673 = vpop.f32.mrf.mxu0
  %v674 = vadd.f32 0.0, %v673
  %675 = vdwg.mxu0
  %v676 = vadd.f32 %v660, %v672
  %v677 = vadd.f32 %v661, %v674
  %v678 = vxor.u32 %v676, 2147483648
  %v679 = vxor.u32 %v677, 2147483648
  %v680 = vmul.f32 %v678, 1.442695
  %v681 = vpow.pop %v680
  %v682 = vmul.f32 %v679, 1.442695
  %v683 = vpow.pop %v682
  %v684 = vadd.f32 %v681, 1.0
  %v685 = vadd.f32 %v683, 1.0
  %v686 = vrcp.pop %v684
  %v687 = vmul.f32 %v684, %v686
  %v688 = vsub.f32 1.0, %v687
  %v689 = vmul.f32 %v686, %v688
  %v690 = vadd.f32 %v686, %v689
  %vm691 = vweird.f32 %v684
  %vm692 = vweird.f32 %v686
  %vm693 = vmor %vm691, %vm692
  %v694 = vsel %vm693, %v686, %v690
  %v695 = vand.u32 2147483647, %v684
  %vm696 = vcmp.eq.f32.partialorder %v695, 8.507059e+37
  %v697 = vand.u32 %v684, 2147483648
  %v698 = vor.u32 1.1754944e-38, %v697
  %v699 = vsel %vm696, %v698, %v694
  %v700 = vmul.f32 1.0, %v699
  %v701 = vrcp.pop %v685
  %v702 = vmul.f32 %v685, %v701
  %v703 = vsub.f32 1.0, %v702
  %v704 = vmul.f32 %v701, %v703
  %v705 = vadd.f32 %v701, %v704
  %vm706 = vweird.f32 %v685
  %vm707 = vweird.f32 %v701
  %vm708 = vmor %vm706, %vm707
  %v709 = vsel %vm708, %v701, %v705
  %v710 = vand.u32 2147483647, %v685
  %vm711 = vcmp.eq.f32.partialorder %v710, 8.507059e+37
  %v712 = vand.u32 %v685, 2147483648
  %v713 = vor.u32 1.1754944e-38, %v712
  %v714 = vsel %vm711, %v713, %v709
  %v715 = vmul.f32 1.0, %v714
  %v716 = vld [vmem:[#allocation3] sm:$0xff]
  %v717 = vld [vmem:[#allocation3 + $0x8] sm:$0xff]
  %v718 = vmul.f32 %v620, %v716
  %v719 = vmul.f32 %v635, %v717
  %v720 = vmul.f32 %v562, %v656
  %v721 = vmul.f32 %v577, %v657
  %v722 = vadd.f32 %v718, %v720
  %v723 = vadd.f32 %v719, %v721
  %v724 = vtanh.pop %v722
  %v725 = vtanh.pop %v723
  %v726 = vmul.f32 %v700, %v724
  %v727 = vmul.f32 %v715, %v725
  %v728 = vpack.c.bf16 %v726, %v726
  %v729 = vpack.c.bf16 %v727, %v727
  %730 = vst [vmem:[#allocation3] sm:$0xff] %v722
  %731 = vst [vmem:[#allocation3 + $0x8] sm:$0xff] %v723
  %732 = vst [vmem:[#allocation2] sm:$0xf] %v728
  %733 = vst [vmem:[#allocation2 + $0x4] sm:$0xf] %v729
  %s734 = scalar_lea.vmem %s4, 8
  %735 = vst [vmem:[%s734] sm:$0xf] %v728
  %736 = vst [vmem:[%s734 + $0x4] sm:$0xf] %v729
  %v737 = vld [vmem:[#allocation2] sm:$0xf]
  %v738 = vld [vmem:[#allocation2 + $0x4] sm:$0xf]
  %s739 = scalar_lea.vmem %s0, 64
  %v740 = vld [vmem:[%s739] sm:$0xf]
  %v741 = vld [vmem:[%s739 + $0x10] sm:$0xf]
  %v742 = vunpack.c.l.bf16 %v740
  %v743 = vunpack.c.l.bf16 %v741
  %v746 = vunpack.c.l.b16 %v737
  %v747 = vunpack.c.l.b16 %v738
  %v748 = vpack.c.b16 %v747, %v746
  %750 = vmatpush.bf16.msra.mxu0 %v146
  %751 = vmatpush.bf16.msra.mxu0 %v145
  %752 = vmatpush.bf16.msra.mxu0 %v144
  %753 = vmatpush.bf16.msra.mxu0 %v143
  %754 = vmatpush.bf16.msra.mxu0 %v142
  %755 = vmatpush.bf16.msra.mxu0 %v141
  %756 = vmatpush.bf16.msra.mxu0 %v140
  %757 = vmatpush.bf16.msra.mxu0 %v139
  %758 = vmatmul.bf16.gmra.mxu0 %v748
  %v759 = vpop.f32.mrf.mxu0
  %v760 = vadd.f32 0.0, %v759
  %v761 = vpop.f32.mrf.mxu0
  %v762 = vadd.f32 0.0, %v761
  %763 = vdwg.mxu0
  %v764 = vadd.f32 %v742, %v760
  %v765 = vadd.f32 %v743, %v762
  %v766 = vxor.u32 %v764, 2147483648
  %v767 = vxor.u32 %v765, 2147483648
  %v768 = vmul.f32 %v766, 1.442695
  %v769 = vpow.pop %v768
  %v770 = vmul.f32 %v767, 1.442695
  %v771 = vpow.pop %v770
  %v772 = vadd.f32 %v769, 1.0
  %v773 = vadd.f32 %v771, 1.0
  %v774 = vrcp.pop %v772
  %v775 = vmul.f32 %v772, %v774
  %v776 = vsub.f32 1.0, %v775
  %v777 = vmul.f32 %v774, %v776
  %v778 = vadd.f32 %v774, %v777
  %vm779 = vweird.f32 %v772
  %vm780 = vweird.f32 %v774
  %vm781 = vmor %vm779, %vm780
  %v782 = vsel %vm781, %v774, %v778
  %v783 = vand.u32 2147483647, %v772
  %vm784 = vcmp.eq.f32.partialorder %v783, 8.507059e+37
  %v785 = vand.u32 %v772, 2147483648
  %v786 = vor.u32 1.1754944e-38, %v785
  %v787 = vsel %vm784, %v786, %v782
  %v788 = vmul.f32 1.0, %v787
  %v789 = vrcp.pop %v773
  %v790 = vmul.f32 %v773, %v789
  %v791 = vsub.f32 1.0, %v790
  %v792 = vmul.f32 %v789, %v791
  %v793 = vadd.f32 %v789, %v792
  %vm794 = vweird.f32 %v773
  %vm795 = vweird.f32 %v789
  %vm796 = vmor %vm794, %vm795
  %v797 = vsel %vm796, %v789, %v793
  %v798 = vand.u32 2147483647, %v773
  %vm799 = vcmp.eq.f32.partialorder %v798, 8.507059e+37
  %v800 = vand.u32 %v773, 2147483648
  %v801 = vor.u32 1.1754944e-38, %v800
  %v802 = vsel %vm799, %v801, %v797
  %v803 = vmul.f32 1.0, %v802
  %v804 = vld [vmem:[%s739 + $0x4] sm:$0xf]
  %v805 = vld [vmem:[%s739 + $0x14] sm:$0xf]
  %v806 = vunpack.c.l.bf16 %v804
  %v807 = vunpack.c.l.bf16 %v805
  %808 = vmatpush.bf16.msra.mxu0 %v252
  %809 = vmatpush.bf16.msra.mxu0 %v251
  %810 = vmatpush.bf16.msra.mxu0 %v250
  %811 = vmatpush.bf16.msra.mxu0 %v249
  %812 = vmatpush.bf16.msra.mxu0 %v248
  %813 = vmatpush.bf16.msra.mxu0 %v247
  %814 = vmatpush.bf16.msra.mxu0 %v246
  %815 = vmatpush.bf16.msra.mxu0 %v245
  %816 = vmatmul.bf16.gmra.mxu0 %v748
  %v817 = vpop.f32.mrf.mxu0
  %v818 = vadd.f32 0.0, %v817
  %v819 = vpop.f32.mrf.mxu0
  %v820 = vadd.f32 0.0, %v819
  %821 = vdwg.mxu0
  %v822 = vadd.f32 %v806, %v818
  %v823 = vadd.f32 %v807, %v820
  %v824 = vxor.u32 %v822, 2147483648
  %v825 = vxor.u32 %v823, 2147483648
  %v826 = vmul.f32 %v824, 1.442695
  %v827 = vpow.pop %v826
  %v828 = vmul.f32 %v825, 1.442695
  %v829 = vpow.pop %v828
  %v830 = vadd.f32 %v827, 1.0
  %v831 = vadd.f32 %v829, 1.0
  %v832 = vrcp.pop %v830
  %v833 = vmul.f32 %v830, %v832
  %v834 = vsub.f32 1.0, %v833
  %v835 = vmul.f32 %v832, %v834
  %v836 = vadd.f32 %v832, %v835
  %vm837 = vweird.f32 %v830
  %vm838 = vweird.f32 %v832
  %vm839 = vmor %vm837, %vm838
  %v840 = vsel %vm839, %v832, %v836
  %v841 = vand.u32 2147483647, %v830
  %vm842 = vcmp.eq.f32.partialorder %v841, 8.507059e+37
  %v843 = vand.u32 %v830, 2147483648
  %v844 = vor.u32 1.1754944e-38, %v843
  %v845 = vsel %vm842, %v844, %v840
  %v846 = vmul.f32 1.0, %v845
  %v847 = vrcp.pop %v831
  %v848 = vmul.f32 %v831, %v847
  %v849 = vsub.f32 1.0, %v848
  %v850 = vmul.f32 %v847, %v849
  %v851 = vadd.f32 %v847, %v850
  %vm852 = vweird.f32 %v831
  %vm853 = vweird.f32 %v847
  %vm854 = vmor %vm852, %vm853
  %v855 = vsel %vm854, %v847, %v851
  %v856 = vand.u32 2147483647, %v831
  %vm857 = vcmp.eq.f32.partialorder %v856, 8.507059e+37
  %v858 = vand.u32 %v831, 2147483648
  %v859 = vor.u32 1.1754944e-38, %v858
  %v860 = vsel %vm857, %v859, %v855
  %v861 = vmul.f32 1.0, %v860
  %v862 = vld [vmem:[%s739 + $0x8] sm:$0xf]
  %v863 = vld [vmem:[%s739 + $0x18] sm:$0xf]
  %v864 = vunpack.c.l.bf16 %v862
  %v865 = vunpack.c.l.bf16 %v863
  %866 = vmatpush.bf16.msra.mxu0 %v358
  %867 = vmatpush.bf16.msra.mxu0 %v357
  %868 = vmatpush.bf16.msra.mxu0 %v356
  %869 = vmatpush.bf16.msra.mxu0 %v355
  %870 = vmatpush.bf16.msra.mxu0 %v354
  %871 = vmatpush.bf16.msra.mxu0 %v353
  %872 = vmatpush.bf16.msra.mxu0 %v352
  %873 = vmatpush.bf16.msra.mxu0 %v351
  %874 = vmatmul.bf16.gmra.mxu0 %v748
  %v875 = vpop.f32.mrf.mxu0
  %v876 = vadd.f32 0.0, %v875
  %v877 = vpop.f32.mrf.mxu0
  %v878 = vadd.f32 0.0, %v877
  %879 = vdwg.mxu0
  %v880 = vadd.f32 %v864, %v876
  %v881 = vadd.f32 %v865, %v878
  %v882 = vtanh.pop %v880
  %v883 = vtanh.pop %v881
  %v884 = vld [vmem:[%s739 + $0xc] sm:$0xf]
  %v885 = vld [vmem:[%s739 + $0x1c] sm:$0xf]
  %v886 = vunpack.c.l.bf16 %v884
  %v887 = vunpack.c.l.bf16 %v885
  %888 = vmatpush.bf16.msra.mxu0 %v428
  %889 = vmatpush.bf16.msra.mxu0 %v427
  %890 = vmatpush.bf16.msra.mxu0 %v426
  %891 = vmatpush.bf16.msra.mxu0 %v425
  %892 = vmatpush.bf16.msra.mxu0 %v424
  %893 = vmatpush.bf16.msra.mxu0 %v423
  %894 = vmatpush.bf16.msra.mxu0 %v422
  %895 = vmatpush.bf16.msra.mxu0 %v421
  %896 = vmatmul.bf16.gmra.mxu0 %v748
  %v897 = vpop.f32.mrf.mxu0
  %v898 = vadd.f32 0.0, %v897
  %v899 = vpop.f32.mrf.mxu0
  %v900 = vadd.f32 0.0, %v899
  %901 = vdwg.mxu0
  %v902 = vadd.f32 %v886, %v898
  %v903 = vadd.f32 %v887, %v900
  %v904 = vxor.u32 %v902, 2147483648
  %v905 = vxor.u32 %v903, 2147483648
  %v906 = vmul.f32 %v904, 1.442695
  %v907 = vpow.pop %v906
  %v908 = vmul.f32 %v905, 1.442695
  %v909 = vpow.pop %v908
  %v910 = vadd.f32 %v907, 1.0
  %v911 = vadd.f32 %v909, 1.0
  %v912 = vrcp.pop %v910
  %v913 = vmul.f32 %v910, %v912
  %v914 = vsub.f32 1.0, %v913
  %v915 = vmul.f32 %v912, %v914
  %v916 = vadd.f32 %v912, %v915
  %vm917 = vweird.f32 %v910
  %vm918 = vweird.f32 %v912
  %vm919 = vmor %vm917, %vm918
  %v920 = vsel %vm919, %v912, %v916
  %v921 = vand.u32 2147483647, %v910
  %vm922 = vcmp.eq.f32.partialorder %v921, 8.507059e+37
  %v923 = vand.u32 %v910, 2147483648
  %v924 = vor.u32 1.1754944e-38, %v923
  %v925 = vsel %vm922, %v924, %v920
  %v926 = vmul.f32 1.0, %v925
  %v927 = vrcp.pop %v911
  %v928 = vmul.f32 %v911, %v927
  %v929 = vsub.f32 1.0, %v928
  %v930 = vmul.f32 %v927, %v929
  %v931 = vadd.f32 %v927, %v930
  %vm932 = vweird.f32 %v911
  %vm933 = vweird.f32 %v927
  %vm934 = vmor %vm932, %vm933
  %v935 = vsel %vm934, %v927, %v931
  %v936 = vand.u32 2147483647, %v911
  %vm937 = vcmp.eq.f32.partialorder %v936, 8.507059e+37
  %v938 = vand.u32 %v911, 2147483648
  %v939 = vor.u32 1.1754944e-38, %v938
  %v940 = vsel %vm937, %v939, %v935
  %v941 = vmul.f32 1.0, %v940
  %v942 = vld [vmem:[#allocation3] sm:$0xff]
  %v943 = vld [vmem:[#allocation3 + $0x8] sm:$0xff]
  %v944 = vmul.f32 %v846, %v942
  %v945 = vmul.f32 %v861, %v943
  %v946 = vmul.f32 %v788, %v882
  %v947 = vmul.f32 %v803, %v883
  %v948 = vadd.f32 %v944, %v946
  %v949 = vadd.f32 %v945, %v947
  %v950 = vtanh.pop %v948
  %v951 = vtanh.pop %v949
  %v952 = vmul.f32 %v926, %v950
  %v953 = vmul.f32 %v941, %v951
  %v954 = vpack.c.bf16 %v952, %v952
  %v955 = vpack.c.bf16 %v953, %v953
  %956 = vst [vmem:[#allocation3] sm:$0xff] %v948
  %957 = vst [vmem:[#allocation3 + $0x8] sm:$0xff] %v949
  %958 = vst [vmem:[#allocation2] sm:$0xf] %v954
  %959 = vst [vmem:[#allocation2 + $0x4] sm:$0xf] %v955
  %s960 = scalar_lea.vmem %s4, 16
  %961 = vst [vmem:[%s960] sm:$0xf] %v954
  %962 = vst [vmem:[%s960 + $0x4] sm:$0xf] %v955
  %v963 = vld [vmem:[#allocation2] sm:$0xf]
  %v964 = vld [vmem:[#allocation2 + $0x4] sm:$0xf]
  %s965 = scalar_lea.vmem %s0, 96
  %v966 = vld [vmem:[%s965] sm:$0xf]
  %v967 = vld [vmem:[%s965 + $0x10] sm:$0xf]
  %v968 = vunpack.c.l.bf16 %v966
  %v969 = vunpack.c.l.bf16 %v967
  %v972 = vunpack.c.l.b16 %v963
  %v973 = vunpack.c.l.b16 %v964
  %v974 = vpack.c.b16 %v973, %v972
  %976 = vmatpush.bf16.msra.mxu0 %v146
  %977 = vmatpush.bf16.msra.mxu0 %v145
  %978 = vmatpush.bf16.msra.mxu0 %v144
  %979 = vmatpush.bf16.msra.mxu0 %v143
  %980 = vmatpush.bf16.msra.mxu0 %v142
  %981 = vmatpush.bf16.msra.mxu0 %v141
  %982 = vmatpush.bf16.msra.mxu0 %v140
  %983 = vmatpush.bf16.msra.mxu0 %v139
  %984 = vmatmul.bf16.gmra.mxu0 %v974
  %v985 = vpop.f32.mrf.mxu0
  %v986 = vadd.f32 0.0, %v985
  %v987 = vpop.f32.mrf.mxu0
  %v988 = vadd.f32 0.0, %v987
  %989 = vdwg.mxu0
  %v990 = vadd.f32 %v968, %v986
  %v991 = vadd.f32 %v969, %v988
  %v992 = vxor.u32 %v990, 2147483648
  %v993 = vxor.u32 %v991, 2147483648
  %v994 = vmul.f32 %v992, 1.442695
  %v995 = vpow.pop %v994
  %v996 = vmul.f32 %v993, 1.442695
  %v997 = vpow.pop %v996
  %v998 = vadd.f32 %v995, 1.0
  %v999 = vadd.f32 %v997, 1.0
  %v1000 = vrcp.pop %v998
  %v1001 = vmul.f32 %v998, %v1000
  %v1002 = vsub.f32 1.0, %v1001
  %v1003 = vmul.f32 %v1000, %v1002
  %v1004 = vadd.f32 %v1000, %v1003
  %vm1005 = vweird.f32 %v998
  %vm1006 = vweird.f32 %v1000
  %vm1007 = vmor %vm1005, %vm1006
  %v1008 = vsel %vm1007, %v1000, %v1004
  %v1009 = vand.u32 2147483647, %v998
  %vm1010 = vcmp.eq.f32.partialorder %v1009, 8.507059e+37
  %v1011 = vand.u32 %v998, 2147483648
  %v1012 = vor.u32 1.1754944e-38, %v1011
  %v1013 = vsel %vm1010, %v1012, %v1008
  %v1014 = vmul.f32 1.0, %v1013
  %v1015 = vrcp.pop %v999
  %v1016 = vmul.f32 %v999, %v1015
  %v1017 = vsub.f32 1.0, %v1016
  %v1018 = vmul.f32 %v1015, %v1017
  %v1019 = vadd.f32 %v1015, %v1018
  %vm1020 = vweird.f32 %v999
  %vm1021 = vweird.f32 %v1015
  %vm1022 = vmor %vm1020, %vm1021
  %v1023 = vsel %vm1022, %v1015, %v1019
  %v1024 = vand.u32 2147483647, %v999
  %vm1025 = vcmp.eq.f32.partialorder %v1024, 8.507059e+37
  %v1026 = vand.u32 %v999, 2147483648
  %v1027 = vor.u32 1.1754944e-38, %v1026
  %v1028 = vsel %vm1025, %v1027, %v1023
  %v1029 = vmul.f32 1.0, %v1028
  %v1030 = vld [vmem:[%s965 + $0x4] sm:$0xf]
  %v1031 = vld [vmem:[%s965 + $0x14] sm:$0xf]
  %v1032 = vunpack.c.l.bf16 %v1030
  %v1033 = vunpack.c.l.bf16 %v1031
  %1034 = vmatpush.bf16.msra.mxu0 %v252
  %1035 = vmatpush.bf16.msra.mxu0 %v251
  %1036 = vmatpush.bf16.msra.mxu0 %v250
  %1037 = vmatpush.bf16.msra.mxu0 %v249
  %1038 = vmatpush.bf16.msra.mxu0 %v248
  %1039 = vmatpush.bf16.msra.mxu0 %v247
  %1040 = vmatpush.bf16.msra.mxu0 %v246
  %1041 = vmatpush.bf16.msra.mxu0 %v245
  %1042 = vmatmul.bf16.gmra.mxu0 %v974
  %v1043 = vpop.f32.mrf.mxu0
  %v1044 = vadd.f32 0.0, %v1043
  %v1045 = vpop.f32.mrf.mxu0
  %v1046 = vadd.f32 0.0, %v1045
  %1047 = vdwg.mxu0
  %v1048 = vadd.f32 %v1032, %v1044
  %v1049 = vadd.f32 %v1033, %v1046
  %v1050 = vxor.u32 %v1048, 2147483648
  %v1051 = vxor.u32 %v1049, 2147483648
  %v1052 = vmul.f32 %v1050, 1.442695
  %v1053 = vpow.pop %v1052
  %v1054 = vmul.f32 %v1051, 1.442695
  %v1055 = vpow.pop %v1054
  %v1056 = vadd.f32 %v1053, 1.0
  %v1057 = vadd.f32 %v1055, 1.0
  %v1058 = vrcp.pop %v1056
  %v1059 = vmul.f32 %v1056, %v1058
  %v1060 = vsub.f32 1.0, %v1059
  %v1061 = vmul.f32 %v1058, %v1060
  %v1062 = vadd.f32 %v1058, %v1061
  %vm1063 = vweird.f32 %v1056
  %vm1064 = vweird.f32 %v1058
  %vm1065 = vmor %vm1063, %vm1064
  %v1066 = vsel %vm1065, %v1058, %v1062
  %v1067 = vand.u32 2147483647, %v1056
  %vm1068 = vcmp.eq.f32.partialorder %v1067, 8.507059e+37
  %v1069 = vand.u32 %v1056, 2147483648
  %v1070 = vor.u32 1.1754944e-38, %v1069
  %v1071 = vsel %vm1068, %v1070, %v1066
  %v1072 = vmul.f32 1.0, %v1071
  %v1073 = vrcp.pop %v1057
  %v1074 = vmul.f32 %v1057, %v1073
  %v1075 = vsub.f32 1.0, %v1074
  %v1076 = vmul.f32 %v1073, %v1075
  %v1077 = vadd.f32 %v1073, %v1076
  %vm1078 = vweird.f32 %v1057
  %vm1079 = vweird.f32 %v1073
  %vm1080 = vmor %vm1078, %vm1079
  %v1081 = vsel %vm1080, %v1073, %v1077
  %v1082 = vand.u32 2147483647, %v1057
  %vm1083 = vcmp.eq.f32.partialorder %v1082, 8.507059e+37
  %v1084 = vand.u32 %v1057, 2147483648
  %v1085 = vor.u32 1.1754944e-38, %v1084
  %v1086 = vsel %vm1083, %v1085, %v1081
  %v1087 = vmul.f32 1.0, %v1086
  %v1088 = vld [vmem:[%s965 + $0x8] sm:$0xf]
  %v1089 = vld [vmem:[%s965 + $0x18] sm:$0xf]
  %v1090 = vunpack.c.l.bf16 %v1088
  %v1091 = vunpack.c.l.bf16 %v1089
  %1092 = vmatpush.bf16.msra.mxu0 %v358
  %1093 = vmatpush.bf16.msra.mxu0 %v357
  %1094 = vmatpush.bf16.msra.mxu0 %v356
  %1095 = vmatpush.bf16.msra.mxu0 %v355
  %1096 = vmatpush.bf16.msra.mxu0 %v354
  %1097 = vmatpush.bf16.msra.mxu0 %v353
  %1098 = vmatpush.bf16.msra.mxu0 %v352
  %1099 = vmatpush.bf16.msra.mxu0 %v351
  %1100 = vmatmul.bf16.gmra.mxu0 %v974
  %v1101 = vpop.f32.mrf.mxu0
  %v1102 = vadd.f32 0.0, %v1101
  %v1103 = vpop.f32.mrf.mxu0
  %v1104 = vadd.f32 0.0, %v1103
  %1105 = vdwg.mxu0
  %v1106 = vadd.f32 %v1090, %v1102
  %v1107 = vadd.f32 %v1091, %v1104
  %v1108 = vtanh.pop %v1106
  %v1109 = vtanh.pop %v1107
  %v1110 = vld [vmem:[%s965 + $0xc] sm:$0xf]
  %v1111 = vld [vmem:[%s965 + $0x1c] sm:$0xf]
  %v1112 = vunpack.c.l.bf16 %v1110
  %v1113 = vunpack.c.l.bf16 %v1111
  %1114 = vmatpush.bf16.msra.mxu0 %v428
  %1115 = vmatpush.bf16.msra.mxu0 %v427
  %1116 = vmatpush.bf16.msra.mxu0 %v426
  %1117 = vmatpush.bf16.msra.mxu0 %v425
  %1118 = vmatpush.bf16.msra.mxu0 %v424
  %1119 = vmatpush.bf16.msra.mxu0 %v423
  %1120 = vmatpush.bf16.msra.mxu0 %v422
  %1121 = vmatpush.bf16.msra.mxu0 %v421
  %1122 = vmatmul.bf16.gmra.mxu0 %v974
  %v1123 = vpop.f32.mrf.mxu0
  %v1124 = vadd.f32 0.0, %v1123
  %v1125 = vpop.f32.mrf.mxu0
  %v1126 = vadd.f32 0.0, %v1125
  %1127 = vdwg.mxu0
  %v1128 = vadd.f32 %v1112, %v1124
  %v1129 = vadd.f32 %v1113, %v1126
  %v1130 = vxor.u32 %v1128, 2147483648
  %v1131 = vxor.u32 %v1129, 2147483648
  %v1132 = vmul.f32 %v1130, 1.442695
  %v1133 = vpow.pop %v1132
  %v1134 = vmul.f32 %v1131, 1.442695
  %v1135 = vpow.pop %v1134
  %v1136 = vadd.f32 %v1133, 1.0
  %v1137 = vadd.f32 %v1135, 1.0
  %v1138 = vrcp.pop %v1136
  %v1139 = vmul.f32 %v1136, %v1138
  %v1140 = vsub.f32 1.0, %v1139
  %v1141 = vmul.f32 %v1138, %v1140
  %v1142 = vadd.f32 %v1138, %v1141
  %vm1143 = vweird.f32 %v1136
  %vm1144 = vweird.f32 %v1138
  %vm1145 = vmor %vm1143, %vm1144
  %v1146 = vsel %vm1145, %v1138, %v1142
  %v1147 = vand.u32 2147483647, %v1136
  %vm1148 = vcmp.eq.f32.partialorder %v1147, 8.507059e+37
  %v1149 = vand.u32 %v1136, 2147483648
  %v1150 = vor.u32 1.1754944e-38, %v1149
  %v1151 = vsel %vm1148, %v1150, %v1146
  %v1152 = vmul.f32 1.0, %v1151
  %v1153 = vrcp.pop %v1137
  %v1154 = vmul.f32 %v1137, %v1153
  %v1155 = vsub.f32 1.0, %v1154
  %v1156 = vmul.f32 %v1153, %v1155
  %v1157 = vadd.f32 %v1153, %v1156
  %vm1158 = vweird.f32 %v1137
  %vm1159 = vweird.f32 %v1153
  %vm1160 = vmor %vm1158, %vm1159
  %v1161 = vsel %vm1160, %v1153, %v1157
  %v1162 = vand.u32 2147483647, %v1137
  %vm1163 = vcmp.eq.f32.partialorder %v1162, 8.507059e+37
  %v1164 = vand.u32 %v1137, 2147483648
  %v1165 = vor.u32 1.1754944e-38, %v1164
  %v1166 = vsel %vm1163, %v1165, %v1161
  %v1167 = vmul.f32 1.0, %v1166
  %v1168 = vld [vmem:[#allocation3] sm:$0xff]
  %v1169 = vld [vmem:[#allocation3 + $0x8] sm:$0xff]
  %v1170 = vmul.f32 %v1072, %v1168
  %v1171 = vmul.f32 %v1087, %v1169
  %v1172 = vmul.f32 %v1014, %v1108
  %v1173 = vmul.f32 %v1029, %v1109
  %v1174 = vadd.f32 %v1170, %v1172
  %v1175 = vadd.f32 %v1171, %v1173
  %v1176 = vtanh.pop %v1174
  %v1177 = vtanh.pop %v1175
  %v1178 = vmul.f32 %v1152, %v1176
  %v1179 = vmul.f32 %v1167, %v1177
  %v1180 = vpack.c.bf16 %v1178, %v1178
  %v1181 = vpack.c.bf16 %v1179, %v1179
  %1182 = vst [vmem:[#allocation3] sm:$0xff] %v1174
  %1183 = vst [vmem:[#allocation3 + $0x8] sm:$0xff] %v1175
  %1184 = vst [vmem:[#allocation2] sm:$0xf] %v1180
  %1185 = vst [vmem:[#allocation2 + $0x4] sm:$0xf] %v1181
  %s1186 = scalar_lea.vmem %s4, 24
  %1187 = vst [vmem:[%s1186] sm:$0xf] %v1180
  %1188 = vst [vmem:[%s1186 + $0x4] sm:$0xf] %v1181
  %v1189 = vld [vmem:[#allocation2] sm:$0xf]
  %v1190 = vld [vmem:[#allocation2 + $0x4] sm:$0xf]
  %s1191 = scalar_lea.vmem %s0, 128
  %v1192 = vld [vmem:[%s1191] sm:$0xf]
  %v1193 = vld [vmem:[%s1191 + $0x10] sm:$0xf]
  %v1194 = vunpack.c.l.bf16 %v1192
  %v1195 = vunpack.c.l.bf16 %v1193
  %v1198 = vunpack.c.l.b16 %v1189
  %v1199 = vunpack.c.l.b16 %v1190
  %v1200 = vpack.c.b16 %v1199, %v1198
  %1202 = vmatpush.bf16.msra.mxu0 %v146
  %1203 = vmatpush.bf16.msra.mxu0 %v145
  %1204 = vmatpush.bf16.msra.mxu0 %v144
  %1205 = vmatpush.bf16.msra.mxu0 %v143
  %1206 = vmatpush.bf16.msra.mxu0 %v142
  %1207 = vmatpush.bf16.msra.mxu0 %v141
  %1208 = vmatpush.bf16.msra.mxu0 %v140
  %1209 = vmatpush.bf16.msra.mxu0 %v139
  %1210 = vmatmul.bf16.gmra.mxu0 %v1200
  %v1211 = vpop.f32.mrf.mxu0
  %v1212 = vadd.f32 0.0, %v1211
  %v1213 = vpop.f32.mrf.mxu0
  %v1214 = vadd.f32 0.0, %v1213
  %1215 = vdwg.mxu0
  %v1216 = vadd.f32 %v1194, %v1212
  %v1217 = vadd.f32 %v1195, %v1214
  %v1218 = vxor.u32 %v1216, 2147483648
  %v1219 = vxor.u32 %v1217, 2147483648
  %v1220 = vmul.f32 %v1218, 1.442695
  %v1221 = vpow.pop %v1220
  %v1222 = vmul.f32 %v1219, 1.442695
  %v1223 = vpow.pop %v1222
  %v1224 = vadd.f32 %v1221, 1.0
  %v1225 = vadd.f32 %v1223, 1.0
  %v1226 = vrcp.pop %v1224
  %v1227 = vmul.f32 %v1224, %v1226
  %v1228 = vsub.f32 1.0, %v1227
  %v1229 = vmul.f32 %v1226, %v1228
  %v1230 = vadd.f32 %v1226, %v1229
  %vm1231 = vweird.f32 %v1224
  %vm1232 = vweird.f32 %v1226
  %vm1233 = vmor %vm1231, %vm1232
  %v1234 = vsel %vm1233, %v1226, %v1230
  %v1235 = vand.u32 2147483647, %v1224
  %vm1236 = vcmp.eq.f32.partialorder %v1235, 8.507059e+37
  %v1237 = vand.u32 %v1224, 2147483648
  %v1238 = vor.u32 1.1754944e-38, %v1237
  %v1239 = vsel %vm1236, %v1238, %v1234
  %v1240 = vmul.f32 1.0, %v1239
  %v1241 = vrcp.pop %v1225
  %v1242 = vmul.f32 %v1225, %v1241
  %v1243 = vsub.f32 1.0, %v1242
  %v1244 = vmul.f32 %v1241, %v1243
  %v1245 = vadd.f32 %v1241, %v1244
  %vm1246 = vweird.f32 %v1225
  %vm1247 = vweird.f32 %v1241
  %vm1248 = vmor %vm1246, %vm1247
  %v1249 = vsel %vm1248, %v1241, %v1245
  %v1250 = vand.u32 2147483647, %v1225
  %vm1251 = vcmp.eq.f32.partialorder %v1250, 8.507059e+37
  %v1252 = vand.u32 %v1225, 2147483648
  %v1253 = vor.u32 1.1754944e-38, %v1252
  %v1254 = vsel %vm1251, %v1253, %v1249
  %v1255 = vmul.f32 1.0, %v1254
  %v1256 = vld [vmem:[%s1191 + $0x4] sm:$0xf]
  %v1257 = vld [vmem:[%s1191 + $0x14] sm:$0xf]
  %v1258 = vunpack.c.l.bf16 %v1256
  %v1259 = vunpack.c.l.bf16 %v1257
  %1260 = vmatpush.bf16.msra.mxu0 %v252
  %1261 = vmatpush.bf16.msra.mxu0 %v251
  %1262 = vmatpush.bf16.msra.mxu0 %v250
  %1263 = vmatpush.bf16.msra.mxu0 %v249
  %1264 = vmatpush.bf16.msra.mxu0 %v248
  %1265 = vmatpush.bf16.msra.mxu0 %v247
  %1266 = vmatpush.bf16.msra.mxu0 %v246
  %1267 = vmatpush.bf16.msra.mxu0 %v245
  %1268 = vmatmul.bf16.gmra.mxu0 %v1200
  %v1269 = vpop.f32.mrf.mxu0
  %v1270 = vadd.f32 0.0, %v1269
  %v1271 = vpop.f32.mrf.mxu0
  %v1272 = vadd.f32 0.0, %v1271
  %1273 = vdwg.mxu0
  %v1274 = vadd.f32 %v1258, %v1270
  %v1275 = vadd.f32 %v1259, %v1272
  %v1276 = vxor.u32 %v1274, 2147483648
  %v1277 = vxor.u32 %v1275, 2147483648
  %v1278 = vmul.f32 %v1276, 1.442695
  %v1279 = vpow.pop %v1278
  %v1280 = vmul.f32 %v1277, 1.442695
  %v1281 = vpow.pop %v1280
  %v1282 = vadd.f32 %v1279, 1.0
  %v1283 = vadd.f32 %v1281, 1.0
  %v1284 = vrcp.pop %v1282
  %v1285 = vmul.f32 %v1282, %v1284
  %v1286 = vsub.f32 1.0, %v1285
  %v1287 = vmul.f32 %v1284, %v1286
  %v1288 = vadd.f32 %v1284, %v1287
  %vm1289 = vweird.f32 %v1282
  %vm1290 = vweird.f32 %v1284
  %vm1291 = vmor %vm1289, %vm1290
  %v1292 = vsel %vm1291, %v1284, %v1288
  %v1293 = vand.u32 2147483647, %v1282
  %vm1294 = vcmp.eq.f32.partialorder %v1293, 8.507059e+37
  %v1295 = vand.u32 %v1282, 2147483648
  %v1296 = vor.u32 1.1754944e-38, %v1295
  %v1297 = vsel %vm1294, %v1296, %v1292
  %v1298 = vmul.f32 1.0, %v1297
  %v1299 = vrcp.pop %v1283
  %v1300 = vmul.f32 %v1283, %v1299
  %v1301 = vsub.f32 1.0, %v1300
  %v1302 = vmul.f32 %v1299, %v1301
  %v1303 = vadd.f32 %v1299, %v1302
  %vm1304 = vweird.f32 %v1283
  %vm1305 = vweird.f32 %v1299
  %vm1306 = vmor %vm1304, %vm1305
  %v1307 = vsel %vm1306, %v1299, %v1303
  %v1308 = vand.u32 2147483647, %v1283
  %vm1309 = vcmp.eq.f32.partialorder %v1308, 8.507059e+37
  %v1310 = vand.u32 %v1283, 2147483648
  %v1311 = vor.u32 1.1754944e-38, %v1310
  %v1312 = vsel %vm1309, %v1311, %v1307
  %v1313 = vmul.f32 1.0, %v1312
  %v1314 = vld [vmem:[%s1191 + $0x8] sm:$0xf]
  %v1315 = vld [vmem:[%s1191 + $0x18] sm:$0xf]
  %v1316 = vunpack.c.l.bf16 %v1314
  %v1317 = vunpack.c.l.bf16 %v1315
  %1318 = vmatpush.bf16.msra.mxu0 %v358
  %1319 = vmatpush.bf16.msra.mxu0 %v357
  %1320 = vmatpush.bf16.msra.mxu0 %v356
  %1321 = vmatpush.bf16.msra.mxu0 %v355
  %1322 = vmatpush.bf16.msra.mxu0 %v354
  %1323 = vmatpush.bf16.msra.mxu0 %v353
  %1324 = vmatpush.bf16.msra.mxu0 %v352
  %1325 = vmatpush.bf16.msra.mxu0 %v351
  %1326 = vmatmul.bf16.gmra.mxu0 %v1200
  %v1327 = vpop.f32.mrf.mxu0
  %v1328 = vadd.f32 0.0, %v1327
  %v1329 = vpop.f32.mrf.mxu0
  %v1330 = vadd.f32 0.0, %v1329
  %1331 = vdwg.mxu0
  %v1332 = vadd.f32 %v1316, %v1328
  %v1333 = vadd.f32 %v1317, %v1330
  %v1334 = vtanh.pop %v1332
  %v1335 = vtanh.pop %v1333
  %v1336 = vld [vmem:[%s1191 + $0xc] sm:$0xf]
  %v1337 = vld [vmem:[%s1191 + $0x1c] sm:$0xf]
  %v1338 = vunpack.c.l.bf16 %v1336
  %v1339 = vunpack.c.l.bf16 %v1337
  %1340 = vmatpush.bf16.msra.mxu0 %v428
  %1341 = vmatpush.bf16.msra.mxu0 %v427
  %1342 = vmatpush.bf16.msra.mxu0 %v426
  %1343 = vmatpush.bf16.msra.mxu0 %v425
  %1344 = vmatpush.bf16.msra.mxu0 %v424
  %1345 = vmatpush.bf16.msra.mxu0 %v423
  %1346 = vmatpush.bf16.msra.mxu0 %v422
  %1347 = vmatpush.bf16.msra.mxu0 %v421
  %1348 = vmatmul.bf16.gmra.mxu0 %v1200
  %v1349 = vpop.f32.mrf.mxu0
  %v1350 = vadd.f32 0.0, %v1349
  %v1351 = vpop.f32.mrf.mxu0
  %v1352 = vadd.f32 0.0, %v1351
  %1353 = vdwg.mxu0
  %v1354 = vadd.f32 %v1338, %v1350
  %v1355 = vadd.f32 %v1339, %v1352
  %v1356 = vxor.u32 %v1354, 2147483648
  %v1357 = vxor.u32 %v1355, 2147483648
  %v1358 = vmul.f32 %v1356, 1.442695
  %v1359 = vpow.pop %v1358
  %v1360 = vmul.f32 %v1357, 1.442695
  %v1361 = vpow.pop %v1360
  %v1362 = vadd.f32 %v1359, 1.0
  %v1363 = vadd.f32 %v1361, 1.0
  %v1364 = vrcp.pop %v1362
  %v1365 = vmul.f32 %v1362, %v1364
  %v1366 = vsub.f32 1.0, %v1365
  %v1367 = vmul.f32 %v1364, %v1366
  %v1368 = vadd.f32 %v1364, %v1367
  %vm1369 = vweird.f32 %v1362
  %vm1370 = vweird.f32 %v1364
  %vm1371 = vmor %vm1369, %vm1370
  %v1372 = vsel %vm1371, %v1364, %v1368
  %v1373 = vand.u32 2147483647, %v1362
  %vm1374 = vcmp.eq.f32.partialorder %v1373, 8.507059e+37
  %v1375 = vand.u32 %v1362, 2147483648
  %v1376 = vor.u32 1.1754944e-38, %v1375
  %v1377 = vsel %vm1374, %v1376, %v1372
  %v1378 = vmul.f32 1.0, %v1377
  %v1379 = vrcp.pop %v1363
  %v1380 = vmul.f32 %v1363, %v1379
  %v1381 = vsub.f32 1.0, %v1380
  %v1382 = vmul.f32 %v1379, %v1381
  %v1383 = vadd.f32 %v1379, %v1382
  %vm1384 = vweird.f32 %v1363
  %vm1385 = vweird.f32 %v1379
  %vm1386 = vmor %vm1384, %vm1385
  %v1387 = vsel %vm1386, %v1379, %v1383
  %v1388 = vand.u32 2147483647, %v1363
  %vm1389 = vcmp.eq.f32.partialorder %v1388, 8.507059e+37
  %v1390 = vand.u32 %v1363, 2147483648
  %v1391 = vor.u32 1.1754944e-38, %v1390
  %v1392 = vsel %vm1389, %v1391, %v1387
  %v1393 = vmul.f32 1.0, %v1392
  %v1394 = vld [vmem:[#allocation3] sm:$0xff]
  %v1395 = vld [vmem:[#allocation3 + $0x8] sm:$0xff]
  %v1396 = vmul.f32 %v1298, %v1394
  %v1397 = vmul.f32 %v1313, %v1395
  %v1398 = vmul.f32 %v1240, %v1334
  %v1399 = vmul.f32 %v1255, %v1335
  %v1400 = vadd.f32 %v1396, %v1398
  %v1401 = vadd.f32 %v1397, %v1399
  %v1402 = vtanh.pop %v1400
  %v1403 = vtanh.pop %v1401
  %v1404 = vmul.f32 %v1378, %v1402
  %v1405 = vmul.f32 %v1393, %v1403
  %v1406 = vpack.c.bf16 %v1404, %v1404
  %v1407 = vpack.c.bf16 %v1405, %v1405
  %1408 = vst [vmem:[#allocation3] sm:$0xff] %v1400
  %1409 = vst [vmem:[#allocation3 + $0x8] sm:$0xff] %v1401
  %1410 = vst [vmem:[#allocation2] sm:$0xf] %v1406
  %1411 = vst [vmem:[#allocation2 + $0x4] sm:$0xf] %v1407
  %s1412 = scalar_lea.vmem %s4, 32
  %1413 = vst [vmem:[%s1412] sm:$0xf] %v1406
  %1414 = vst [vmem:[%s1412 + $0x4] sm:$0xf] %v1407
  %v1415 = vld [vmem:[#allocation2] sm:$0xf]
  %v1416 = vld [vmem:[#allocation2 + $0x4] sm:$0xf]
  %s1417 = scalar_lea.vmem %s0, 160
  %v1418 = vld [vmem:[%s1417] sm:$0xf]
  %v1419 = vld [vmem:[%s1417 + $0x10] sm:$0xf]
  %v1420 = vunpack.c.l.bf16 %v1418
  %v1421 = vunpack.c.l.bf16 %v1419
  %v1424 = vunpack.c.l.b16 %v1415
  %v1425 = vunpack.c.l.b16 %v1416
  %v1426 = vpack.c.b16 %v1425, %v1424
  %1428 = vmatpush.bf16.msra.mxu0 %v146
  %1429 = vmatpush.bf16.msra.mxu0 %v145
  %1430 = vmatpush.bf16.msra.mxu0 %v144
  %1431 = vmatpush.bf16.msra.mxu0 %v143
  %1432 = vmatpush.bf16.msra.mxu0 %v142
  %1433 = vmatpush.bf16.msra.mxu0 %v141
  %1434 = vmatpush.bf16.msra.mxu0 %v140
  %1435 = vmatpush.bf16.msra.mxu0 %v139
  %1436 = vmatmul.bf16.gmra.mxu0 %v1426
  %v1437 = vpop.f32.mrf.mxu0
  %v1438 = vadd.f32 0.0, %v1437
  %v1439 = vpop.f32.mrf.mxu0
  %v1440 = vadd.f32 0.0, %v1439
  %1441 = vdwg.mxu0
  %v1442 = vadd.f32 %v1420, %v1438
  %v1443 = vadd.f32 %v1421, %v1440
  %v1444 = vxor.u32 %v1442, 2147483648
  %v1445 = vxor.u32 %v1443, 2147483648
  %v1446 = vmul.f32 %v1444, 1.442695
  %v1447 = vpow.pop %v1446
  %v1448 = vmul.f32 %v1445, 1.442695
  %v1449 = vpow.pop %v1448
  %v1450 = vadd.f32 %v1447, 1.0
  %v1451 = vadd.f32 %v1449, 1.0
  %v1452 = vrcp.pop %v1450
  %v1453 = vmul.f32 %v1450, %v1452
  %v1454 = vsub.f32 1.0, %v1453
  %v1455 = vmul.f32 %v1452, %v1454
  %v1456 = vadd.f32 %v1452, %v1455
  %vm1457 = vweird.f32 %v1450
  %vm1458 = vweird.f32 %v1452
  %vm1459 = vmor %vm1457, %vm1458
  %v1460 = vsel %vm1459, %v1452, %v1456
  %v1461 = vand.u32 2147483647, %v1450
  %vm1462 = vcmp.eq.f32.partialorder %v1461, 8.507059e+37
  %v1463 = vand.u32 %v1450, 2147483648
  %v1464 = vor.u32 1.1754944e-38, %v1463
  %v1465 = vsel %vm1462, %v1464, %v1460
  %v1466 = vmul.f32 1.0, %v1465
  %v1467 = vrcp.pop %v1451
  %v1468 = vmul.f32 %v1451, %v1467
  %v1469 = vsub.f32 1.0, %v1468
  %v1470 = vmul.f32 %v1467, %v1469
  %v1471 = vadd.f32 %v1467, %v1470
  %vm1472 = vweird.f32 %v1451
  %vm1473 = vweird.f32 %v1467
  %vm1474 = vmor %vm1472, %vm1473
  %v1475 = vsel %vm1474, %v1467, %v1471
  %v1476 = vand.u32 2147483647, %v1451
  %vm1477 = vcmp.eq.f32.partialorder %v1476, 8.507059e+37
  %v1478 = vand.u32 %v1451, 2147483648
  %v1479 = vor.u32 1.1754944e-38, %v1478
  %v1480 = vsel %vm1477, %v1479, %v1475
  %v1481 = vmul.f32 1.0, %v1480
  %v1482 = vld [vmem:[%s1417 + $0x4] sm:$0xf]
  %v1483 = vld [vmem:[%s1417 + $0x14] sm:$0xf]
  %v1484 = vunpack.c.l.bf16 %v1482
  %v1485 = vunpack.c.l.bf16 %v1483
  %1486 = vmatpush.bf16.msra.mxu0 %v252
  %1487 = vmatpush.bf16.msra.mxu0 %v251
  %1488 = vmatpush.bf16.msra.mxu0 %v250
  %1489 = vmatpush.bf16.msra.mxu0 %v249
  %1490 = vmatpush.bf16.msra.mxu0 %v248
  %1491 = vmatpush.bf16.msra.mxu0 %v247
  %1492 = vmatpush.bf16.msra.mxu0 %v246
  %1493 = vmatpush.bf16.msra.mxu0 %v245
  %1494 = vmatmul.bf16.gmra.mxu0 %v1426
  %v1495 = vpop.f32.mrf.mxu0
  %v1496 = vadd.f32 0.0, %v1495
  %v1497 = vpop.f32.mrf.mxu0
  %v1498 = vadd.f32 0.0, %v1497
  %1499 = vdwg.mxu0
  %v1500 = vadd.f32 %v1484, %v1496
  %v1501 = vadd.f32 %v1485, %v1498
  %v1502 = vxor.u32 %v1500, 2147483648
  %v1503 = vxor.u32 %v1501, 2147483648
  %v1504 = vmul.f32 %v1502, 1.442695
  %v1505 = vpow.pop %v1504
  %v1506 = vmul.f32 %v1503, 1.442695
  %v1507 = vpow.pop %v1506
  %v1508 = vadd.f32 %v1505, 1.0
  %v1509 = vadd.f32 %v1507, 1.0
  %v1510 = vrcp.pop %v1508
  %v1511 = vmul.f32 %v1508, %v1510
  %v1512 = vsub.f32 1.0, %v1511
  %v1513 = vmul.f32 %v1510, %v1512
  %v1514 = vadd.f32 %v1510, %v1513
  %vm1515 = vweird.f32 %v1508
  %vm1516 = vweird.f32 %v1510
  %vm1517 = vmor %vm1515, %vm1516
  %v1518 = vsel %vm1517, %v1510, %v1514
  %v1519 = vand.u32 2147483647, %v1508
  %vm1520 = vcmp.eq.f32.partialorder %v1519, 8.507059e+37
  %v1521 = vand.u32 %v1508, 2147483648
  %v1522 = vor.u32 1.1754944e-38, %v1521
  %v1523 = vsel %vm1520, %v1522, %v1518
  %v1524 = vmul.f32 1.0, %v1523
  %v1525 = vrcp.pop %v1509
  %v1526 = vmul.f32 %v1509, %v1525
  %v1527 = vsub.f32 1.0, %v1526
  %v1528 = vmul.f32 %v1525, %v1527
  %v1529 = vadd.f32 %v1525, %v1528
  %vm1530 = vweird.f32 %v1509
  %vm1531 = vweird.f32 %v1525
  %vm1532 = vmor %vm1530, %vm1531
  %v1533 = vsel %vm1532, %v1525, %v1529
  %v1534 = vand.u32 2147483647, %v1509
  %vm1535 = vcmp.eq.f32.partialorder %v1534, 8.507059e+37
  %v1536 = vand.u32 %v1509, 2147483648
  %v1537 = vor.u32 1.1754944e-38, %v1536
  %v1538 = vsel %vm1535, %v1537, %v1533
  %v1539 = vmul.f32 1.0, %v1538
  %v1540 = vld [vmem:[%s1417 + $0x8] sm:$0xf]
  %v1541 = vld [vmem:[%s1417 + $0x18] sm:$0xf]
  %v1542 = vunpack.c.l.bf16 %v1540
  %v1543 = vunpack.c.l.bf16 %v1541
  %1544 = vmatpush.bf16.msra.mxu0 %v358
  %1545 = vmatpush.bf16.msra.mxu0 %v357
  %1546 = vmatpush.bf16.msra.mxu0 %v356
  %1547 = vmatpush.bf16.msra.mxu0 %v355
  %1548 = vmatpush.bf16.msra.mxu0 %v354
  %1549 = vmatpush.bf16.msra.mxu0 %v353
  %1550 = vmatpush.bf16.msra.mxu0 %v352
  %1551 = vmatpush.bf16.msra.mxu0 %v351
  %1552 = vmatmul.bf16.gmra.mxu0 %v1426
  %v1553 = vpop.f32.mrf.mxu0
  %v1554 = vadd.f32 0.0, %v1553
  %v1555 = vpop.f32.mrf.mxu0
  %v1556 = vadd.f32 0.0, %v1555
  %1557 = vdwg.mxu0
  %v1558 = vadd.f32 %v1542, %v1554
  %v1559 = vadd.f32 %v1543, %v1556
  %v1560 = vtanh.pop %v1558
  %v1561 = vtanh.pop %v1559
  %v1562 = vld [vmem:[%s1417 + $0xc] sm:$0xf]
  %v1563 = vld [vmem:[%s1417 + $0x1c] sm:$0xf]
  %v1564 = vunpack.c.l.bf16 %v1562
  %v1565 = vunpack.c.l.bf16 %v1563
  %1566 = vmatpush.bf16.msra.mxu0 %v428
  %1567 = vmatpush.bf16.msra.mxu0 %v427
  %1568 = vmatpush.bf16.msra.mxu0 %v426
  %1569 = vmatpush.bf16.msra.mxu0 %v425
  %1570 = vmatpush.bf16.msra.mxu0 %v424
  %1571 = vmatpush.bf16.msra.mxu0 %v423
  %1572 = vmatpush.bf16.msra.mxu0 %v422
  %1573 = vmatpush.bf16.msra.mxu0 %v421
  %1574 = vmatmul.bf16.gmra.mxu0 %v1426
  %v1575 = vpop.f32.mrf.mxu0
  %v1576 = vadd.f32 0.0, %v1575
  %v1577 = vpop.f32.mrf.mxu0
  %v1578 = vadd.f32 0.0, %v1577
  %1579 = vdwg.mxu0
  %v1580 = vadd.f32 %v1564, %v1576
  %v1581 = vadd.f32 %v1565, %v1578
  %v1582 = vxor.u32 %v1580, 2147483648
  %v1583 = vxor.u32 %v1581, 2147483648
  %v1584 = vmul.f32 %v1582, 1.442695
  %v1585 = vpow.pop %v1584
  %v1586 = vmul.f32 %v1583, 1.442695
  %v1587 = vpow.pop %v1586
  %v1588 = vadd.f32 %v1585, 1.0
  %v1589 = vadd.f32 %v1587, 1.0
  %v1590 = vrcp.pop %v1588
  %v1591 = vmul.f32 %v1588, %v1590
  %v1592 = vsub.f32 1.0, %v1591
  %v1593 = vmul.f32 %v1590, %v1592
  %v1594 = vadd.f32 %v1590, %v1593
  %vm1595 = vweird.f32 %v1588
  %vm1596 = vweird.f32 %v1590
  %vm1597 = vmor %vm1595, %vm1596
  %v1598 = vsel %vm1597, %v1590, %v1594
  %v1599 = vand.u32 2147483647, %v1588
  %vm1600 = vcmp.eq.f32.partialorder %v1599, 8.507059e+37
  %v1601 = vand.u32 %v1588, 2147483648
  %v1602 = vor.u32 1.1754944e-38, %v1601
  %v1603 = vsel %vm1600, %v1602, %v1598
  %v1604 = vmul.f32 1.0, %v1603
  %v1605 = vrcp.pop %v1589
  %v1606 = vmul.f32 %v1589, %v1605
  %v1607 = vsub.f32 1.0, %v1606
  %v1608 = vmul.f32 %v1605, %v1607
  %v1609 = vadd.f32 %v1605, %v1608
  %vm1610 = vweird.f32 %v1589
  %vm1611 = vweird.f32 %v1605
  %vm1612 = vmor %vm1610, %vm1611
  %v1613 = vsel %vm1612, %v1605, %v1609
  %v1614 = vand.u32 2147483647, %v1589
  %vm1615 = vcmp.eq.f32.partialorder %v1614, 8.507059e+37
  %v1616 = vand.u32 %v1589, 2147483648
  %v1617 = vor.u32 1.1754944e-38, %v1616
  %v1618 = vsel %vm1615, %v1617, %v1613
  %v1619 = vmul.f32 1.0, %v1618
  %v1620 = vld [vmem:[#allocation3] sm:$0xff]
  %v1621 = vld [vmem:[#allocation3 + $0x8] sm:$0xff]
  %v1622 = vmul.f32 %v1524, %v1620
  %v1623 = vmul.f32 %v1539, %v1621
  %v1624 = vmul.f32 %v1466, %v1560
  %v1625 = vmul.f32 %v1481, %v1561
  %v1626 = vadd.f32 %v1622, %v1624
  %v1627 = vadd.f32 %v1623, %v1625
  %v1628 = vtanh.pop %v1626
  %v1629 = vtanh.pop %v1627
  %v1630 = vmul.f32 %v1604, %v1628
  %v1631 = vmul.f32 %v1619, %v1629
  %v1632 = vpack.c.bf16 %v1630, %v1630
  %v1633 = vpack.c.bf16 %v1631, %v1631
  %1634 = vst [vmem:[#allocation3] sm:$0xff] %v1626
  %1635 = vst [vmem:[#allocation3 + $0x8] sm:$0xff] %v1627
  %1636 = vst [vmem:[#allocation2] sm:$0xf] %v1632
  %1637 = vst [vmem:[#allocation2 + $0x4] sm:$0xf] %v1633
  %s1638 = scalar_lea.vmem %s4, 40
  %1639 = vst [vmem:[%s1638] sm:$0xf] %v1632
  %1640 = vst [vmem:[%s1638 + $0x4] sm:$0xf] %v1633
  %v1641 = vld [vmem:[#allocation2] sm:$0xf]
  %v1642 = vld [vmem:[#allocation2 + $0x4] sm:$0xf]
  %s1643 = scalar_lea.vmem %s0, 192
  %v1644 = vld [vmem:[%s1643] sm:$0xf]
  %v1645 = vld [vmem:[%s1643 + $0x10] sm:$0xf]
  %v1646 = vunpack.c.l.bf16 %v1644
  %v1647 = vunpack.c.l.bf16 %v1645
  %v1650 = vunpack.c.l.b16 %v1641
  %v1651 = vunpack.c.l.b16 %v1642
  %v1652 = vpack.c.b16 %v1651, %v1650
  %1654 = vmatpush.bf16.msra.mxu0 %v146
  %1655 = vmatpush.bf16.msra.mxu0 %v145
  %1656 = vmatpush.bf16.msra.mxu0 %v144
  %1657 = vmatpush.bf16.msra.mxu0 %v143
  %1658 = vmatpush.bf16.msra.mxu0 %v142
  %1659 = vmatpush.bf16.msra.mxu0 %v141
  %1660 = vmatpush.bf16.msra.mxu0 %v140
  %1661 = vmatpush.bf16.msra.mxu0 %v139
  %1662 = vmatmul.bf16.gmra.mxu0 %v1652
  %v1663 = vpop.f32.mrf.mxu0
  %v1664 = vadd.f32 0.0, %v1663
  %v1665 = vpop.f32.mrf.mxu0
  %v1666 = vadd.f32 0.0, %v1665
  %1667 = vdwg.mxu0
  %v1668 = vadd.f32 %v1646, %v1664
  %v1669 = vadd.f32 %v1647, %v1666
  %v1670 = vxor.u32 %v1668, 2147483648
  %v1671 = vxor.u32 %v1669, 2147483648
  %v1672 = vmul.f32 %v1670, 1.442695
  %v1673 = vpow.pop %v1672
  %v1674 = vmul.f32 %v1671, 1.442695
  %v1675 = vpow.pop %v1674
  %v1676 = vadd.f32 %v1673, 1.0
  %v1677 = vadd.f32 %v1675, 1.0
  %v1678 = vrcp.pop %v1676
  %v1679 = vmul.f32 %v1676, %v1678
  %v1680 = vsub.f32 1.0, %v1679
  %v1681 = vmul.f32 %v1678, %v1680
  %v1682 = vadd.f32 %v1678, %v1681
  %vm1683 = vweird.f32 %v1676
  %vm1684 = vweird.f32 %v1678
  %vm1685 = vmor %vm1683, %vm1684
  %v1686 = vsel %vm1685, %v1678, %v1682
  %v1687 = vand.u32 2147483647, %v1676
  %vm1688 = vcmp.eq.f32.partialorder %v1687, 8.507059e+37
  %v1689 = vand.u32 %v1676, 2147483648
  %v1690 = vor.u32 1.1754944e-38, %v1689
  %v1691 = vsel %vm1688, %v1690, %v1686
  %v1692 = vmul.f32 1.0, %v1691
  %v1693 = vrcp.pop %v1677
  %v1694 = vmul.f32 %v1677, %v1693
  %v1695 = vsub.f32 1.0, %v1694
  %v1696 = vmul.f32 %v1693, %v1695
  %v1697 = vadd.f32 %v1693, %v1696
  %vm1698 = vweird.f32 %v1677
  %vm1699 = vweird.f32 %v1693
  %vm1700 = vmor %vm1698, %vm1699
  %v1701 = vsel %vm1700, %v1693, %v1697
  %v1702 = vand.u32 2147483647, %v1677
  %vm1703 = vcmp.eq.f32.partialorder %v1702, 8.507059e+37
  %v1704 = vand.u32 %v1677, 2147483648
  %v1705 = vor.u32 1.1754944e-38, %v1704
  %v1706 = vsel %vm1703, %v1705, %v1701
  %v1707 = vmul.f32 1.0, %v1706
  %v1708 = vld [vmem:[%s1643 + $0x4] sm:$0xf]
  %v1709 = vld [vmem:[%s1643 + $0x14] sm:$0xf]
  %v1710 = vunpack.c.l.bf16 %v1708
  %v1711 = vunpack.c.l.bf16 %v1709
  %1712 = vmatpush.bf16.msra.mxu0 %v252
  %1713 = vmatpush.bf16.msra.mxu0 %v251
  %1714 = vmatpush.bf16.msra.mxu0 %v250
  %1715 = vmatpush.bf16.msra.mxu0 %v249
  %1716 = vmatpush.bf16.msra.mxu0 %v248
  %1717 = vmatpush.bf16.msra.mxu0 %v247
  %1718 = vmatpush.bf16.msra.mxu0 %v246
  %1719 = vmatpush.bf16.msra.mxu0 %v245
  %1720 = vmatmul.bf16.gmra.mxu0 %v1652
  %v1721 = vpop.f32.mrf.mxu0
  %v1722 = vadd.f32 0.0, %v1721
  %v1723 = vpop.f32.mrf.mxu0
  %v1724 = vadd.f32 0.0, %v1723
  %1725 = vdwg.mxu0
  %v1726 = vadd.f32 %v1710, %v1722
  %v1727 = vadd.f32 %v1711, %v1724
  %v1728 = vxor.u32 %v1726, 2147483648
  %v1729 = vxor.u32 %v1727, 2147483648
  %v1730 = vmul.f32 %v1728, 1.442695
  %v1731 = vpow.pop %v1730
  %v1732 = vmul.f32 %v1729, 1.442695
  %v1733 = vpow.pop %v1732
  %v1734 = vadd.f32 %v1731, 1.0
  %v1735 = vadd.f32 %v1733, 1.0
  %v1736 = vrcp.pop %v1734
  %v1737 = vmul.f32 %v1734, %v1736
  %v1738 = vsub.f32 1.0, %v1737
  %v1739 = vmul.f32 %v1736, %v1738
  %v1740 = vadd.f32 %v1736, %v1739
  %vm1741 = vweird.f32 %v1734
  %vm1742 = vweird.f32 %v1736
  %vm1743 = vmor %vm1741, %vm1742
  %v1744 = vsel %vm1743, %v1736, %v1740
  %v1745 = vand.u32 2147483647, %v1734
  %vm1746 = vcmp.eq.f32.partialorder %v1745, 8.507059e+37
  %v1747 = vand.u32 %v1734, 2147483648
  %v1748 = vor.u32 1.1754944e-38, %v1747
  %v1749 = vsel %vm1746, %v1748, %v1744
  %v1750 = vmul.f32 1.0, %v1749
  %v1751 = vrcp.pop %v1735
  %v1752 = vmul.f32 %v1735, %v1751
  %v1753 = vsub.f32 1.0, %v1752
  %v1754 = vmul.f32 %v1751, %v1753
  %v1755 = vadd.f32 %v1751, %v1754
  %vm1756 = vweird.f32 %v1735
  %vm1757 = vweird.f32 %v1751
  %vm1758 = vmor %vm1756, %vm1757
  %v1759 = vsel %vm1758, %v1751, %v1755
  %v1760 = vand.u32 2147483647, %v1735
  %vm1761 = vcmp.eq.f32.partialorder %v1760, 8.507059e+37
  %v1762 = vand.u32 %v1735, 2147483648
  %v1763 = vor.u32 1.1754944e-38, %v1762
  %v1764 = vsel %vm1761, %v1763, %v1759
  %v1765 = vmul.f32 1.0, %v1764
  %v1766 = vld [vmem:[%s1643 + $0x8] sm:$0xf]
  %v1767 = vld [vmem:[%s1643 + $0x18] sm:$0xf]
  %v1768 = vunpack.c.l.bf16 %v1766
  %v1769 = vunpack.c.l.bf16 %v1767
  %1770 = vmatpush.bf16.msra.mxu0 %v358
  %1771 = vmatpush.bf16.msra.mxu0 %v357
  %1772 = vmatpush.bf16.msra.mxu0 %v356
  %1773 = vmatpush.bf16.msra.mxu0 %v355
  %1774 = vmatpush.bf16.msra.mxu0 %v354
  %1775 = vmatpush.bf16.msra.mxu0 %v353
  %1776 = vmatpush.bf16.msra.mxu0 %v352
  %1777 = vmatpush.bf16.msra.mxu0 %v351
  %1778 = vmatmul.bf16.gmra.mxu0 %v1652
  %v1779 = vpop.f32.mrf.mxu0
  %v1780 = vadd.f32 0.0, %v1779
  %v1781 = vpop.f32.mrf.mxu0
  %v1782 = vadd.f32 0.0, %v1781
  %1783 = vdwg.mxu0
  %v1784 = vadd.f32 %v1768, %v1780
  %v1785 = vadd.f32 %v1769, %v1782
  %v1786 = vtanh.pop %v1784
  %v1787 = vtanh.pop %v1785
  %v1788 = vld [vmem:[%s1643 + $0xc] sm:$0xf]
  %v1789 = vld [vmem:[%s1643 + $0x1c] sm:$0xf]
  %v1790 = vunpack.c.l.bf16 %v1788
  %v1791 = vunpack.c.l.bf16 %v1789
  %1792 = vmatpush.bf16.msra.mxu0 %v428
  %1793 = vmatpush.bf16.msra.mxu0 %v427
  %1794 = vmatpush.bf16.msra.mxu0 %v426
  %1795 = vmatpush.bf16.msra.mxu0 %v425
  %1796 = vmatpush.bf16.msra.mxu0 %v424
  %1797 = vmatpush.bf16.msra.mxu0 %v423
  %1798 = vmatpush.bf16.msra.mxu0 %v422
  %1799 = vmatpush.bf16.msra.mxu0 %v421
  %1800 = vmatmul.bf16.gmra.mxu0 %v1652
  %v1801 = vpop.f32.mrf.mxu0
  %v1802 = vadd.f32 0.0, %v1801
  %v1803 = vpop.f32.mrf.mxu0
  %v1804 = vadd.f32 0.0, %v1803
  %1805 = vdwg.mxu0
  %v1806 = vadd.f32 %v1790, %v1802
  %v1807 = vadd.f32 %v1791, %v1804
  %v1808 = vxor.u32 %v1806, 2147483648
  %v1809 = vxor.u32 %v1807, 2147483648
  %v1810 = vmul.f32 %v1808, 1.442695
  %v1811 = vpow.pop %v1810
  %v1812 = vmul.f32 %v1809, 1.442695
  %v1813 = vpow.pop %v1812
  %v1814 = vadd.f32 %v1811, 1.0
  %v1815 = vadd.f32 %v1813, 1.0
  %v1816 = vrcp.pop %v1814
  %v1817 = vmul.f32 %v1814, %v1816
  %v1818 = vsub.f32 1.0, %v1817
  %v1819 = vmul.f32 %v1816, %v1818
  %v1820 = vadd.f32 %v1816, %v1819
  %vm1821 = vweird.f32 %v1814
  %vm1822 = vweird.f32 %v1816
  %vm1823 = vmor %vm1821, %vm1822
  %v1824 = vsel %vm1823, %v1816, %v1820
  %v1825 = vand.u32 2147483647, %v1814
  %vm1826 = vcmp.eq.f32.partialorder %v1825, 8.507059e+37
  %v1827 = vand.u32 %v1814, 2147483648
  %v1828 = vor.u32 1.1754944e-38, %v1827
  %v1829 = vsel %vm1826, %v1828, %v1824
  %v1830 = vmul.f32 1.0, %v1829
  %v1831 = vrcp.pop %v1815
  %v1832 = vmul.f32 %v1815, %v1831
  %v1833 = vsub.f32 1.0, %v1832
  %v1834 = vmul.f32 %v1831, %v1833
  %v1835 = vadd.f32 %v1831, %v1834
  %vm1836 = vweird.f32 %v1815
  %vm1837 = vweird.f32 %v1831
  %vm1838 = vmor %vm1836, %vm1837
  %v1839 = vsel %vm1838, %v1831, %v1835
  %v1840 = vand.u32 2147483647, %v1815
  %vm1841 = vcmp.eq.f32.partialorder %v1840, 8.507059e+37
  %v1842 = vand.u32 %v1815, 2147483648
  %v1843 = vor.u32 1.1754944e-38, %v1842
  %v1844 = vsel %vm1841, %v1843, %v1839
  %v1845 = vmul.f32 1.0, %v1844
  %v1846 = vld [vmem:[#allocation3] sm:$0xff]
  %v1847 = vld [vmem:[#allocation3 + $0x8] sm:$0xff]
  %v1848 = vmul.f32 %v1750, %v1846
  %v1849 = vmul.f32 %v1765, %v1847
  %v1850 = vmul.f32 %v1692, %v1786
  %v1851 = vmul.f32 %v1707, %v1787
  %v1852 = vadd.f32 %v1848, %v1850
  %v1853 = vadd.f32 %v1849, %v1851
  %v1854 = vtanh.pop %v1852
  %v1855 = vtanh.pop %v1853
  %v1856 = vmul.f32 %v1830, %v1854
  %v1857 = vmul.f32 %v1845, %v1855
  %v1858 = vpack.c.bf16 %v1856, %v1856
  %v1859 = vpack.c.bf16 %v1857, %v1857
  %1860 = vst [vmem:[#allocation3] sm:$0xff] %v1852
  %1861 = vst [vmem:[#allocation3 + $0x8] sm:$0xff] %v1853
  %1862 = vst [vmem:[#allocation2] sm:$0xf] %v1858
  %1863 = vst [vmem:[#allocation2 + $0x4] sm:$0xf] %v1859
  %s1864 = scalar_lea.vmem %s4, 48
  %1865 = vst [vmem:[%s1864] sm:$0xf] %v1858
  %1866 = vst [vmem:[%s1864 + $0x4] sm:$0xf] %v1859
  %v1867 = vld [vmem:[#allocation2] sm:$0xf]
  %v1868 = vld [vmem:[#allocation2 + $0x4] sm:$0xf]
  %s1869 = scalar_lea.vmem %s0, 224
  %v1870 = vld [vmem:[%s1869] sm:$0xf]
  %v1871 = vld [vmem:[%s1869 + $0x10] sm:$0xf]
  %v1872 = vunpack.c.l.bf16 %v1870
  %v1873 = vunpack.c.l.bf16 %v1871
  %v1876 = vunpack.c.l.b16 %v1867
  %v1877 = vunpack.c.l.b16 %v1868
  %v1878 = vpack.c.b16 %v1877, %v1876
  %1880 = vmatpush.bf16.msra.mxu0 %v146
  %1881 = vmatpush.bf16.msra.mxu0 %v145
  %1882 = vmatpush.bf16.msra.mxu0 %v144
  %1883 = vmatpush.bf16.msra.mxu0 %v143
  %1884 = vmatpush.bf16.msra.mxu0 %v142
  %1885 = vmatpush.bf16.msra.mxu0 %v141
  %1886 = vmatpush.bf16.msra.mxu0 %v140
  %1887 = vmatpush.bf16.msra.mxu0 %v139
  %1888 = vmatmul.bf16.gmra.mxu0 %v1878
  %v1889 = vpop.f32.mrf.mxu0
  %v1890 = vadd.f32 0.0, %v1889
  %v1891 = vpop.f32.mrf.mxu0
  %v1892 = vadd.f32 0.0, %v1891
  %1893 = vdwg.mxu0
  %v1894 = vadd.f32 %v1872, %v1890
  %v1895 = vadd.f32 %v1873, %v1892
  %v1896 = vxor.u32 %v1894, 2147483648
  %v1897 = vxor.u32 %v1895, 2147483648
  %v1898 = vmul.f32 %v1896, 1.442695
  %v1899 = vpow.pop %v1898
  %v1900 = vmul.f32 %v1897, 1.442695
  %v1901 = vpow.pop %v1900
  %v1902 = vadd.f32 %v1899, 1.0
  %v1903 = vadd.f32 %v1901, 1.0
  %v1904 = vrcp.pop %v1902
  %v1905 = vmul.f32 %v1902, %v1904
  %v1906 = vsub.f32 1.0, %v1905
  %v1907 = vmul.f32 %v1904, %v1906
  %v1908 = vadd.f32 %v1904, %v1907
  %vm1909 = vweird.f32 %v1902
  %vm1910 = vweird.f32 %v1904
  %vm1911 = vmor %vm1909, %vm1910
  %v1912 = vsel %vm1911, %v1904, %v1908
  %v1913 = vand.u32 2147483647, %v1902
  %vm1914 = vcmp.eq.f32.partialorder %v1913, 8.507059e+37
  %v1915 = vand.u32 %v1902, 2147483648
  %v1916 = vor.u32 1.1754944e-38, %v1915
  %v1917 = vsel %vm1914, %v1916, %v1912
  %v1918 = vmul.f32 1.0, %v1917
  %v1919 = vrcp.pop %v1903
  %v1920 = vmul.f32 %v1903, %v1919
  %v1921 = vsub.f32 1.0, %v1920
  %v1922 = vmul.f32 %v1919, %v1921
  %v1923 = vadd.f32 %v1919, %v1922
  %vm1924 = vweird.f32 %v1903
  %vm1925 = vweird.f32 %v1919
  %vm1926 = vmor %vm1924, %vm1925
  %v1927 = vsel %vm1926, %v1919, %v1923
  %v1928 = vand.u32 2147483647, %v1903
  %vm1929 = vcmp.eq.f32.partialorder %v1928, 8.507059e+37
  %v1930 = vand.u32 %v1903, 2147483648
  %v1931 = vor.u32 1.1754944e-38, %v1930
  %v1932 = vsel %vm1929, %v1931, %v1927
  %v1933 = vmul.f32 1.0, %v1932
  %v1934 = vld [vmem:[%s1869 + $0x4] sm:$0xf]
  %v1935 = vld [vmem:[%s1869 + $0x14] sm:$0xf]
  %v1936 = vunpack.c.l.bf16 %v1934
  %v1937 = vunpack.c.l.bf16 %v1935
  %1938 = vmatpush.bf16.msra.mxu0 %v252
  %1939 = vmatpush.bf16.msra.mxu0 %v251
  %1940 = vmatpush.bf16.msra.mxu0 %v250
  %1941 = vmatpush.bf16.msra.mxu0 %v249
  %1942 = vmatpush.bf16.msra.mxu0 %v248
  %1943 = vmatpush.bf16.msra.mxu0 %v247
  %1944 = vmatpush.bf16.msra.mxu0 %v246
  %1945 = vmatpush.bf16.msra.mxu0 %v245
  %1946 = vmatmul.bf16.gmra.mxu0 %v1878
  %v1947 = vpop.f32.mrf.mxu0
  %v1948 = vadd.f32 0.0, %v1947
  %v1949 = vpop.f32.mrf.mxu0
  %v1950 = vadd.f32 0.0, %v1949
  %1951 = vdwg.mxu0
  %v1952 = vadd.f32 %v1936, %v1948
  %v1953 = vadd.f32 %v1937, %v1950
  %v1954 = vxor.u32 %v1952, 2147483648
  %v1955 = vxor.u32 %v1953, 2147483648
  %v1956 = vmul.f32 %v1954, 1.442695
  %v1957 = vpow.pop %v1956
  %v1958 = vmul.f32 %v1955, 1.442695
  %v1959 = vpow.pop %v1958
  %v1960 = vadd.f32 %v1957, 1.0
  %v1961 = vadd.f32 %v1959, 1.0
  %v1962 = vrcp.pop %v1960
  %v1963 = vmul.f32 %v1960, %v1962
  %v1964 = vsub.f32 1.0, %v1963
  %v1965 = vmul.f32 %v1962, %v1964
  %v1966 = vadd.f32 %v1962, %v1965
  %vm1967 = vweird.f32 %v1960
  %vm1968 = vweird.f32 %v1962
  %vm1969 = vmor %vm1967, %vm1968
  %v1970 = vsel %vm1969, %v1962, %v1966
  %v1971 = vand.u32 2147483647, %v1960
  %vm1972 = vcmp.eq.f32.partialorder %v1971, 8.507059e+37
  %v1973 = vand.u32 %v1960, 2147483648
  %v1974 = vor.u32 1.1754944e-38, %v1973
  %v1975 = vsel %vm1972, %v1974, %v1970
  %v1976 = vmul.f32 1.0, %v1975
  %v1977 = vrcp.pop %v1961
  %v1978 = vmul.f32 %v1961, %v1977
  %v1979 = vsub.f32 1.0, %v1978
  %v1980 = vmul.f32 %v1977, %v1979
  %v1981 = vadd.f32 %v1977, %v1980
  %vm1982 = vweird.f32 %v1961
  %vm1983 = vweird.f32 %v1977
  %vm1984 = vmor %vm1982, %vm1983
  %v1985 = vsel %vm1984, %v1977, %v1981
  %v1986 = vand.u32 2147483647, %v1961
  %vm1987 = vcmp.eq.f32.partialorder %v1986, 8.507059e+37
  %v1988 = vand.u32 %v1961, 2147483648
  %v1989 = vor.u32 1.1754944e-38, %v1988
  %v1990 = vsel %vm1987, %v1989, %v1985
  %v1991 = vmul.f32 1.0, %v1990
  %v1992 = vld [vmem:[%s1869 + $0x8] sm:$0xf]
  %v1993 = vld [vmem:[%s1869 + $0x18] sm:$0xf]
  %v1994 = vunpack.c.l.bf16 %v1992
  %v1995 = vunpack.c.l.bf16 %v1993
  %1996 = vmatpush.bf16.msra.mxu0 %v358
  %1997 = vmatpush.bf16.msra.mxu0 %v357
  %1998 = vmatpush.bf16.msra.mxu0 %v356
  %1999 = vmatpush.bf16.msra.mxu0 %v355
  %2000 = vmatpush.bf16.msra.mxu0 %v354
  %2001 = vmatpush.bf16.msra.mxu0 %v353
  %2002 = vmatpush.bf16.msra.mxu0 %v352
  %2003 = vmatpush.bf16.msra.mxu0 %v351
  %2004 = vmatmul.bf16.gmra.mxu0 %v1878
  %v2005 = vpop.f32.mrf.mxu0
  %v2006 = vadd.f32 0.0, %v2005
  %v2007 = vpop.f32.mrf.mxu0
  %v2008 = vadd.f32 0.0, %v2007
  %2009 = vdwg.mxu0
  %v2010 = vadd.f32 %v1994, %v2006
  %v2011 = vadd.f32 %v1995, %v2008
  %v2012 = vtanh.pop %v2010
  %v2013 = vtanh.pop %v2011
  %v2014 = vld [vmem:[%s1869 + $0xc] sm:$0xf]
  %v2015 = vld [vmem:[%s1869 + $0x1c] sm:$0xf]
  %v2016 = vunpack.c.l.bf16 %v2014
  %v2017 = vunpack.c.l.bf16 %v2015
  %2018 = vmatpush.bf16.msra.mxu0 %v428
  %2019 = vmatpush.bf16.msra.mxu0 %v427
  %2020 = vmatpush.bf16.msra.mxu0 %v426
  %2021 = vmatpush.bf16.msra.mxu0 %v425
  %2022 = vmatpush.bf16.msra.mxu0 %v424
  %2023 = vmatpush.bf16.msra.mxu0 %v423
  %2024 = vmatpush.bf16.msra.mxu0 %v422
  %2025 = vmatpush.bf16.msra.mxu0 %v421
  %2026 = vmatmul.bf16.gmra.mxu0 %v1878
  %v2027 = vpop.f32.mrf.mxu0
  %v2028 = vadd.f32 0.0, %v2027
  %v2029 = vpop.f32.mrf.mxu0
  %v2030 = vadd.f32 0.0, %v2029
  %2031 = vdwg.mxu0
  %v2032 = vadd.f32 %v2016, %v2028
  %v2033 = vadd.f32 %v2017, %v2030
  %v2034 = vxor.u32 %v2032, 2147483648
  %v2035 = vxor.u32 %v2033, 2147483648
  %v2036 = vmul.f32 %v2034, 1.442695
  %v2037 = vpow.pop %v2036
  %v2038 = vmul.f32 %v2035, 1.442695
  %v2039 = vpow.pop %v2038
  %v2040 = vadd.f32 %v2037, 1.0
  %v2041 = vadd.f32 %v2039, 1.0
  %v2042 = vrcp.pop %v2040
  %v2043 = vmul.f32 %v2040, %v2042
  %v2044 = vsub.f32 1.0, %v2043
  %v2045 = vmul.f32 %v2042, %v2044
  %v2046 = vadd.f32 %v2042, %v2045
  %vm2047 = vweird.f32 %v2040
  %vm2048 = vweird.f32 %v2042
  %vm2049 = vmor %vm2047, %vm2048
  %v2050 = vsel %vm2049, %v2042, %v2046
  %v2051 = vand.u32 2147483647, %v2040
  %vm2052 = vcmp.eq.f32.partialorder %v2051, 8.507059e+37
  %v2053 = vand.u32 %v2040, 2147483648
  %v2054 = vor.u32 1.1754944e-38, %v2053
  %v2055 = vsel %vm2052, %v2054, %v2050
  %v2056 = vmul.f32 1.0, %v2055
  %v2057 = vrcp.pop %v2041
  %v2058 = vmul.f32 %v2041, %v2057
  %v2059 = vsub.f32 1.0, %v2058
  %v2060 = vmul.f32 %v2057, %v2059
  %v2061 = vadd.f32 %v2057, %v2060
  %vm2062 = vweird.f32 %v2041
  %vm2063 = vweird.f32 %v2057
  %vm2064 = vmor %vm2062, %vm2063
  %v2065 = vsel %vm2064, %v2057, %v2061
  %v2066 = vand.u32 2147483647, %v2041
  %vm2067 = vcmp.eq.f32.partialorder %v2066, 8.507059e+37
  %v2068 = vand.u32 %v2041, 2147483648
  %v2069 = vor.u32 1.1754944e-38, %v2068
  %v2070 = vsel %vm2067, %v2069, %v2065
  %v2071 = vmul.f32 1.0, %v2070
  %v2072 = vld [vmem:[#allocation3] sm:$0xff]
  %v2073 = vld [vmem:[#allocation3 + $0x8] sm:$0xff]
  %v2074 = vmul.f32 %v1976, %v2072
  %v2075 = vmul.f32 %v1991, %v2073
  %v2076 = vmul.f32 %v1918, %v2012
  %v2077 = vmul.f32 %v1933, %v2013
  %v2078 = vadd.f32 %v2074, %v2076
  %v2079 = vadd.f32 %v2075, %v2077
  %v2080 = vtanh.pop %v2078
  %v2081 = vtanh.pop %v2079
  %v2082 = vmul.f32 %v2056, %v2080
  %v2083 = vmul.f32 %v2071, %v2081
  %v2084 = vpack.c.bf16 %v2082, %v2082
  %v2085 = vpack.c.bf16 %v2083, %v2083
  %2086 = vst [vmem:[#allocation3] sm:$0xff] %v2078
  %2087 = vst [vmem:[#allocation3 + $0x8] sm:$0xff] %v2079
  %2088 = vst [vmem:[#allocation2] sm:$0xf] %v2084
  %2089 = vst [vmem:[#allocation2 + $0x4] sm:$0xf] %v2085
  %s2090 = scalar_lea.vmem %s4, 56
  %2091 = vst [vmem:[%s2090] sm:$0xf] %v2084
  %2092 = vst [vmem:[%s2090 + $0x4] sm:$0xf] %v2085
  // Predicated region
  $region22: #{class_lstm_forward.2} parent=0 // pred_check
    _
  $region23: #{class_lstm_forward.2} parent=0 // pred_check_branch
    %2094 = sbr.rel (0) target = $region25
  $region24: #{class_lstm_forward.2} parent=0 // pred_region
    _
  $region25: #{class_lstm_forward.2} parent=0 // pred_fallthru
    _
  // Predicated region
  $region26: #{class_lstm_forward.2} parent=0 // pred_check
    _
  $region27: #{class_lstm_forward.2} parent=0 // pred_check_branch
    %2096 = sbr.rel (0) target = $region29
  $region28: #{class_lstm_forward.2} parent=0 // pred_region
    _
  $region29: #{class_lstm_forward.2} parent=0 // pred_fallthru
    _

</llo_original>
